<compile_context>
chip_gen: v7x
topology: tpu7x:2x2x1
jax: 0.10.0
libtpu: 0.0.40
codegen_flags: <defaults>
</compile_context>

<pallas_src>
import functools

import numpy as np
import jax
import jax.numpy as jnp
from jax import lax
from jax.experimental import pallas as pl
from jax.experimental.pallas import tpu as pltpu


def round_to_multiple_of_64(x):
    # NOTE: intentionally identical to the PyTorch module (it uses +31, not +63).
    # Reproducing the module verbatim keeps inner_dim consistent with PyTorch.
    return (int(x) + 31) // 64 * 64


_INV_SQRT2 = 0.7071067811865476


def _dw_masks(H, W):
    """(9, H*W) f32 border masks for the padded 3x3 depthwise conv.

    Tap t = (dy+1)*3 + (dx+1); mask is 1.0 where (y+dy, x+dx) lies inside the
    image, 0.0 where the PyTorch conv would read zero padding.
    """
    y, x = np.mgrid[0:H, 0:W]
    masks = []
    for dy in (-1, 0, 1):
        for dx in (-1, 0, 1):
            m = (y + dy >= 0) & (y + dy < H) & (x + dx >= 0) & (x + dx < W)
            masks.append(m.reshape(-1))
    return np.stack(masks).astype(np.float32)


def ffn_kernel(x_ref, w1a_ref, w1b_ref, wdwa_ref, wdwb_ref,
               bdwa_ref, bdwb_ref, wdt_ref, bd_ref, mask_ref,
               o_ref, g_ref, *, H, W, chunk):
    """One batch element per grid step, (C, H*W) layout (spatial on lanes).

    x_ref   : (1, C, HW)   f32   input tile
    w1a/b   : (I, C)       bf16  project_in.conv weights, gate halves 1 / 2
    wdwa/b  : (I, 9)       f32   depthwise 3x3 taps (t = ky*3 + kx), per half
    bdwa/b  : (I, 1)       f32   depthwise bias, per half
    wdt_ref : (dim, I)     bf16  down_proj weight (pre-transposed)
    bd_ref  : (dim, 1)     f32   down_proj bias
    mask_ref: (9, HW)      f32   depthwise border masks
    o_ref   : (1, dim, HW) f32   output tile (lane-dense store)
    g_ref   : (I, HW)      bf16  VMEM scratch for the gated activation
    """
    HW = x_ref.shape[2]
    I = w1a_ref.shape[0]

    x = x_ref[0].astype(jnp.bfloat16)                    # (C, HW), lane-dense load

    # Static lane shifts for the 9 taps: out[p] needs h[p + dy*W + dx].
    shifts = [(-(dy * W + dx)) % HW for dy in (-1, 0, 1) for dx in (-1, 0, 1)]

    def depthwise(h, w_ref_h, b_ref_h, s):
        # h: (chunk, HW) f32. Depthwise 3x3, padding=1, via XLU lane rolls +
        # border masks -- no padded VMEM scratch, no unaligned shifted loads.
        acc = jnp.zeros(h.shape, jnp.float32)
        for t, shift in enumerate(shifts):
            tap_w = w_ref_h[s:s + chunk, t:t + 1]        # (chunk, 1), per-channel tap
            if shift == 0:                               # center tap: no roll, no mask
                acc = acc + h * tap_w
            else:
                shifted = pltpu.roll(h, shift=shift, axis=1) * mask_ref[t:t + 1, :]
                acc = acc + shifted * tap_w
        return acc + b_ref_h[s:s + chunk, :]             # + per-channel bias

    # Channel-chunked main loop keeps the live f32 accumulators vreg-bounded.
    # TODO(synk): for production-sized I / H*W add a spatial-row grid axis with
    # halo handling (and move this chunk axis onto the grid) for v7x's 64 MiB VMEM.
    for s in range(0, I, chunk):
        # project_in.conv: 1x1 conv as bf16 MXU matmuls, f32 accumulation, with
        # the two gate halves split at the weight level (no lane-64 split).
        h1 = jnp.dot(w1a_ref[s:s + chunk, :], x, preferred_element_type=jnp.float32)
        h2 = jnp.dot(w1b_ref[s:s + chunk, :], x, preferred_element_type=jnp.float32)
        # project_in.dwconv: depthwise 3x3, padding=1, bias=True.
        d1 = depthwise(h1, wdwa_ref, bdwa_ref, s)
        d2 = depthwise(h2, wdwb_ref, bdwb_ref, s)
        # Gated exact-erf GELU (torch.nn.functional.gelu default), f32 VPU/EUP.
        g = (0.5 * d1) * (1.0 + lax.erf(d1 * _INV_SQRT2)) * d2
        g_ref[s:s + chunk, :] = g.astype(jnp.bfloat16)

    # down_proj: single bf16 MXU matmul + bias; (dim, HW) output keeps the
    # store lane-dense (HW is a multiple of 128 at these shapes).
    out = jnp.dot(wdt_ref[...], g_ref[...], preferred_element_type=jnp.float32)
    o_ref[0] = (out + bd_ref[...]).astype(o_ref.dtype)


def feed_forward(x_nchw, packed):
    """Pallas FeedForward. Input/output are NCHW (B, C, H, W), like PyTorch."""
    w1a, w1b, wdwa, wdwb, bdwa, bdwb, wdt, bd = packed
    B, C, H, W = x_nchw.shape
    HW = H * W
    dim_out, I = wdt.shape
    chunk = 32 if I % 32 == 0 else I

    # NCHW -> (B, C, H*W) is a contiguous reshape: no transpose, no extra HBM pass.
    x_flat = x_nchw.reshape(B, C, HW)
    masks = jnp.asarray(_dw_masks(H, W))                 # (9, HW) f32 constants

    kernel = functools.partial(ffn_kernel, H=H, W=W, chunk=chunk)
    out_flat = pl.pallas_call(
        kernel,
        out_shape=jax.ShapeDtypeStruct((B, dim_out, HW), x_nchw.dtype),
        grid_spec=pltpu.PrefetchScalarGridSpec(
            num_scalar_prefetch=0,
            grid=(B,),
            in_specs=[
                pl.BlockSpec((1, C, HW), lambda b: (b, 0, 0)),
                pl.BlockSpec(w1a.shape, lambda b: (0, 0)),
                pl.BlockSpec(w1b.shape, lambda b: (0, 0)),
                pl.BlockSpec(wdwa.shape, lambda b: (0, 0)),
                pl.BlockSpec(wdwb.shape, lambda b: (0, 0)),
                pl.BlockSpec(bdwa.shape, lambda b: (0, 0)),
                pl.BlockSpec(bdwb.shape, lambda b: (0, 0)),
                pl.BlockSpec(wdt.shape, lambda b: (0, 0)),
                pl.BlockSpec(bd.shape, lambda b: (0, 0)),
                pl.BlockSpec(masks.shape, lambda b: (0, 0)),
            ],
            out_specs=pl.BlockSpec((1, dim_out, HW), lambda b: (b, 0, 0)),
            scratch_shapes=[pltpu.VMEM((I, HW), jnp.bfloat16)],
        ),
        compiler_params=pltpu.CompilerParams(
            # "parallel": v7x shards the batch over its 2 TensorCores;
            # near no-op on single-TC v5e/v6e, and safe (no cross-step carry).
            dimension_semantics=("parallel",),
            vmem_limit_bytes=32 * 1024 * 1024,
        ),
    )(x_flat, w1a, w1b, wdwa, wdwb, bdwa, bdwb, wdt, bd, masks)
    return out_flat.reshape(B, dim_out, H, W)


def init_params(key, dim, mult):
    """Deterministic synthetic parameters mirroring the PyTorch module's shapes."""
    inner = round_to_multiple_of_64(dim * mult)
    c2 = 2 * inner
    k1, k2, k3, k4, k5 = jax.random.split(key, 5)
    # project_in.conv : Conv2d(dim, 2*inner, k=1, bias=False)  -> (dim, 2*inner)
    w1 = jax.random.normal(k1, (dim, c2), jnp.float32) / np.sqrt(dim)
    # project_in.dwconv : Conv2d(2*inner, 2*inner, k=3, groups=2*inner, bias=True)
    wdw = jax.random.normal(k2, (3, 3, c2), jnp.float32) / 3.0
    bdw = jax.random.normal(k3, (c2,), jnp.float32) * 0.1
    # down_proj : Conv2d(inner, dim, k=1, bias=True)           -> (inner, dim)
    wd = jax.random.normal(k4, (inner, dim), jnp.float32) / np.sqrt(inner)
    bd = jax.random.normal(k5, (dim,), jnp.float32) * 0.1
    return w1, wdw, bdw, wd, bd


def pack_params(params):
    """Split the gate halves at the weight level and lay weights out for the kernel."""
    w1, wdw, bdw, wd, bd = params
    c2 = w1.shape[1]
    inner = c2 // 2
    dim_out = wd.shape[1]
    w1a = jnp.transpose(w1[:, :inner]).astype(jnp.bfloat16)       # (I, C)  bf16
    w1b = jnp.transpose(w1[:, inner:]).astype(jnp.bfloat16)       # (I, C)  bf16
    wdw9 = wdw.reshape(9, c2)                                     # taps t = ky*3 + kx
    wdwa = jnp.transpose(wdw9[:, :inner])                         # (I, 9)  f32
    wdwb = jnp.transpose(wdw9[:, inner:])                         # (I, 9)  f32
    bdwa = bdw[:inner].reshape(inner, 1)                          # (I, 1)  f32
    bdwb = bdw[inner:].reshape(inner, 1)                          # (I, 1)  f32
    wdt = jnp.transpose(wd).astype(jnp.bfloat16)                  # (dim, I) bf16
    bd_k = bd.reshape(dim_out, 1)                                 # (dim, 1) f32
    return w1a, w1b, wdwa, wdwb, bdwa, bdwb, wdt, bd_k


def feed_forward_ref(x_nchw, params):
    """Pure-JAX reference (NHWC internally), emulating the kernel's precision
    (bf16 matmul operands, f32 accumulation, f32 elementwise path)."""
    w1, wdw, bdw, wd, bd = params
    c2 = w1.shape[1]
    inner = c2 // 2
    x = jnp.transpose(x_nchw, (0, 2, 3, 1))
    h = jnp.einsum('bhwc,cd->bhwd', x.astype(jnp.bfloat16),
                   w1.astype(jnp.bfloat16),
                   preferred_element_type=jnp.float32)
    h = lax.conv_general_dilated(
        h, wdw.reshape(3, 3, 1, c2), (1, 1), 'SAME',
        dimension_numbers=('NHWC', 'HWIO', 'NHWC'),
        feature_group_count=c2) + bdw
    x1, x2 = h[..., :inner], h[..., inner:]
    g = jax.nn.gelu(x1, approximate=False) * x2
    out = jnp.einsum('bhwi,id->bhwd', g.astype(jnp.bfloat16),
                     wd.astype(jnp.bfloat16),
                     preferred_element_type=jnp.float32) + bd
    return jnp.transpose(out, (0, 3, 1, 2))


if __name__ == "__main__":
    key = jax.random.PRNGKey(0)
    kx, kp = jax.random.split(key)

    # Module config: dim=16, mult=2.66 -> inner_dim = 64, 2*inner_dim = 128.
    dim, mult = 16, 2.66
    B, H, W = 2, 16, 16

    x = jax.random.normal(kx, (B, dim, H, W), jnp.float32)        # NCHW, like PyTorch
    params = init_params(kp, dim, mult)
    packed = pack_params(params)

    out = jax.block_until_ready(feed_forward(x, packed))
    assert out.shape == (B, dim, H, W), out.shape

    ref = feed_forward_ref(x, params)
    np.testing.assert_allclose(np.asarray(out), np.asarray(ref),
                               rtol=5e-3, atol=5e-3)
    print("KERNEL_OK")
</pallas_src>

<mosaic_0001>
module attributes {stable_mosaic.version = 11 : i64} {
  func.func @ffn_kernel(%arg0: i32, %arg1: memref<1x16x256xf32, #tpu.memory_space<vmem>>, %arg2: memref<64x16xbf16, #tpu.memory_space<vmem>>, %arg3: memref<64x16xbf16, #tpu.memory_space<vmem>>, %arg4: memref<64x9xf32, #tpu.memory_space<vmem>>, %arg5: memref<64x9xf32, #tpu.memory_space<vmem>>, %arg6: memref<64x1xf32, #tpu.memory_space<vmem>>, %arg7: memref<64x1xf32, #tpu.memory_space<vmem>>, %arg8: memref<16x64xbf16, #tpu.memory_space<vmem>>, %arg9: memref<16x1xf32, #tpu.memory_space<vmem>>, %arg10: memref<9x256xf32, #tpu.memory_space<vmem>>, %arg11: memref<1x16x256xf32, #tpu.memory_space<vmem>>, %arg12: memref<64x256xbf16, #tpu.memory_space<vmem>>) attributes {dimension_semantics = [#tpu.dimension_semantics<parallel>], iteration_bounds = array<i64: 2>, scalar_prefetch = 0 : i64, scratch_operands = 1 : i64, tpu.core_type = #tpu.core_type<tc>, window_params = [{transform_indices = @transform_0, window_bounds = array<i64: 1, 16, 256>}, {pipeline_mode = #tpu.pipeline_mode<synchronous>, transform_indices = @transform_1, window_bounds = array<i64: 64, 16>}, {pipeline_mode = #tpu.pipeline_mode<synchronous>, transform_indices = @transform_2, window_bounds = array<i64: 64, 16>}, {pipeline_mode = #tpu.pipeline_mode<synchronous>, transform_indices = @transform_3, window_bounds = array<i64: 64, 9>}, {pipeline_mode = #tpu.pipeline_mode<synchronous>, transform_indices = @transform_4, window_bounds = array<i64: 64, 9>}, {pipeline_mode = #tpu.pipeline_mode<synchronous>, transform_indices = @transform_5, window_bounds = array<i64: 64, 1>}, {pipeline_mode = #tpu.pipeline_mode<synchronous>, transform_indices = @transform_6, window_bounds = array<i64: 64, 1>}, {pipeline_mode = #tpu.pipeline_mode<synchronous>, transform_indices = @transform_7, window_bounds = array<i64: 16, 64>}, {pipeline_mode = #tpu.pipeline_mode<synchronous>, transform_indices = @transform_8, window_bounds = array<i64: 16, 1>}, {pipeline_mode = #tpu.pipeline_mode<synchronous>, transform_indices = @transform_9, window_bounds = array<i64: 9, 256>}, {transform_indices = @transform_10, window_bounds = array<i64: 1, 16, 256>}]} {
    %c0 = arith.constant 0 : index
    %c0_0 = arith.constant 0 : index
    %c0_1 = arith.constant 0 : index
    %0 = vector.load %arg1[%c0, %c0_0, %c0_1] : memref<1x16x256xf32, #tpu.memory_space<vmem>>, vector<1x16x256xf32>
    %1 = vector.shape_cast %0 : vector<1x16x256xf32> to vector<16x256xf32>
    %2 = arith.truncf %1 : vector<16x256xf32> to vector<16x256xbf16>
    %c0_2 = arith.constant 0 : index
    %c0_3 = arith.constant 0 : index
    %3 = vector.load %arg2[%c0_2, %c0_3] : memref<64x16xbf16, #tpu.memory_space<vmem>>, vector<32x16xbf16>
    %cst = arith.constant dense<0.000000e+00> : vector<32x256xf32>
    %4 = tpu.matmul %3, %2, %cst {dimension_numbers = #tpu.dot_dimension_numbers<[1], [0], [0], [1], [0, 0, 1, 1], [], []>} : vector<32x16xbf16>, vector<16x256xbf16>, vector<32x256xf32> -> vector<32x256xf32>
    %c0_4 = arith.constant 0 : index
    %c0_5 = arith.constant 0 : index
    %5 = vector.load %arg3[%c0_4, %c0_5] : memref<64x16xbf16, #tpu.memory_space<vmem>>, vector<32x16xbf16>
    %cst_6 = arith.constant dense<0.000000e+00> : vector<32x256xf32>
    %6 = tpu.matmul %5, %2, %cst_6 {dimension_numbers = #tpu.dot_dimension_numbers<[1], [0], [0], [1], [0, 0, 1, 1], [], []>} : vector<32x16xbf16>, vector<16x256xbf16>, vector<32x256xf32> -> vector<32x256xf32>
    %cst_7 = arith.constant 0.000000e+00 : f32
    %7 = vector.broadcast %cst_7 : f32 to vector<32x256xf32>
    %c0_8 = arith.constant 0 : index
    %c0_9 = arith.constant 0 : index
    %8 = vector.load %arg4[%c0_8, %c0_9] : memref<64x9xf32, #tpu.memory_space<vmem>>, vector<32x1xf32>
    %c17_i32 = arith.constant 17 : i32
    %9 = tpu.dynamic_rotate %4 by %c17_i32 dim 1 : vector<32x256xf32>, i32 -> vector<32x256xf32>
    %c0_10 = arith.constant 0 : index
    %c0_11 = arith.constant 0 : index
    %10 = vector.load %arg10[%c0_10, %c0_11] : memref<9x256xf32, #tpu.memory_space<vmem>>, vector<1x256xf32>
    %11 = vector.broadcast %10 : vector<1x256xf32> to vector<32x256xf32>
    %12 = arith.mulf %9, %11 : vector<32x256xf32>
    %13 = vector.broadcast %8 : vector<32x1xf32> to vector<32x256xf32>
    %14 = arith.mulf %12, %13 : vector<32x256xf32>
    %15 = arith.addf %7, %14 : vector<32x256xf32>
    %c0_12 = arith.constant 0 : index
    %c1 = arith.constant 1 : index
    %16 = vector.load %arg4[%c0_12, %c1] : memref<64x9xf32, #tpu.memory_space<vmem>>, vector<32x1xf32>
    %c16_i32 = arith.constant 16 : i32
    %17 = tpu.dynamic_rotate %4 by %c16_i32 dim 1 : vector<32x256xf32>, i32 -> vector<32x256xf32>
    %c1_13 = arith.constant 1 : index
    %c0_14 = arith.constant 0 : index
    %18 = vector.load %arg10[%c1_13, %c0_14] : memref<9x256xf32, #tpu.memory_space<vmem>>, vector<1x256xf32>
    %19 = vector.broadcast %18 : vector<1x256xf32> to vector<32x256xf32>
    %20 = arith.mulf %17, %19 : vector<32x256xf32>
    %21 = vector.broadcast %16 : vector<32x1xf32> to vector<32x256xf32>
    %22 = arith.mulf %20, %21 : vector<32x256xf32>
    %23 = arith.addf %15, %22 : vector<32x256xf32>
    %c0_15 = arith.constant 0 : index
    %c2 = arith.constant 2 : index
    %24 = vector.load %arg4[%c0_15, %c2] : memref<64x9xf32, #tpu.memory_space<vmem>>, vector<32x1xf32>
    %c15_i32 = arith.constant 15 : i32
    %25 = tpu.dynamic_rotate %4 by %c15_i32 dim 1 : vector<32x256xf32>, i32 -> vector<32x256xf32>
    %c2_16 = arith.constant 2 : index
    %c0_17 = arith.constant 0 : index
    %26 = vector.load %arg10[%c2_16, %c0_17] : memref<9x256xf32, #tpu.memory_space<vmem>>, vector<1x256xf32>
    %27 = vector.broadcast %26 : vector<1x256xf32> to vector<32x256xf32>
    %28 = arith.mulf %25, %27 : vector<32x256xf32>
    %29 = vector.broadcast %24 : vector<32x1xf32> to vector<32x256xf32>
    %30 = arith.mulf %28, %29 : vector<32x256xf32>
    %31 = arith.addf %23, %30 : vector<32x256xf32>
    %c0_18 = arith.constant 0 : index
    %c3 = arith.constant 3 : index
    %32 = vector.load %arg4[%c0_18, %c3] : memref<64x9xf32, #tpu.memory_space<vmem>>, vector<32x1xf32>
    %c1_i32 = arith.constant 1 : i32
    %33 = tpu.dynamic_rotate %4 by %c1_i32 dim 1 : vector<32x256xf32>, i32 -> vector<32x256xf32>
    %c3_19 = arith.constant 3 : index
    %c0_20 = arith.constant 0 : index
    %34 = vector.load %arg10[%c3_19, %c0_20] : memref<9x256xf32, #tpu.memory_space<vmem>>, vector<1x256xf32>
    %35 = vector.broadcast %34 : vector<1x256xf32> to vector<32x256xf32>
    %36 = arith.mulf %33, %35 : vector<32x256xf32>
    %37 = vector.broadcast %32 : vector<32x1xf32> to vector<32x256xf32>
    %38 = arith.mulf %36, %37 : vector<32x256xf32>
    %39 = arith.addf %31, %38 : vector<32x256xf32>
    %c0_21 = arith.constant 0 : index
    %c4 = arith.constant 4 : index
    %40 = vector.load %arg4[%c0_21, %c4] : memref<64x9xf32, #tpu.memory_space<vmem>>, vector<32x1xf32>
    %41 = vector.broadcast %40 : vector<32x1xf32> to vector<32x256xf32>
    %42 = arith.mulf %4, %41 : vector<32x256xf32>
    %43 = arith.addf %39, %42 : vector<32x256xf32>
    %c0_22 = arith.constant 0 : index
    %c5 = arith.constant 5 : index
    %44 = vector.load %arg4[%c0_22, %c5] : memref<64x9xf32, #tpu.memory_space<vmem>>, vector<32x1xf32>
    %c255_i32 = arith.constant 255 : i32
    %45 = tpu.dynamic_rotate %4 by %c255_i32 dim 1 : vector<32x256xf32>, i32 -> vector<32x256xf32>
    %c5_23 = arith.constant 5 : index
    %c0_24 = arith.constant 0 : index
    %46 = vector.load %arg10[%c5_23, %c0_24] : memref<9x256xf32, #tpu.memory_space<vmem>>, vector<1x256xf32>
    %47 = vector.broadcast %46 : vector<1x256xf32> to vector<32x256xf32>
    %48 = arith.mulf %45, %47 : vector<32x256xf32>
    %49 = vector.broadcast %44 : vector<32x1xf32> to vector<32x256xf32>
    %50 = arith.mulf %48, %49 : vector<32x256xf32>
    %51 = arith.addf %43, %50 : vector<32x256xf32>
    %c0_25 = arith.constant 0 : index
    %c6 = arith.constant 6 : index
    %52 = vector.load %arg4[%c0_25, %c6] : memref<64x9xf32, #tpu.memory_space<vmem>>, vector<32x1xf32>
    %c241_i32 = arith.constant 241 : i32
    %53 = tpu.dynamic_rotate %4 by %c241_i32 dim 1 : vector<32x256xf32>, i32 -> vector<32x256xf32>
    %c6_26 = arith.constant 6 : index
    %c0_27 = arith.constant 0 : index
    %54 = vector.load %arg10[%c6_26, %c0_27] : memref<9x256xf32, #tpu.memory_space<vmem>>, vector<1x256xf32>
    %55 = vector.broadcast %54 : vector<1x256xf32> to vector<32x256xf32>
    %56 = arith.mulf %53, %55 : vector<32x256xf32>
    %57 = vector.broadcast %52 : vector<32x1xf32> to vector<32x256xf32>
    %58 = arith.mulf %56, %57 : vector<32x256xf32>
    %59 = arith.addf %51, %58 : vector<32x256xf32>
    %c0_28 = arith.constant 0 : index
    %c7 = arith.constant 7 : index
    %60 = vector.load %arg4[%c0_28, %c7] : memref<64x9xf32, #tpu.memory_space<vmem>>, vector<32x1xf32>
    %c240_i32 = arith.constant 240 : i32
    %61 = tpu.dynamic_rotate %4 by %c240_i32 dim 1 : vector<32x256xf32>, i32 -> vector<32x256xf32>
    %c7_29 = arith.constant 7 : index
    %c0_30 = arith.constant 0 : index
    %62 = vector.load %arg10[%c7_29, %c0_30] : memref<9x256xf32, #tpu.memory_space<vmem>>, vector<1x256xf32>
    %63 = vector.broadcast %62 : vector<1x256xf32> to vector<32x256xf32>
    %64 = arith.mulf %61, %63 : vector<32x256xf32>
    %65 = vector.broadcast %60 : vector<32x1xf32> to vector<32x256xf32>
    %66 = arith.mulf %64, %65 : vector<32x256xf32>
    %67 = arith.addf %59, %66 : vector<32x256xf32>
    %c0_31 = arith.constant 0 : index
    %c8 = arith.constant 8 : index
    %68 = vector.load %arg4[%c0_31, %c8] : memref<64x9xf32, #tpu.memory_space<vmem>>, vector<32x1xf32>
    %c239_i32 = arith.constant 239 : i32
    %69 = tpu.dynamic_rotate %4 by %c239_i32 dim 1 : vector<32x256xf32>, i32 -> vector<32x256xf32>
    %c8_32 = arith.constant 8 : index
    %c0_33 = arith.constant 0 : index
    %70 = vector.load %arg10[%c8_32, %c0_33] : memref<9x256xf32, #tpu.memory_space<vmem>>, vector<1x256xf32>
    %71 = vector.broadcast %70 : vector<1x256xf32> to vector<32x256xf32>
    %72 = arith.mulf %69, %71 : vector<32x256xf32>
    %73 = vector.broadcast %68 : vector<32x1xf32> to vector<32x256xf32>
    %74 = arith.mulf %72, %73 : vector<32x256xf32>
    %75 = arith.addf %67, %74 : vector<32x256xf32>
    %c0_34 = arith.constant 0 : index
    %c0_35 = arith.constant 0 : index
    %76 = vector.load %arg6[%c0_34, %c0_35] : memref<64x1xf32, #tpu.memory_space<vmem>>, vector<32x1xf32>
    %77 = vector.broadcast %76 : vector<32x1xf32> to vector<32x256xf32>
    %78 = arith.addf %75, %77 : vector<32x256xf32>
    %cst_36 = arith.constant 0.000000e+00 : f32
    %79 = vector.broadcast %cst_36 : f32 to vector<32x256xf32>
    %c0_37 = arith.constant 0 : index
    %c0_38 = arith.constant 0 : index
    %80 = vector.load %arg5[%c0_37, %c0_38] : memref<64x9xf32, #tpu.memory_space<vmem>>, vector<32x1xf32>
    %c17_i32_39 = arith.constant 17 : i32
    %81 = tpu.dynamic_rotate %6 by %c17_i32_39 dim 1 : vector<32x256xf32>, i32 -> vector<32x256xf32>
    %c0_40 = arith.constant 0 : index
    %c0_41 = arith.constant 0 : index
    %82 = vector.load %arg10[%c0_40, %c0_41] : memref<9x256xf32, #tpu.memory_space<vmem>>, vector<1x256xf32>
    %83 = vector.broadcast %82 : vector<1x256xf32> to vector<32x256xf32>
    %84 = arith.mulf %81, %83 : vector<32x256xf32>
    %85 = vector.broadcast %80 : vector<32x1xf32> to vector<32x256xf32>
    %86 = arith.mulf %84, %85 : vector<32x256xf32>
    %87 = arith.addf %79, %86 : vector<32x256xf32>
    %c0_42 = arith.constant 0 : index
    %c1_43 = arith.constant 1 : index
    %88 = vector.load %arg5[%c0_42, %c1_43] : memref<64x9xf32, #tpu.memory_space<vmem>>, vector<32x1xf32>
    %c16_i32_44 = arith.constant 16 : i32
    %89 = tpu.dynamic_rotate %6 by %c16_i32_44 dim 1 : vector<32x256xf32>, i32 -> vector<32x256xf32>
    %c1_45 = arith.constant 1 : index
    %c0_46 = arith.constant 0 : index
    %90 = vector.load %arg10[%c1_45, %c0_46] : memref<9x256xf32, #tpu.memory_space<vmem>>, vector<1x256xf32>
    %91 = vector.broadcast %90 : vector<1x256xf32> to vector<32x256xf32>
    %92 = arith.mulf %89, %91 : vector<32x256xf32>
    %93 = vector.broadcast %88 : vector<32x1xf32> to vector<32x256xf32>
    %94 = arith.mulf %92, %93 : vector<32x256xf32>
    %95 = arith.addf %87, %94 : vector<32x256xf32>
    %c0_47 = arith.constant 0 : index
    %c2_48 = arith.constant 2 : index
    %96 = vector.load %arg5[%c0_47, %c2_48] : memref<64x9xf32, #tpu.memory_space<vmem>>, vector<32x1xf32>
    %c15_i32_49 = arith.constant 15 : i32
    %97 = tpu.dynamic_rotate %6 by %c15_i32_49 dim 1 : vector<32x256xf32>, i32 -> vector<32x256xf32>
    %c2_50 = arith.constant 2 : index
    %c0_51 = arith.constant 0 : index
    %98 = vector.load %arg10[%c2_50, %c0_51] : memref<9x256xf32, #tpu.memory_space<vmem>>, vector<1x256xf32>
    %99 = vector.broadcast %98 : vector<1x256xf32> to vector<32x256xf32>
    %100 = arith.mulf %97, %99 : vector<32x256xf32>
    %101 = vector.broadcast %96 : vector<32x1xf32> to vector<32x256xf32>
    %102 = arith.mulf %100, %101 : vector<32x256xf32>
    %103 = arith.addf %95, %102 : vector<32x256xf32>
    %c0_52 = arith.constant 0 : index
    %c3_53 = arith.constant 3 : index
    %104 = vector.load %arg5[%c0_52, %c3_53] : memref<64x9xf32, #tpu.memory_space<vmem>>, vector<32x1xf32>
    %c1_i32_54 = arith.constant 1 : i32
    %105 = tpu.dynamic_rotate %6 by %c1_i32_54 dim 1 : vector<32x256xf32>, i32 -> vector<32x256xf32>
    %c3_55 = arith.constant 3 : index
    %c0_56 = arith.constant 0 : index
    %106 = vector.load %arg10[%c3_55, %c0_56] : memref<9x256xf32, #tpu.memory_space<vmem>>, vector<1x256xf32>
    %107 = vector.broadcast %106 : vector<1x256xf32> to vector<32x256xf32>
    %108 = arith.mulf %105, %107 : vector<32x256xf32>
    %109 = vector.broadcast %104 : vector<32x1xf32> to vector<32x256xf32>
    %110 = arith.mulf %108, %109 : vector<32x256xf32>
    %111 = arith.addf %103, %110 : vector<32x256xf32>
    %c0_57 = arith.constant 0 : index
    %c4_58 = arith.constant 4 : index
    %112 = vector.load %arg5[%c0_57, %c4_58] : memref<64x9xf32, #tpu.memory_space<vmem>>, vector<32x1xf32>
    %113 = vector.broadcast %112 : vector<32x1xf32> to vector<32x256xf32>
    %114 = arith.mulf %6, %113 : vector<32x256xf32>
    %115 = arith.addf %111, %114 : vector<32x256xf32>
    %c0_59 = arith.constant 0 : index
    %c5_60 = arith.constant 5 : index
    %116 = vector.load %arg5[%c0_59, %c5_60] : memref<64x9xf32, #tpu.memory_space<vmem>>, vector<32x1xf32>
    %c255_i32_61 = arith.constant 255 : i32
    %117 = tpu.dynamic_rotate %6 by %c255_i32_61 dim 1 : vector<32x256xf32>, i32 -> vector<32x256xf32>
    %c5_62 = arith.constant 5 : index
    %c0_63 = arith.constant 0 : index
    %118 = vector.load %arg10[%c5_62, %c0_63] : memref<9x256xf32, #tpu.memory_space<vmem>>, vector<1x256xf32>
    %119 = vector.broadcast %118 : vector<1x256xf32> to vector<32x256xf32>
    %120 = arith.mulf %117, %119 : vector<32x256xf32>
    %121 = vector.broadcast %116 : vector<32x1xf32> to vector<32x256xf32>
    %122 = arith.mulf %120, %121 : vector<32x256xf32>
    %123 = arith.addf %115, %122 : vector<32x256xf32>
    %c0_64 = arith.constant 0 : index
    %c6_65 = arith.constant 6 : index
    %124 = vector.load %arg5[%c0_64, %c6_65] : memref<64x9xf32, #tpu.memory_space<vmem>>, vector<32x1xf32>
    %c241_i32_66 = arith.constant 241 : i32
    %125 = tpu.dynamic_rotate %6 by %c241_i32_66 dim 1 : vector<32x256xf32>, i32 -> vector<32x256xf32>
    %c6_67 = arith.constant 6 : index
    %c0_68 = arith.constant 0 : index
    %126 = vector.load %arg10[%c6_67, %c0_68] : memref<9x256xf32, #tpu.memory_space<vmem>>, vector<1x256xf32>
    %127 = vector.broadcast %126 : vector<1x256xf32> to vector<32x256xf32>
    %128 = arith.mulf %125, %127 : vector<32x256xf32>
    %129 = vector.broadcast %124 : vector<32x1xf32> to vector<32x256xf32>
    %130 = arith.mulf %128, %129 : vector<32x256xf32>
    %131 = arith.addf %123, %130 : vector<32x256xf32>
    %c0_69 = arith.constant 0 : index
    %c7_70 = arith.constant 7 : index
    %132 = vector.load %arg5[%c0_69, %c7_70] : memref<64x9xf32, #tpu.memory_space<vmem>>, vector<32x1xf32>
    %c240_i32_71 = arith.constant 240 : i32
    %133 = tpu.dynamic_rotate %6 by %c240_i32_71 dim 1 : vector<32x256xf32>, i32 -> vector<32x256xf32>
    %c7_72 = arith.constant 7 : index
    %c0_73 = arith.constant 0 : index
    %134 = vector.load %arg10[%c7_72, %c0_73] : memref<9x256xf32, #tpu.memory_space<vmem>>, vector<1x256xf32>
    %135 = vector.broadcast %134 : vector<1x256xf32> to vector<32x256xf32>
    %136 = arith.mulf %133, %135 : vector<32x256xf32>
    %137 = vector.broadcast %132 : vector<32x1xf32> to vector<32x256xf32>
    %138 = arith.mulf %136, %137 : vector<32x256xf32>
    %139 = arith.addf %131, %138 : vector<32x256xf32>
    %c0_74 = arith.constant 0 : index
    %c8_75 = arith.constant 8 : index
    %140 = vector.load %arg5[%c0_74, %c8_75] : memref<64x9xf32, #tpu.memory_space<vmem>>, vector<32x1xf32>
    %c239_i32_76 = arith.constant 239 : i32
    %141 = tpu.dynamic_rotate %6 by %c239_i32_76 dim 1 : vector<32x256xf32>, i32 -> vector<32x256xf32>
    %c8_77 = arith.constant 8 : index
    %c0_78 = arith.constant 0 : index
    %142 = vector.load %arg10[%c8_77, %c0_78] : memref<9x256xf32, #tpu.memory_space<vmem>>, vector<1x256xf32>
    %143 = vector.broadcast %142 : vector<1x256xf32> to vector<32x256xf32>
    %144 = arith.mulf %141, %143 : vector<32x256xf32>
    %145 = vector.broadcast %140 : vector<32x1xf32> to vector<32x256xf32>
    %146 = arith.mulf %144, %145 : vector<32x256xf32>
    %147 = arith.addf %139, %146 : vector<32x256xf32>
    %c0_79 = arith.constant 0 : index
    %c0_80 = arith.constant 0 : index
    %148 = vector.load %arg7[%c0_79, %c0_80] : memref<64x1xf32, #tpu.memory_space<vmem>>, vector<32x1xf32>
    %149 = vector.broadcast %148 : vector<32x1xf32> to vector<32x256xf32>
    %150 = arith.addf %147, %149 : vector<32x256xf32>
    %cst_81 = arith.constant 5.000000e-01 : f32
    %151 = vector.broadcast %cst_81 : f32 to vector<32x256xf32>
    %152 = arith.mulf %151, %78 : vector<32x256xf32>
    %cst_82 = arith.constant 0.707106769 : f32
    %153 = vector.broadcast %cst_82 : f32 to vector<32x256xf32>
    %154 = arith.mulf %78, %153 : vector<32x256xf32>
    %155 = math.erf %154 : vector<32x256xf32>
    %cst_83 = arith.constant 1.000000e+00 : f32
    %156 = vector.broadcast %cst_83 : f32 to vector<32x256xf32>
    %157 = arith.addf %156, %155 : vector<32x256xf32>
    %158 = arith.mulf %152, %157 : vector<32x256xf32>
    %159 = arith.mulf %158, %150 : vector<32x256xf32>
    %160 = arith.truncf %159 : vector<32x256xf32> to vector<32x256xbf16>
    %c0_84 = arith.constant 0 : index
    %c0_85 = arith.constant 0 : index
    %161 = vector.load %arg12[%c0_84, %c0_85] : memref<64x256xbf16, #tpu.memory_space<vmem>>, vector<32x256xbf16>
    tpu.vector_store %arg12[%c0_84, %c0_85], %160 {strides = array<i32>} : memref<64x256xbf16, #tpu.memory_space<vmem>>, vector<32x256xbf16>,
    %c32 = arith.constant 32 : index
    %c0_86 = arith.constant 0 : index
    %162 = vector.load %arg2[%c32, %c0_86] : memref<64x16xbf16, #tpu.memory_space<vmem>>, vector<32x16xbf16>
    %cst_87 = arith.constant dense<0.000000e+00> : vector<32x256xf32>
    %163 = tpu.matmul %162, %2, %cst_87 {dimension_numbers = #tpu.dot_dimension_numbers<[1], [0], [0], [1], [0, 0, 1, 1], [], []>} : vector<32x16xbf16>, vector<16x256xbf16>, vector<32x256xf32> -> vector<32x256xf32>
    %c32_88 = arith.constant 32 : index
    %c0_89 = arith.constant 0 : index
    %164 = vector.load %arg3[%c32_88, %c0_89] : memref<64x16xbf16, #tpu.memory_space<vmem>>, vector<32x16xbf16>
    %cst_90 = arith.constant dense<0.000000e+00> : vector<32x256xf32>
    %165 = tpu.matmul %164, %2, %cst_90 {dimension_numbers = #tpu.dot_dimension_numbers<[1], [0], [0], [1], [0, 0, 1, 1], [], []>} : vector<32x16xbf16>, vector<16x256xbf16>, vector<32x256xf32> -> vector<32x256xf32>
    %cst_91 = arith.constant 0.000000e+00 : f32
    %166 = vector.broadcast %cst_91 : f32 to vector<32x256xf32>
    %c32_92 = arith.constant 32 : index
    %c0_93 = arith.constant 0 : index
    %167 = vector.load %arg4[%c32_92, %c0_93] : memref<64x9xf32, #tpu.memory_space<vmem>>, vector<32x1xf32>
    %c17_i32_94 = arith.constant 17 : i32
    %168 = tpu.dynamic_rotate %163 by %c17_i32_94 dim 1 : vector<32x256xf32>, i32 -> vector<32x256xf32>
    %c0_95 = arith.constant 0 : index
    %c0_96 = arith.constant 0 : index
    %169 = vector.load %arg10[%c0_95, %c0_96] : memref<9x256xf32, #tpu.memory_space<vmem>>, vector<1x256xf32>
    %170 = vector.broadcast %169 : vector<1x256xf32> to vector<32x256xf32>
    %171 = arith.mulf %168, %170 : vector<32x256xf32>
    %172 = vector.broadcast %167 : vector<32x1xf32> to vector<32x256xf32>
    %173 = arith.mulf %171, %172 : vector<32x256xf32>
    %174 = arith.addf %166, %173 : vector<32x256xf32>
    %c32_97 = arith.constant 32 : index
    %c1_98 = arith.constant 1 : index
    %175 = vector.load %arg4[%c32_97, %c1_98] : memref<64x9xf32, #tpu.memory_space<vmem>>, vector<32x1xf32>
    %c16_i32_99 = arith.constant 16 : i32
    %176 = tpu.dynamic_rotate %163 by %c16_i32_99 dim 1 : vector<32x256xf32>, i32 -> vector<32x256xf32>
    %c1_100 = arith.constant 1 : index
    %c0_101 = arith.constant 0 : index
    %177 = vector.load %arg10[%c1_100, %c0_101] : memref<9x256xf32, #tpu.memory_space<vmem>>, vector<1x256xf32>
    %178 = vector.broadcast %177 : vector<1x256xf32> to vector<32x256xf32>
    %179 = arith.mulf %176, %178 : vector<32x256xf32>
    %180 = vector.broadcast %175 : vector<32x1xf32> to vector<32x256xf32>
    %181 = arith.mulf %179, %180 : vector<32x256xf32>
    %182 = arith.addf %174, %181 : vector<32x256xf32>
    %c32_102 = arith.constant 32 : index
    %c2_103 = arith.constant 2 : index
    %183 = vector.load %arg4[%c32_102, %c2_103] : memref<64x9xf32, #tpu.memory_space<vmem>>, vector<32x1xf32>
    %c15_i32_104 = arith.constant 15 : i32
    %184 = tpu.dynamic_rotate %163 by %c15_i32_104 dim 1 : vector<32x256xf32>, i32 -> vector<32x256xf32>
    %c2_105 = arith.constant 2 : index
    %c0_106 = arith.constant 0 : index
    %185 = vector.load %arg10[%c2_105, %c0_106] : memref<9x256xf32, #tpu.memory_space<vmem>>, vector<1x256xf32>
    %186 = vector.broadcast %185 : vector<1x256xf32> to vector<32x256xf32>
    %187 = arith.mulf %184, %186 : vector<32x256xf32>
    %188 = vector.broadcast %183 : vector<32x1xf32> to vector<32x256xf32>
    %189 = arith.mulf %187, %188 : vector<32x256xf32>
    %190 = arith.addf %182, %189 : vector<32x256xf32>
    %c32_107 = arith.constant 32 : index
    %c3_108 = arith.constant 3 : index
    %191 = vector.load %arg4[%c32_107, %c3_108] : memref<64x9xf32, #tpu.memory_space<vmem>>, vector<32x1xf32>
    %c1_i32_109 = arith.constant 1 : i32
    %192 = tpu.dynamic_rotate %163 by %c1_i32_109 dim 1 : vector<32x256xf32>, i32 -> vector<32x256xf32>
    %c3_110 = arith.constant 3 : index
    %c0_111 = arith.constant 0 : index
    %193 = vector.load %arg10[%c3_110, %c0_111] : memref<9x256xf32, #tpu.memory_space<vmem>>, vector<1x256xf32>
    %194 = vector.broadcast %193 : vector<1x256xf32> to vector<32x256xf32>
    %195 = arith.mulf %192, %194 : vector<32x256xf32>
    %196 = vector.broadcast %191 : vector<32x1xf32> to vector<32x256xf32>
    %197 = arith.mulf %195, %196 : vector<32x256xf32>
    %198 = arith.addf %190, %197 : vector<32x256xf32>
    %c32_112 = arith.constant 32 : index
    %c4_113 = arith.constant 4 : index
    %199 = vector.load %arg4[%c32_112, %c4_113] : memref<64x9xf32, #tpu.memory_space<vmem>>, vector<32x1xf32>
    %200 = vector.broadcast %199 : vector<32x1xf32> to vector<32x256xf32>
    %201 = arith.mulf %163, %200 : vector<32x256xf32>
    %202 = arith.addf %198, %201 : vector<32x256xf32>
    %c32_114 = arith.constant 32 : index
    %c5_115 = arith.constant 5 : index
    %203 = vector.load %arg4[%c32_114, %c5_115] : memref<64x9xf32, #tpu.memory_space<vmem>>, vector<32x1xf32>
    %c255_i32_116 = arith.constant 255 : i32
    %204 = tpu.dynamic_rotate %163 by %c255_i32_116 dim 1 : vector<32x256xf32>, i32 -> vector<32x256xf32>
    %c5_117 = arith.constant 5 : index
    %c0_118 = arith.constant 0 : index
    %205 = vector.load %arg10[%c5_117, %c0_118] : memref<9x256xf32, #tpu.memory_space<vmem>>, vector<1x256xf32>
    %206 = vector.broadcast %205 : vector<1x256xf32> to vector<32x256xf32>
    %207 = arith.mulf %204, %206 : vector<32x256xf32>
    %208 = vector.broadcast %203 : vector<32x1xf32> to vector<32x256xf32>
    %209 = arith.mulf %207, %208 : vector<32x256xf32>
    %210 = arith.addf %202, %209 : vector<32x256xf32>
    %c32_119 = arith.constant 32 : index
    %c6_120 = arith.constant 6 : index
    %211 = vector.load %arg4[%c32_119, %c6_120] : memref<64x9xf32, #tpu.memory_space<vmem>>, vector<32x1xf32>
    %c241_i32_121 = arith.constant 241 : i32
    %212 = tpu.dynamic_rotate %163 by %c241_i32_121 dim 1 : vector<32x256xf32>, i32 -> vector<32x256xf32>
    %c6_122 = arith.constant 6 : index
    %c0_123 = arith.constant 0 : index
    %213 = vector.load %arg10[%c6_122, %c0_123] : memref<9x256xf32, #tpu.memory_space<vmem>>, vector<1x256xf32>
    %214 = vector.broadcast %213 : vector<1x256xf32> to vector<32x256xf32>
    %215 = arith.mulf %212, %214 : vector<32x256xf32>
    %216 = vector.broadcast %211 : vector<32x1xf32> to vector<32x256xf32>
    %217 = arith.mulf %215, %216 : vector<32x256xf32>
    %218 = arith.addf %210, %217 : vector<32x256xf32>
    %c32_124 = arith.constant 32 : index
    %c7_125 = arith.constant 7 : index
    %219 = vector.load %arg4[%c32_124, %c7_125] : memref<64x9xf32, #tpu.memory_space<vmem>>, vector<32x1xf32>
    %c240_i32_126 = arith.constant 240 : i32
    %220 = tpu.dynamic_rotate %163 by %c240_i32_126 dim 1 : vector<32x256xf32>, i32 -> vector<32x256xf32>
    %c7_127 = arith.constant 7 : index
    %c0_128 = arith.constant 0 : index
    %221 = vector.load %arg10[%c7_127, %c0_128] : memref<9x256xf32, #tpu.memory_space<vmem>>, vector<1x256xf32>
    %222 = vector.broadcast %221 : vector<1x256xf32> to vector<32x256xf32>
    %223 = arith.mulf %220, %222 : vector<32x256xf32>
    %224 = vector.broadcast %219 : vector<32x1xf32> to vector<32x256xf32>
    %225 = arith.mulf %223, %224 : vector<32x256xf32>
    %226 = arith.addf %218, %225 : vector<32x256xf32>
    %c32_129 = arith.constant 32 : index
    %c8_130 = arith.constant 8 : index
    %227 = vector.load %arg4[%c32_129, %c8_130] : memref<64x9xf32, #tpu.memory_space<vmem>>, vector<32x1xf32>
    %c239_i32_131 = arith.constant 239 : i32
    %228 = tpu.dynamic_rotate %163 by %c239_i32_131 dim 1 : vector<32x256xf32>, i32 -> vector<32x256xf32>
    %c8_132 = arith.constant 8 : index
    %c0_133 = arith.constant 0 : index
    %229 = vector.load %arg10[%c8_132, %c0_133] : memref<9x256xf32, #tpu.memory_space<vmem>>, vector<1x256xf32>
    %230 = vector.broadcast %229 : vector<1x256xf32> to vector<32x256xf32>
    %231 = arith.mulf %228, %230 : vector<32x256xf32>
    %232 = vector.broadcast %227 : vector<32x1xf32> to vector<32x256xf32>
    %233 = arith.mulf %231, %232 : vector<32x256xf32>
    %234 = arith.addf %226, %233 : vector<32x256xf32>
    %c32_134 = arith.constant 32 : index
    %c0_135 = arith.constant 0 : index
    %235 = vector.load %arg6[%c32_134, %c0_135] : memref<64x1xf32, #tpu.memory_space<vmem>>, vector<32x1xf32>
    %236 = vector.broadcast %235 : vector<32x1xf32> to vector<32x256xf32>
    %237 = arith.addf %234, %236 : vector<32x256xf32>
    %cst_136 = arith.constant 0.000000e+00 : f32
    %238 = vector.broadcast %cst_136 : f32 to vector<32x256xf32>
    %c32_137 = arith.constant 32 : index
    %c0_138 = arith.constant 0 : index
    %239 = vector.load %arg5[%c32_137, %c0_138] : memref<64x9xf32, #tpu.memory_space<vmem>>, vector<32x1xf32>
    %c17_i32_139 = arith.constant 17 : i32
    %240 = tpu.dynamic_rotate %165 by %c17_i32_139 dim 1 : vector<32x256xf32>, i32 -> vector<32x256xf32>
    %c0_140 = arith.constant 0 : index
    %c0_141 = arith.constant 0 : index
    %241 = vector.load %arg10[%c0_140, %c0_141] : memref<9x256xf32, #tpu.memory_space<vmem>>, vector<1x256xf32>
    %242 = vector.broadcast %241 : vector<1x256xf32> to vector<32x256xf32>
    %243 = arith.mulf %240, %242 : vector<32x256xf32>
    %244 = vector.broadcast %239 : vector<32x1xf32> to vector<32x256xf32>
    %245 = arith.mulf %243, %244 : vector<32x256xf32>
    %246 = arith.addf %238, %245 : vector<32x256xf32>
    %c32_142 = arith.constant 32 : index
    %c1_143 = arith.constant 1 : index
    %247 = vector.load %arg5[%c32_142, %c1_143] : memref<64x9xf32, #tpu.memory_space<vmem>>, vector<32x1xf32>
    %c16_i32_144 = arith.constant 16 : i32
    %248 = tpu.dynamic_rotate %165 by %c16_i32_144 dim 1 : vector<32x256xf32>, i32 -> vector<32x256xf32>
    %c1_145 = arith.constant 1 : index
    %c0_146 = arith.constant 0 : index
    %249 = vector.load %arg10[%c1_145, %c0_146] : memref<9x256xf32, #tpu.memory_space<vmem>>, vector<1x256xf32>
    %250 = vector.broadcast %249 : vector<1x256xf32> to vector<32x256xf32>
    %251 = arith.mulf %248, %250 : vector<32x256xf32>
    %252 = vector.broadcast %247 : vector<32x1xf32> to vector<32x256xf32>
    %253 = arith.mulf %251, %252 : vector<32x256xf32>
    %254 = arith.addf %246, %253 : vector<32x256xf32>
    %c32_147 = arith.constant 32 : index
    %c2_148 = arith.constant 2 : index
    %255 = vector.load %arg5[%c32_147, %c2_148] : memref<64x9xf32, #tpu.memory_space<vmem>>, vector<32x1xf32>
    %c15_i32_149 = arith.constant 15 : i32
    %256 = tpu.dynamic_rotate %165 by %c15_i32_149 dim 1 : vector<32x256xf32>, i32 -> vector<32x256xf32>
    %c2_150 = arith.constant 2 : index
    %c0_151 = arith.constant 0 : index
    %257 = vector.load %arg10[%c2_150, %c0_151] : memref<9x256xf32, #tpu.memory_space<vmem>>, vector<1x256xf32>
    %258 = vector.broadcast %257 : vector<1x256xf32> to vector<32x256xf32>
    %259 = arith.mulf %256, %258 : vector<32x256xf32>
    %260 = vector.broadcast %255 : vector<32x1xf32> to vector<32x256xf32>
    %261 = arith.mulf %259, %260 : vector<32x256xf32>
    %262 = arith.addf %254, %261 : vector<32x256xf32>
    %c32_152 = arith.constant 32 : index
    %c3_153 = arith.constant 3 : index
    %263 = vector.load %arg5[%c32_152, %c3_153] : memref<64x9xf32, #tpu.memory_space<vmem>>, vector<32x1xf32>
    %c1_i32_154 = arith.constant 1 : i32
    %264 = tpu.dynamic_rotate %165 by %c1_i32_154 dim 1 : vector<32x256xf32>, i32 -> vector<32x256xf32>
    %c3_155 = arith.constant 3 : index
    %c0_156 = arith.constant 0 : index
    %265 = vector.load %arg10[%c3_155, %c0_156] : memref<9x256xf32, #tpu.memory_space<vmem>>, vector<1x256xf32>
    %266 = vector.broadcast %265 : vector<1x256xf32> to vector<32x256xf32>
    %267 = arith.mulf %264, %266 : vector<32x256xf32>
    %268 = vector.broadcast %263 : vector<32x1xf32> to vector<32x256xf32>
    %269 = arith.mulf %267, %268 : vector<32x256xf32>
    %270 = arith.addf %262, %269 : vector<32x256xf32>
    %c32_157 = arith.constant 32 : index
    %c4_158 = arith.constant 4 : index
    %271 = vector.load %arg5[%c32_157, %c4_158] : memref<64x9xf32, #tpu.memory_space<vmem>>, vector<32x1xf32>
    %272 = vector.broadcast %271 : vector<32x1xf32> to vector<32x256xf32>
    %273 = arith.mulf %165, %272 : vector<32x256xf32>
    %274 = arith.addf %270, %273 : vector<32x256xf32>
    %c32_159 = arith.constant 32 : index
    %c5_160 = arith.constant 5 : index
    %275 = vector.load %arg5[%c32_159, %c5_160] : memref<64x9xf32, #tpu.memory_space<vmem>>, vector<32x1xf32>
    %c255_i32_161 = arith.constant 255 : i32
    %276 = tpu.dynamic_rotate %165 by %c255_i32_161 dim 1 : vector<32x256xf32>, i32 -> vector<32x256xf32>
    %c5_162 = arith.constant 5 : index
    %c0_163 = arith.constant 0 : index
    %277 = vector.load %arg10[%c5_162, %c0_163] : memref<9x256xf32, #tpu.memory_space<vmem>>, vector<1x256xf32>
    %278 = vector.broadcast %277 : vector<1x256xf32> to vector<32x256xf32>
    %279 = arith.mulf %276, %278 : vector<32x256xf32>
    %280 = vector.broadcast %275 : vector<32x1xf32> to vector<32x256xf32>
    %281 = arith.mulf %279, %280 : vector<32x256xf32>
    %282 = arith.addf %274, %281 : vector<32x256xf32>
    %c32_164 = arith.constant 32 : index
    %c6_165 = arith.constant 6 : index
    %283 = vector.load %arg5[%c32_164, %c6_165] : memref<64x9xf32, #tpu.memory_space<vmem>>, vector<32x1xf32>
    %c241_i32_166 = arith.constant 241 : i32
    %284 = tpu.dynamic_rotate %165 by %c241_i32_166 dim 1 : vector<32x256xf32>, i32 -> vector<32x256xf32>
    %c6_167 = arith.constant 6 : index
    %c0_168 = arith.constant 0 : index
    %285 = vector.load %arg10[%c6_167, %c0_168] : memref<9x256xf32, #tpu.memory_space<vmem>>, vector<1x256xf32>
    %286 = vector.broadcast %285 : vector<1x256xf32> to vector<32x256xf32>
    %287 = arith.mulf %284, %286 : vector<32x256xf32>
    %288 = vector.broadcast %283 : vector<32x1xf32> to vector<32x256xf32>
    %289 = arith.mulf %287, %288 : vector<32x256xf32>
    %290 = arith.addf %282, %289 : vector<32x256xf32>
    %c32_169 = arith.constant 32 : index
    %c7_170 = arith.constant 7 : index
    %291 = vector.load %arg5[%c32_169, %c7_170] : memref<64x9xf32, #tpu.memory_space<vmem>>, vector<32x1xf32>
    %c240_i32_171 = arith.constant 240 : i32
    %292 = tpu.dynamic_rotate %165 by %c240_i32_171 dim 1 : vector<32x256xf32>, i32 -> vector<32x256xf32>
    %c7_172 = arith.constant 7 : index
    %c0_173 = arith.constant 0 : index
    %293 = vector.load %arg10[%c7_172, %c0_173] : memref<9x256xf32, #tpu.memory_space<vmem>>, vector<1x256xf32>
    %294 = vector.broadcast %293 : vector<1x256xf32> to vector<32x256xf32>
    %295 = arith.mulf %292, %294 : vector<32x256xf32>
    %296 = vector.broadcast %291 : vector<32x1xf32> to vector<32x256xf32>
    %297 = arith.mulf %295, %296 : vector<32x256xf32>
    %298 = arith.addf %290, %297 : vector<32x256xf32>
    %c32_174 = arith.constant 32 : index
    %c8_175 = arith.constant 8 : index
    %299 = vector.load %arg5[%c32_174, %c8_175] : memref<64x9xf32, #tpu.memory_space<vmem>>, vector<32x1xf32>
    %c239_i32_176 = arith.constant 239 : i32
    %300 = tpu.dynamic_rotate %165 by %c239_i32_176 dim 1 : vector<32x256xf32>, i32 -> vector<32x256xf32>
    %c8_177 = arith.constant 8 : index
    %c0_178 = arith.constant 0 : index
    %301 = vector.load %arg10[%c8_177, %c0_178] : memref<9x256xf32, #tpu.memory_space<vmem>>, vector<1x256xf32>
    %302 = vector.broadcast %301 : vector<1x256xf32> to vector<32x256xf32>
    %303 = arith.mulf %300, %302 : vector<32x256xf32>
    %304 = vector.broadcast %299 : vector<32x1xf32> to vector<32x256xf32>
    %305 = arith.mulf %303, %304 : vector<32x256xf32>
    %306 = arith.addf %298, %305 : vector<32x256xf32>
    %c32_179 = arith.constant 32 : index
    %c0_180 = arith.constant 0 : index
    %307 = vector.load %arg7[%c32_179, %c0_180] : memref<64x1xf32, #tpu.memory_space<vmem>>, vector<32x1xf32>
    %308 = vector.broadcast %307 : vector<32x1xf32> to vector<32x256xf32>
    %309 = arith.addf %306, %308 : vector<32x256xf32>
    %cst_181 = arith.constant 5.000000e-01 : f32
    %310 = vector.broadcast %cst_181 : f32 to vector<32x256xf32>
    %311 = arith.mulf %310, %237 : vector<32x256xf32>
    %cst_182 = arith.constant 0.707106769 : f32
    %312 = vector.broadcast %cst_182 : f32 to vector<32x256xf32>
    %313 = arith.mulf %237, %312 : vector<32x256xf32>
    %314 = math.erf %313 : vector<32x256xf32>
    %cst_183 = arith.constant 1.000000e+00 : f32
    %315 = vector.broadcast %cst_183 : f32 to vector<32x256xf32>
    %316 = arith.addf %315, %314 : vector<32x256xf32>
    %317 = arith.mulf %311, %316 : vector<32x256xf32>
    %318 = arith.mulf %317, %309 : vector<32x256xf32>
    %319 = arith.truncf %318 : vector<32x256xf32> to vector<32x256xbf16>
    %c32_184 = arith.constant 32 : index
    %c0_185 = arith.constant 0 : index
    %320 = vector.load %arg12[%c32_184, %c0_185] : memref<64x256xbf16, #tpu.memory_space<vmem>>, vector<32x256xbf16>
    tpu.vector_store %arg12[%c32_184, %c0_185], %319 {strides = array<i32>} : memref<64x256xbf16, #tpu.memory_space<vmem>>, vector<32x256xbf16>,
    %c0_186 = arith.constant 0 : index
    %c0_187 = arith.constant 0 : index
    %321 = vector.load %arg8[%c0_186, %c0_187] : memref<16x64xbf16, #tpu.memory_space<vmem>>, vector<16x64xbf16>
    %c0_188 = arith.constant 0 : index
    %c0_189 = arith.constant 0 : index
    %322 = vector.load %arg12[%c0_188, %c0_189] : memref<64x256xbf16, #tpu.memory_space<vmem>>, vector<64x256xbf16>
    %cst_190 = arith.constant dense<0.000000e+00> : vector<16x256xf32>
    %323 = tpu.matmul %321, %322, %cst_190 {dimension_numbers = #tpu.dot_dimension_numbers<[1], [0], [0], [1], [0, 0, 1, 1], [], []>} : vector<16x64xbf16>, vector<64x256xbf16>, vector<16x256xf32> -> vector<16x256xf32>
    %c0_191 = arith.constant 0 : index
    %c0_192 = arith.constant 0 : index
    %324 = vector.load %arg9[%c0_191, %c0_192] : memref<16x1xf32, #tpu.memory_space<vmem>>, vector<16x1xf32>
    %325 = vector.broadcast %324 : vector<16x1xf32> to vector<16x256xf32>
    %326 = arith.addf %323, %325 : vector<16x256xf32>
    %c0_193 = arith.constant 0 : index
    %c0_194 = arith.constant 0 : index
    %c0_195 = arith.constant 0 : index
    %327 = vector.load %arg11[%c0_193, %c0_194, %c0_195] : memref<1x16x256xf32, #tpu.memory_space<vmem>>, vector<1x16x256xf32>
    %328 = vector.shape_cast %327 : vector<1x16x256xf32> to vector<16x256xf32>
    %329 = vector.shape_cast %326 : vector<16x256xf32> to vector<1x16x256xf32>
    tpu.vector_store %arg11[%c0_193, %c0_194, %c0_195], %329 {strides = array<i32>} : memref<1x16x256xf32, #tpu.memory_space<vmem>>, vector<1x16x256xf32>,
    return
  }
  func.func @transform_0(%arg0: i32) -> (i32, i32, i32) {
    %c0_i32 = arith.constant 0 : i32
    %c0_i32_0 = arith.constant 0 : i32
    %c0_i32_1 = arith.constant 0 : i32
    return %arg0, %c0_i32, %c0_i32_0 : i32, i32, i32
  }
  func.func @transform_1(%arg0: i32) -> (i32, i32) {
    %c0_i32 = arith.constant 0 : i32
    %c0_i32_0 = arith.constant 0 : i32
    %c0_i32_1 = arith.constant 0 : i32
    return %c0_i32, %c0_i32_0 : i32, i32
  }
  func.func @transform_2(%arg0: i32) -> (i32, i32) {
    %c0_i32 = arith.constant 0 : i32
    %c0_i32_0 = arith.constant 0 : i32
    %c0_i32_1 = arith.constant 0 : i32
    return %c0_i32, %c0_i32_0 : i32, i32
  }
  func.func @transform_3(%arg0: i32) -> (i32, i32) {
    %c0_i32 = arith.constant 0 : i32
    %c0_i32_0 = arith.constant 0 : i32
    %c0_i32_1 = arith.constant 0 : i32
    return %c0_i32, %c0_i32_0 : i32, i32
  }
  func.func @transform_4(%arg0: i32) -> (i32, i32) {
    %c0_i32 = arith.constant 0 : i32
    %c0_i32_0 = arith.constant 0 : i32
    %c0_i32_1 = arith.constant 0 : i32
    return %c0_i32, %c0_i32_0 : i32, i32
  }
  func.func @transform_5(%arg0: i32) -> (i32, i32) {
    %c0_i32 = arith.constant 0 : i32
    %c0_i32_0 = arith.constant 0 : i32
    %c0_i32_1 = arith.constant 0 : i32
    return %c0_i32, %c0_i32_0 : i32, i32
  }
  func.func @transform_6(%arg0: i32) -> (i32, i32) {
    %c0_i32 = arith.constant 0 : i32
    %c0_i32_0 = arith.constant 0 : i32
    %c0_i32_1 = arith.constant 0 : i32
    return %c0_i32, %c0_i32_0 : i32, i32
  }
  func.func @transform_7(%arg0: i32) -> (i32, i32) {
    %c0_i32 = arith.constant 0 : i32
    %c0_i32_0 = arith.constant 0 : i32
    %c0_i32_1 = arith.constant 0 : i32
    return %c0_i32, %c0_i32_0 : i32, i32
  }
  func.func @transform_8(%arg0: i32) -> (i32, i32) {
    %c0_i32 = arith.constant 0 : i32
    %c0_i32_0 = arith.constant 0 : i32
    %c0_i32_1 = arith.constant 0 : i32
    return %c0_i32, %c0_i32_0 : i32, i32
  }
  func.func @transform_9(%arg0: i32) -> (i32, i32) {
    %c0_i32 = arith.constant 0 : i32
    %c0_i32_0 = arith.constant 0 : i32
    %c0_i32_1 = arith.constant 0 : i32
    return %c0_i32, %c0_i32_0 : i32, i32
  }
  func.func @transform_10(%arg0: i32) -> (i32, i32, i32) {
    %c0_i32 = arith.constant 0 : i32
    %c0_i32_0 = arith.constant 0 : i32
    %c0_i32_1 = arith.constant 0 : i32
    return %arg0, %c0_i32, %c0_i32_0 : i32, i32, i32
  }
}

</mosaic_0001>

<llo_original>
// kernel: tpu_custom_call.1
$region0: #{tpu_custom_call.1}
  #allocation0 [shape = 'u32[]', space=smem, size = 0x4, offset = 0x4, fixed_abs, tag = 'smem constant byte address 0x4 - core index']
  #allocation1 [shape = 'u32[144,128]{1,0:T(1,128)}', space=vmem, size = 0x12000, scoped, tag = 'internal scratch']
  #allocation2 [shape = 'bf16[64,256]{1,0:T(16,128)(2,1)}', space=vmem, size = 0x8000, scoped, tag = 'scratch operand']
  %s0 = inlined_call_operand.vmem [shape: f32[2,16,256], index: 0, kind: input, shape index: {}]
  %s1 = inlined_call_operand.vmem [shape: bf16[64,16], index: 1, kind: input, shape index: {}]
  %s2 = inlined_call_operand.vmem [shape: bf16[64,16], index: 2, kind: input, shape index: {}]
  %s3 = inlined_call_operand.vmem [shape: f32[64,9], index: 3, kind: input, shape index: {}]
  %s4 = inlined_call_operand.vmem [shape: f32[64,9], index: 4, kind: input, shape index: {}]
  %s5 = inlined_call_operand.vmem [shape: f32[64,1], index: 5, kind: input, shape index: {}]
  %s6 = inlined_call_operand.vmem [shape: f32[64,1], index: 6, kind: input, shape index: {}]
  %s7 = inlined_call_operand.vmem [shape: bf16[16,64], index: 7, kind: input, shape index: {}]
  %s8 = inlined_call_operand.vmem [shape: f32[16,1], index: 8, kind: input, shape index: {}]
  %s9 = inlined_call_operand.vmem [shape: f32[9,256], index: 9, kind: input, shape index: {}]
  %s10 = inlined_call_operand.hbm [shape: f32[2,16,256], index: 10, kind: output, shape index: {}]
  %s11 = sld [smem:[#allocation0]]
  $region73: #{tpu_custom_call.1} parent=0
    _
  %s13 = ssub.s32 1, %s11
  %s14 = scalar_select 0, %s13, %s11
  $region1: #{tpu_custom_call.1} parent=0
    #allocation3 [shape = 'u8[32768]{0}', space=vmem, size = 0x8000, scoped, tag = 'output window, operand 0']
    #allocation4 [shape = 's32[2]{0}', space=sflag, size = 0x8, scoped, tag = 'scoped memory for tpu_custom_call.1']
    %15 = vsyncpa [#allocation4], 0
    %s16 = scalar_lea.sflag [#allocation4], 1
    %17 = vsyncpa %s16, 0
    loop: start=0, step=1, limit=4
    $region2: #{tpu_custom_call.1} parent=1 // loop_pre_header
      _
    $region3: #{tpu_custom_call.1} parent=1 // loop_header
      %s19 = sphi 0, %s23
      %p20 = scmp.ge.s32.totalorder %s19, 4
      %s29 = sphi 0, %s31
      %s32 = sphi 0, %s29
      %s33 = sphi 0, %s32
      %s49 = sphi 0, %s33
      %s53 = sphi 0, %s53
      %s55 = sphi 0, %s53
      %s56 = sphi 0, %s55
      %s70 = sphi 0, %s56
      %s74 = sphi 0, %s74
      %s76 = sphi 0, %s74
      %s77 = sphi 0, %s76
      %s91 = sphi 0, %s77
      %s95 = sphi 0, %s95
      %s97 = sphi 0, %s95
      %s98 = sphi 0, %s97
      %s112 = sphi 0, %s98
      %s116 = sphi 0, %s116
      %s118 = sphi 0, %s116
      %s119 = sphi 0, %s118
      %s133 = sphi 0, %s119
      %s137 = sphi 0, %s137
      %s139 = sphi 0, %s137
      %s140 = sphi 0, %s139
      %s154 = sphi 0, %s140
      %s158 = sphi 0, %s158
      %s160 = sphi 0, %s158
      %s161 = sphi 0, %s160
      %s175 = sphi 0, %s161
      %s179 = sphi 0, %s179
      %s181 = sphi 0, %s179
      %s182 = sphi 0, %s181
      %s196 = sphi 0, %s182
      %s200 = sphi 0, %s200
      %s202 = sphi 0, %s200
      %s203 = sphi 0, %s202
      %s217 = sphi 0, %s203
      %s221 = sphi 0, %s221
      %s223 = sphi 0, %s221
      %s224 = sphi 0, %s223
      %s238 = sphi 0, %s224
      %s244 = sphi 0, %s246
      %s247 = sphi 0, %s244
      %s248 = sphi 0, %s247
      %s264 = sphi 0, %s248
    $region4: #{tpu_custom_call.1} parent=1 // loop_header_branch
      %22 = sbr.rel (%p20) target = $region8
    $region5: #{tpu_custom_call.1} parent=1 // loop_body
      %s24 = ssub.s32 %s19, 1
      %s25 = ssub.s32 %s19, 2
      %s26 = sadd.s32 %s19, 1
      %s27 = ssub.s32 %s19, %s26
      %p28 = scmp.eq.s32.totalorder %s27, 0
      %s30 = sadd.s32 %s29, 1
      %s31 = scalar_select %p28, %s29, %s30
      %p34 = pneg %p28
      %p35 = scmp.eq.s32.totalorder %s19, 1
      %p36 = por %p34, %p35
      %p37 = scmp.ne.s32.totalorder %s29, %s32
      %p38 = scmp.eq.s32.totalorder %s19, 0
      %p39 = por %p37, %p38
      %p40 = scmp.ne.s32.totalorder %s29, %s32
      %p41 = scmp.eq.s32.totalorder %s24, 1
      %p42 = por %p40, %p41
      %p43 = scmp.ne.s32.totalorder %s32, %s33
      %p44 = scmp.eq.s32.totalorder %s24, 0
      %p45 = por %p43, %p44
      %p46 = scmp.ne.s32.totalorder %s32, %s33
      %p47 = scmp.eq.s32.totalorder %s25, 1
      %p48 = por %p46, %p47
      %p50 = scmp.ne.s32.totalorder %s33, %s49
      %p51 = scmp.eq.s32.totalorder %s25, 0
      %p52 = por %p50, %p51
      %s54 = sadd.s32 %s53, 1
      %p57 = scmp.eq.s32.totalorder %s19, 1
      %p58 = scmp.ne.s32.totalorder %s53, %s55
      %p59 = scmp.eq.s32.totalorder %s19, 0
      %p60 = por %p58, %p59
      %p61 = scmp.ne.s32.totalorder %s53, %s55
      %p62 = scmp.eq.s32.totalorder %s24, 1
      %p63 = por %p61, %p62
      %p64 = scmp.ne.s32.totalorder %s55, %s56
      %p65 = scmp.eq.s32.totalorder %s24, 0
      %p66 = por %p64, %p65
      %p67 = scmp.ne.s32.totalorder %s55, %s56
      %p68 = scmp.eq.s32.totalorder %s25, 1
      %p69 = por %p67, %p68
      %p71 = scmp.ne.s32.totalorder %s56, %s70
      %p72 = scmp.eq.s32.totalorder %s25, 0
      %p73 = por %p71, %p72
      %s75 = sadd.s32 %s74, 1
      %p78 = scmp.eq.s32.totalorder %s19, 1
      %p79 = scmp.ne.s32.totalorder %s74, %s76
      %p80 = scmp.eq.s32.totalorder %s19, 0
      %p81 = por %p79, %p80
      %p82 = scmp.ne.s32.totalorder %s74, %s76
      %p83 = scmp.eq.s32.totalorder %s24, 1
      %p84 = por %p82, %p83
      %p85 = scmp.ne.s32.totalorder %s76, %s77
      %p86 = scmp.eq.s32.totalorder %s24, 0
      %p87 = por %p85, %p86
      %p88 = scmp.ne.s32.totalorder %s76, %s77
      %p89 = scmp.eq.s32.totalorder %s25, 1
      %p90 = por %p88, %p89
      %p92 = scmp.ne.s32.totalorder %s77, %s91
      %p93 = scmp.eq.s32.totalorder %s25, 0
      %p94 = por %p92, %p93
      %s96 = sadd.s32 %s95, 1
      %p99 = scmp.eq.s32.totalorder %s19, 1
      %p100 = scmp.ne.s32.totalorder %s95, %s97
      %p101 = scmp.eq.s32.totalorder %s19, 0
      %p102 = por %p100, %p101
      %p103 = scmp.ne.s32.totalorder %s95, %s97
      %p104 = scmp.eq.s32.totalorder %s24, 1
      %p105 = por %p103, %p104
      %p106 = scmp.ne.s32.totalorder %s97, %s98
      %p107 = scmp.eq.s32.totalorder %s24, 0
      %p108 = por %p106, %p107
      %p109 = scmp.ne.s32.totalorder %s97, %s98
      %p110 = scmp.eq.s32.totalorder %s25, 1
      %p111 = por %p109, %p110
      %p113 = scmp.ne.s32.totalorder %s98, %s112
      %p114 = scmp.eq.s32.totalorder %s25, 0
      %p115 = por %p113, %p114
      %s117 = sadd.s32 %s116, 1
      %p120 = scmp.eq.s32.totalorder %s19, 1
      %p121 = scmp.ne.s32.totalorder %s116, %s118
      %p122 = scmp.eq.s32.totalorder %s19, 0
      %p123 = por %p121, %p122
      %p124 = scmp.ne.s32.totalorder %s116, %s118
      %p125 = scmp.eq.s32.totalorder %s24, 1
      %p126 = por %p124, %p125
      %p127 = scmp.ne.s32.totalorder %s118, %s119
      %p128 = scmp.eq.s32.totalorder %s24, 0
      %p129 = por %p127, %p128
      %p130 = scmp.ne.s32.totalorder %s118, %s119
      %p131 = scmp.eq.s32.totalorder %s25, 1
      %p132 = por %p130, %p131
      %p134 = scmp.ne.s32.totalorder %s119, %s133
      %p135 = scmp.eq.s32.totalorder %s25, 0
      %p136 = por %p134, %p135
      %s138 = sadd.s32 %s137, 1
      %p141 = scmp.eq.s32.totalorder %s19, 1
      %p142 = scmp.ne.s32.totalorder %s137, %s139
      %p143 = scmp.eq.s32.totalorder %s19, 0
      %p144 = por %p142, %p143
      %p145 = scmp.ne.s32.totalorder %s137, %s139
      %p146 = scmp.eq.s32.totalorder %s24, 1
      %p147 = por %p145, %p146
      %p148 = scmp.ne.s32.totalorder %s139, %s140
      %p149 = scmp.eq.s32.totalorder %s24, 0
      %p150 = por %p148, %p149
      %p151 = scmp.ne.s32.totalorder %s139, %s140
      %p152 = scmp.eq.s32.totalorder %s25, 1
      %p153 = por %p151, %p152
      %p155 = scmp.ne.s32.totalorder %s140, %s154
      %p156 = scmp.eq.s32.totalorder %s25, 0
      %p157 = por %p155, %p156
      %s159 = sadd.s32 %s158, 1
      %p162 = scmp.eq.s32.totalorder %s19, 1
      %p163 = scmp.ne.s32.totalorder %s158, %s160
      %p164 = scmp.eq.s32.totalorder %s19, 0
      %p165 = por %p163, %p164
      %p166 = scmp.ne.s32.totalorder %s158, %s160
      %p167 = scmp.eq.s32.totalorder %s24, 1
      %p168 = por %p166, %p167
      %p169 = scmp.ne.s32.totalorder %s160, %s161
      %p170 = scmp.eq.s32.totalorder %s24, 0
      %p171 = por %p169, %p170
      %p172 = scmp.ne.s32.totalorder %s160, %s161
      %p173 = scmp.eq.s32.totalorder %s25, 1
      %p174 = por %p172, %p173
      %p176 = scmp.ne.s32.totalorder %s161, %s175
      %p177 = scmp.eq.s32.totalorder %s25, 0
      %p178 = por %p176, %p177
      %s180 = sadd.s32 %s179, 1
      %p183 = scmp.eq.s32.totalorder %s19, 1
      %p184 = scmp.ne.s32.totalorder %s179, %s181
      %p185 = scmp.eq.s32.totalorder %s19, 0
      %p186 = por %p184, %p185
      %p187 = scmp.ne.s32.totalorder %s179, %s181
      %p188 = scmp.eq.s32.totalorder %s24, 1
      %p189 = por %p187, %p188
      %p190 = scmp.ne.s32.totalorder %s181, %s182
      %p191 = scmp.eq.s32.totalorder %s24, 0
      %p192 = por %p190, %p191
      %p193 = scmp.ne.s32.totalorder %s181, %s182
      %p194 = scmp.eq.s32.totalorder %s25, 1
      %p195 = por %p193, %p194
      %p197 = scmp.ne.s32.totalorder %s182, %s196
      %p198 = scmp.eq.s32.totalorder %s25, 0
      %p199 = por %p197, %p198
      %s201 = sadd.s32 %s200, 1
      %p204 = scmp.eq.s32.totalorder %s19, 1
      %p205 = scmp.ne.s32.totalorder %s200, %s202
      %p206 = scmp.eq.s32.totalorder %s19, 0
      %p207 = por %p205, %p206
      %p208 = scmp.ne.s32.totalorder %s200, %s202
      %p209 = scmp.eq.s32.totalorder %s24, 1
      %p210 = por %p208, %p209
      %p211 = scmp.ne.s32.totalorder %s202, %s203
      %p212 = scmp.eq.s32.totalorder %s24, 0
      %p213 = por %p211, %p212
      %p214 = scmp.ne.s32.totalorder %s202, %s203
      %p215 = scmp.eq.s32.totalorder %s25, 1
      %p216 = por %p214, %p215
      %p218 = scmp.ne.s32.totalorder %s203, %s217
      %p219 = scmp.eq.s32.totalorder %s25, 0
      %p220 = por %p218, %p219
      %s222 = sadd.s32 %s221, 1
      %p225 = scmp.eq.s32.totalorder %s19, 1
      %p226 = scmp.ne.s32.totalorder %s221, %s223
      %p227 = scmp.eq.s32.totalorder %s19, 0
      %p228 = por %p226, %p227
      %p229 = scmp.ne.s32.totalorder %s221, %s223
      %p230 = scmp.eq.s32.totalorder %s24, 1
      %p231 = por %p229, %p230
      %p232 = scmp.ne.s32.totalorder %s223, %s224
      %p233 = scmp.eq.s32.totalorder %s24, 0
      %p234 = por %p232, %p233
      %p235 = scmp.ne.s32.totalorder %s223, %s224
      %p236 = scmp.eq.s32.totalorder %s25, 1
      %p237 = por %p235, %p236
      %p239 = scmp.ne.s32.totalorder %s224, %s238
      %p240 = scmp.eq.s32.totalorder %s25, 0
      %p241 = por %p239, %p240
      %s242 = ssub.s32 %s19, %s26
      %p243 = scmp.eq.s32.totalorder %s242, 0
      %s245 = sadd.s32 %s244, 1
      %s246 = scalar_select %p243, %s244, %s245
      %p249 = pneg %p243
      %p250 = scmp.eq.s32.totalorder %s19, 1
      %p251 = por %p249, %p250
      %p252 = scmp.ne.s32.totalorder %s244, %s247
      %p253 = scmp.eq.s32.totalorder %s19, 0
      %p254 = por %p252, %p253
      %p255 = scmp.ne.s32.totalorder %s244, %s247
      %p256 = scmp.eq.s32.totalorder %s24, 1
      %p257 = por %p255, %p256
      %p258 = scmp.ne.s32.totalorder %s247, %s248
      %p259 = scmp.eq.s32.totalorder %s24, 0
      %p260 = por %p258, %p259
      %p261 = scmp.ne.s32.totalorder %s247, %s248
      %p262 = scmp.eq.s32.totalorder %s25, 1
      %p263 = por %p261, %p262
      %p265 = scmp.ne.s32.totalorder %s248, %s264
      %p266 = scmp.eq.s32.totalorder %s25, 0
      %p267 = por %p265, %p266
      %p268 = scmp.le.s32.totalorder 1, %s19
      %p269 = scmp.lt.s32.totalorder %s19, 3
      %p270 = pnand %p268, %p269
      %p271 = pneg %p270
      // Predicated region
      $region9: #{tpu_custom_call.1} parent=5 // pred_check
        _
      $region10: #{tpu_custom_call.1} parent=5 // pred_check_branch
        %273 = sbr.rel (%p270) target = $region12
      $region11: #{tpu_custom_call.1} parent=5 // pred_region
        %s274 = ssub.s32 %s19, 1
        // Predicated region
        $region13: #{tpu_custom_call.1} parent=11 // pred_check
          %p275 = pneg %p66
        $region14: #{tpu_custom_call.1} parent=11 // pred_check_branch
          %277 = sbr.rel (%p275) target = $region16
        $region15: #{tpu_custom_call.1} parent=11 // pred_region
          _
        $region16: #{tpu_custom_call.1} parent=11 // pred_fallthru
          _
        // Predicated region
        $region17: #{tpu_custom_call.1} parent=11 // pred_check
          %p278 = pneg %p87
        $region18: #{tpu_custom_call.1} parent=11 // pred_check_branch
          %280 = sbr.rel (%p278) target = $region20
        $region19: #{tpu_custom_call.1} parent=11 // pred_region
          _
        $region20: #{tpu_custom_call.1} parent=11 // pred_fallthru
          _
        // Predicated region
        $region21: #{tpu_custom_call.1} parent=11 // pred_check
          %p281 = pneg %p108
        $region22: #{tpu_custom_call.1} parent=11 // pred_check_branch
          %283 = sbr.rel (%p281) target = $region24
        $region23: #{tpu_custom_call.1} parent=11 // pred_region
          _
        $region24: #{tpu_custom_call.1} parent=11 // pred_fallthru
          _
        // Predicated region
        $region25: #{tpu_custom_call.1} parent=11 // pred_check
          %p284 = pneg %p129
        $region26: #{tpu_custom_call.1} parent=11 // pred_check_branch
          %286 = sbr.rel (%p284) target = $region28
        $region27: #{tpu_custom_call.1} parent=11 // pred_region
          _
        $region28: #{tpu_custom_call.1} parent=11 // pred_fallthru
          _
        // Predicated region
        $region29: #{tpu_custom_call.1} parent=11 // pred_check
          %p287 = pneg %p150
        $region30: #{tpu_custom_call.1} parent=11 // pred_check_branch
          %289 = sbr.rel (%p287) target = $region32
        $region31: #{tpu_custom_call.1} parent=11 // pred_region
          _
        $region32: #{tpu_custom_call.1} parent=11 // pred_fallthru
          _
        // Predicated region
        $region33: #{tpu_custom_call.1} parent=11 // pred_check
          %p290 = pneg %p171
        $region34: #{tpu_custom_call.1} parent=11 // pred_check_branch
          %292 = sbr.rel (%p290) target = $region36
        $region35: #{tpu_custom_call.1} parent=11 // pred_region
          _
        $region36: #{tpu_custom_call.1} parent=11 // pred_fallthru
          _
        // Predicated region
        $region37: #{tpu_custom_call.1} parent=11 // pred_check
          %p293 = pneg %p192
        $region38: #{tpu_custom_call.1} parent=11 // pred_check_branch
          %295 = sbr.rel (%p293) target = $region40
        $region39: #{tpu_custom_call.1} parent=11 // pred_region
          _
        $region40: #{tpu_custom_call.1} parent=11 // pred_fallthru
          _
        // Predicated region
        $region41: #{tpu_custom_call.1} parent=11 // pred_check
          %p296 = pneg %p213
        $region42: #{tpu_custom_call.1} parent=11 // pred_check_branch
          %298 = sbr.rel (%p296) target = $region44
        $region43: #{tpu_custom_call.1} parent=11 // pred_region
          _
        $region44: #{tpu_custom_call.1} parent=11 // pred_fallthru
          _
        // Predicated region
        $region45: #{tpu_custom_call.1} parent=11 // pred_check
          %p299 = pneg %p234
        $region46: #{tpu_custom_call.1} parent=11 // pred_check_branch
          %301 = sbr.rel (%p299) target = $region48
        $region47: #{tpu_custom_call.1} parent=11 // pred_region
          _
        $region48: #{tpu_custom_call.1} parent=11 // pred_fallthru
          _
      $region12: #{tpu_custom_call.1} parent=5 // pred_fallthru
        _
      %p302 = scmp.lt.s32.totalorder %s19, 2
      // Predicated region
      $region49: #{tpu_custom_call.1} parent=5 // pred_check
        %p303 = pneg %p302
      $region50: #{tpu_custom_call.1} parent=5 // pred_check_branch
        %305 = sbr.rel (%p303) target = $region52
      $region51: #{tpu_custom_call.1} parent=5 // pred_region
        // Predicated region
        $region53: #{tpu_custom_call.1} parent=51 // pred_check
          %p306 = pneg %p39
        $region54: #{tpu_custom_call.1} parent=51 // pred_check_branch
          %308 = sbr.rel (%p306) target = $region56
        $region55: #{tpu_custom_call.1} parent=51 // pred_region
          %p309 = scmp.lt.s32.totalorder %s19, 1
          %s310 = scalar_select %p309, %s19, 1
          %s311 = smul.addr %s310, 4
          %s312 = smul.addr %s311, 8
          %s313 = scalar_lea.vmem %s0, %s312
        $region56: #{tpu_custom_call.1} parent=51 // pred_fallthru
          _
      $region52: #{tpu_custom_call.1} parent=5 // pred_fallthru
        _
      %p314 = scmp.le.s32.totalorder 1, %s19
      %p315 = scmp.lt.s32.totalorder %s19, 3
      %p316 = pnand %p314, %p315
      %p317 = pneg %p316
      // Predicated region
      $region57: #{tpu_custom_call.1} parent=5 // pred_check
        _
      $region58: #{tpu_custom_call.1} parent=5 // pred_check_branch
        %319 = sbr.rel (%p316) target = $region60
      $region59: #{tpu_custom_call.1} parent=5 // pred_region
        %s320 = ssub.s32 %s19, 1
        %p321 = scmp.lt.s32.totalorder %s24, 1
        %s322 = scalar_select %p321, %s24, 1
        %s323 = smul.addr %s322, 4
        %s324 = smul.addr %s323, 8
        %s325 = scalar_lea.vmem %s0, %s324
        %p326 = pneg %p45
        %p327 = pneg %p42
        %p328 = pneg %p66
        %p329 = pneg %p63
        %p330 = pneg %p87
        %p331 = pneg %p84
        %p332 = pneg %p108
        %p333 = pneg %p105
        %p334 = pneg %p129
        %p335 = pneg %p126
        %p336 = pneg %p150
        %p337 = pneg %p147
        %p338 = pneg %p171
        %p339 = pneg %p168
        %p340 = pneg %p192
        %p341 = pneg %p189
        %p342 = pneg %p213
        %p343 = pneg %p210
        %p344 = pneg %p234
        %p345 = pneg %p231
        %p346 = pneg %p260
        %p347 = pneg %p257
        %s348 = sand.u32 %s247, 1
        %s349 = scalar_lea.sflag [#allocation4], %s348
        %s350 = sand.u32 %s247, 1
        %s351 = smul.addr %s350, 32
        %s352 = scalar_lea.vmem [#allocation3], %s351
        %p353 = scmp.lt.s32.totalorder %s24, 1
        %s354 = scalar_select %p353, %s24, 1
        %s355 = smul.addr %s354, 4
        %s356 = smul.addr %s355, 8
        %s357 = scalar_lea.vmem %s0, %s356
        %v359 = vld [vmem:[%s357] sm:$0xff]
        %v360 = vld [vmem:[%s357 + $0x8] sm:$0xff]
        %v361 = vld [vmem:[%s357 + $0x10] sm:$0xff]
        %v362 = vld [vmem:[%s357 + $0x18] sm:$0xff]
        %v363 = vpack.c.bf16 %v361, %v359
        %v364 = vpack.c.bf16 %v362, %v360
        %v365 = vld [vmem:[%s1] sm:$0xf]
        %v366 = vld [vmem:[%s1 + $0x4] sm:$0xf]
        %v367 = vld [vmem:[%s1 + $0x8] sm:$0xf]
        %v368 = vld [vmem:[%s1 + $0xc] sm:$0xf]
        %v373 = vunpack.c.l.b16 %v365
        %v374 = vunpack.c.l.b16 %v366
        %v375 = vunpack.c.l.b16 %v367
        %v376 = vunpack.c.l.b16 %v368
        %v377 = vpack.c.b16 %v374, %v373
        %v378 = vpack.c.b16 %v376, %v375
        %vm379 = vcmask 130048
        %v381 = vsel %vm379, %v377, 0
        %v384 = vsel %vm379, %v378, 0
        %386 = vmatprep.subr.bf16.mxu0 %v364
        %387 = vmatpush1.bf16.msra.mxu0 %v363
        %388 = vmatprep.subr.bf16.mxu0 0
        %389 = vmatpush1.bf16.msra.mxu0 0
        %390 = vmatprep.subr.bf16.mxu0 0
        %391 = vmatpush1.bf16.msra.mxu0 0
        %392 = vmatprep.subr.bf16.mxu0 0
        %393 = vmatpush1.bf16.msra.mxu0 0
        %394 = vmatprep.subr.bf16.mxu0 0
        %395 = vmatpush1.bf16.msra.mxu0 0
        %396 = vmatprep.subr.bf16.mxu0 0
        %397 = vmatpush1.bf16.msra.mxu0 0
        %398 = vmatprep.subr.bf16.mxu0 0
        %399 = vmatpush1.bf16.msra.mxu0 0
        %400 = vmatprep.subr.bf16.mxu0 0
        %401 = vmatpush1.bf16.msra.mxu0 0
        %402 = vmatprep.subr.bf16.mxu0 0
        %403 = vmatpush1.bf16.msra.mxu0 0
        %404 = vmatprep.subr.bf16.mxu0 0
        %405 = vmatpush1.bf16.msra.mxu0 0
        %406 = vmatprep.subr.bf16.mxu0 0
        %407 = vmatpush1.bf16.msra.mxu0 0
        %408 = vmatprep.subr.bf16.mxu0 0
        %409 = vmatpush1.bf16.msra.mxu0 0
        %410 = vmatprep.subr.bf16.mxu0 0
        %411 = vmatpush1.bf16.msra.mxu0 0
        %412 = vmatprep.subr.bf16.mxu0 0
        %413 = vmatpush1.bf16.msra.mxu0 0
        %414 = vmatprep.subr.bf16.mxu0 0
        %415 = vmatpush1.bf16.msra.mxu0 0
        %416 = vmatprep.subr.bf16.mxu0 0
        %417 = vmatpush1.bf16.msra.mxu0 0
        %418 = vmatprep.mubr.bf16.mxu0 0
        %419 = vmatmul.mubr.bf16.gmra.mrb[0].mxu0 %v381
        %v420 = vpop.f32.mrb[0].mxu0
        %v421 = vadd.f32 0.0, %v420
        %v422 = vpop.f32.mrb[0].mxu0
        %v423 = vadd.f32 0.0, %v422
        %v424 = vpop.f32.mrb[0].mxu0
        %v425 = vadd.f32 0.0, %v424
        %v426 = vpop.f32.mrb[0].mxu0
        %v427 = vadd.f32 0.0, %v426
        %428 = vmatprep.mubr.bf16.mxu0 0
        %429 = vmatmul.mubr.bf16.gmra.mrb[0].mxu0 %v384
        %v430 = vpop.f32.mrb[0].mxu0
        %v431 = vadd.f32 0.0, %v430
        %v432 = vpop.f32.mrb[0].mxu0
        %v433 = vadd.f32 0.0, %v432
        %v434 = vpop.f32.mrb[0].mxu0
        %v435 = vadd.f32 0.0, %v434
        %v436 = vpop.f32.mrb[0].mxu0
        %v437 = vadd.f32 0.0, %v436
        %438 = vdwg.mxu0
        %v439 = vld [vmem:[%s2] sm:$0xf]
        %v440 = vld [vmem:[%s2 + $0x4] sm:$0xf]
        %v441 = vld [vmem:[%s2 + $0x8] sm:$0xf]
        %v442 = vld [vmem:[%s2 + $0xc] sm:$0xf]
        %v447 = vunpack.c.l.b16 %v439
        %v448 = vunpack.c.l.b16 %v440
        %v449 = vunpack.c.l.b16 %v441
        %v450 = vunpack.c.l.b16 %v442
        %v451 = vpack.c.b16 %v448, %v447
        %v452 = vpack.c.b16 %v450, %v449
        %v454 = vsel %vm379, %v451, 0
        %v457 = vsel %vm379, %v452, 0
        %459 = vmatprep.subr.bf16.mxu0 %v364
        %460 = vmatpush1.bf16.msra.mxu0 %v363
        %461 = vmatprep.subr.bf16.mxu0 0
        %462 = vmatpush1.bf16.msra.mxu0 0
        %463 = vmatprep.subr.bf16.mxu0 0
        %464 = vmatpush1.bf16.msra.mxu0 0
        %465 = vmatprep.subr.bf16.mxu0 0
        %466 = vmatpush1.bf16.msra.mxu0 0
        %467 = vmatprep.subr.bf16.mxu0 0
        %468 = vmatpush1.bf16.msra.mxu0 0
        %469 = vmatprep.subr.bf16.mxu0 0
        %470 = vmatpush1.bf16.msra.mxu0 0
        %471 = vmatprep.subr.bf16.mxu0 0
        %472 = vmatpush1.bf16.msra.mxu0 0
        %473 = vmatprep.subr.bf16.mxu0 0
        %474 = vmatpush1.bf16.msra.mxu0 0
        %475 = vmatprep.subr.bf16.mxu0 0
        %476 = vmatpush1.bf16.msra.mxu0 0
        %477 = vmatprep.subr.bf16.mxu0 0
        %478 = vmatpush1.bf16.msra.mxu0 0
        %479 = vmatprep.subr.bf16.mxu0 0
        %480 = vmatpush1.bf16.msra.mxu0 0
        %481 = vmatprep.subr.bf16.mxu0 0
        %482 = vmatpush1.bf16.msra.mxu0 0
        %483 = vmatprep.subr.bf16.mxu0 0
        %484 = vmatpush1.bf16.msra.mxu0 0
        %485 = vmatprep.subr.bf16.mxu0 0
        %486 = vmatpush1.bf16.msra.mxu0 0
        %487 = vmatprep.subr.bf16.mxu0 0
        %488 = vmatpush1.bf16.msra.mxu0 0
        %489 = vmatprep.subr.bf16.mxu0 0
        %490 = vmatpush1.bf16.msra.mxu0 0
        %491 = vmatprep.mubr.bf16.mxu0 0
        %492 = vmatmul.mubr.bf16.gmra.mrb[0].mxu0 %v454
        %v493 = vpop.f32.mrb[0].mxu0
        %v494 = vadd.f32 0.0, %v493
        %v495 = vpop.f32.mrb[0].mxu0
        %v496 = vadd.f32 0.0, %v495
        %v497 = vpop.f32.mrb[0].mxu0
        %v498 = vadd.f32 0.0, %v497
        %v499 = vpop.f32.mrb[0].mxu0
        %v500 = vadd.f32 0.0, %v499
        %501 = vmatprep.mubr.bf16.mxu0 0
        %502 = vmatmul.mubr.bf16.gmra.mrb[0].mxu0 %v457
        %v503 = vpop.f32.mrb[0].mxu0
        %v504 = vadd.f32 0.0, %v503
        %v505 = vpop.f32.mrb[0].mxu0
        %v506 = vadd.f32 0.0, %v505
        %v507 = vpop.f32.mrb[0].mxu0
        %v508 = vadd.f32 0.0, %v507
        %v509 = vpop.f32.mrb[0].mxu0
        %v510 = vadd.f32 0.0, %v509
        %511 = vdwg.mxu0
        %v512 = vld [vmem:[%s3] sm:$0xff]
        %v513 = vld [vmem:[%s3 + $0x8] sm:$0xff]
        %v514 = vld [vmem:[%s3 + $0x10] sm:$0xff]
        %v515 = vld [vmem:[%s3 + $0x18] sm:$0xff]
        %516 = vrot.lane.b32.xlu0 %v421, 17
        %v517 = vpop.permute.xlu0 %516
        %518 = vrot.lane.b32.xlu0 %v425, 17
        %v519 = vpop.permute.xlu0 %518
        %520 = vrot.lane.b32.xlu0 %v431, 17
        %v521 = vpop.permute.xlu0 %520
        %522 = vrot.lane.b32.xlu0 %v435, 17
        %v523 = vpop.permute.xlu0 %522
        %524 = vrot.lane.b32.xlu0 %v423, 17
        %v525 = vpop.permute.xlu0 %524
        %526 = vrot.lane.b32.xlu0 %v427, 17
        %v527 = vpop.permute.xlu0 %526
        %528 = vrot.lane.b32.xlu0 %v433, 17
        %v529 = vpop.permute.xlu0 %528
        %530 = vrot.lane.b32.xlu0 %v437, 17
        %v531 = vpop.permute.xlu0 %530
        %v532 = vlaneseq
        %v533 = vand.u32 %v532, 127
        %vm534 = vcmp.lt.s32.totalorder %v533, 17
        %v535 = vsel %vm534, %v517, %v525
        %v536 = vsel %vm534, %v519, %v527
        %v537 = vsel %vm534, %v521, %v529
        %v538 = vsel %vm534, %v523, %v531
        %v539 = vsel %vm534, %v525, %v517
        %v540 = vsel %vm534, %v527, %v519
        %v541 = vsel %vm534, %v529, %v521
        %v542 = vsel %vm534, %v531, %v523
        %v543 = vld [vmem:[%s9] ss:$8 sm:$0x3]
        %v545 = vlaneseq
        %v546 = vshrl.u32 %v545, 7
        %v547 = vsub.s32 0, %v546
        %v548 = vrot.slane %v543, %v547
        %v549 = vlaneseq
        %v550 = vshrl.u32 %v549, 7
        %v551 = vsub.s32 1, %v550
        %v552 = vrot.slane %v543, %v551
        %v555 = vmul.f32 %v539, %v548
        %v556 = vmul.f32 %v535, %v552
        %v557 = vmul.f32 %v540, %v548
        %v558 = vmul.f32 %v536, %v552
        %v559 = vmul.f32 %v541, %v548
        %v560 = vmul.f32 %v537, %v552
        %v561 = vmul.f32 %v542, %v548
        %v562 = vmul.f32 %v538, %v552
        %564 = vset.pattern.permute.xlu0 0
        %565 = vperm.xlu0 %564, %v512
        %v566 = vpop.permute.xlu0 %565
        %569 = vset.pattern.permute.xlu0 0
        %570 = vperm.xlu0 %569, %v513
        %v571 = vpop.permute.xlu0 %570
        %574 = vset.pattern.permute.xlu0 0
        %575 = vperm.xlu0 %574, %v514
        %v576 = vpop.permute.xlu0 %575
        %579 = vset.pattern.permute.xlu0 0
        %580 = vperm.xlu0 %579, %v515
        %v581 = vpop.permute.xlu0 %580
        %v583 = vmul.f32 %v555, %v566
        %v584 = vmul.f32 %v556, %v566
        %v585 = vmul.f32 %v557, %v571
        %v586 = vmul.f32 %v558, %v571
        %v587 = vmul.f32 %v559, %v576
        %v588 = vmul.f32 %v560, %v576
        %v589 = vmul.f32 %v561, %v581
        %v590 = vmul.f32 %v562, %v581
        %v591 = vadd.f32 %v583, 0.0
        %v592 = vadd.f32 %v584, 0.0
        %v593 = vadd.f32 %v585, 0.0
        %v594 = vadd.f32 %v586, 0.0
        %v595 = vadd.f32 %v587, 0.0
        %v596 = vadd.f32 %v588, 0.0
        %v597 = vadd.f32 %v589, 0.0
        %v598 = vadd.f32 %v590, 0.0
        %599 = vrot.lane.b32.xlu0 %v421, 16
        %v600 = vpop.permute.xlu0 %599
        %601 = vrot.lane.b32.xlu0 %v425, 16
        %v602 = vpop.permute.xlu0 %601
        %603 = vrot.lane.b32.xlu0 %v431, 16
        %v604 = vpop.permute.xlu0 %603
        %605 = vrot.lane.b32.xlu0 %v435, 16
        %v606 = vpop.permute.xlu0 %605
        %607 = vrot.lane.b32.xlu0 %v423, 16
        %v608 = vpop.permute.xlu0 %607
        %609 = vrot.lane.b32.xlu0 %v427, 16
        %v610 = vpop.permute.xlu0 %609
        %611 = vrot.lane.b32.xlu0 %v433, 16
        %v612 = vpop.permute.xlu0 %611
        %613 = vrot.lane.b32.xlu0 %v437, 16
        %v614 = vpop.permute.xlu0 %613
        %vm615 = vcmp.lt.s32.totalorder %v533, 16
        %v616 = vsel %vm615, %v600, %v608
        %v617 = vsel %vm615, %v602, %v610
        %v618 = vsel %vm615, %v604, %v612
        %v619 = vsel %vm615, %v606, %v614
        %v620 = vsel %vm615, %v608, %v600
        %v621 = vsel %vm615, %v610, %v602
        %v622 = vsel %vm615, %v612, %v604
        %v623 = vsel %vm615, %v614, %v606
        %s624 = scalar_lea.vmem %s9, 1
        %v625 = vld [vmem:[%s624] ss:$8 sm:$0x3]
        %v627 = vlaneseq
        %v628 = vshrl.u32 %v627, 7
        %v629 = vsub.s32 0, %v628
        %v630 = vrot.slane %v625, %v629
        %v631 = vlaneseq
        %v632 = vshrl.u32 %v631, 7
        %v633 = vsub.s32 1, %v632
        %v634 = vrot.slane %v625, %v633
        %v637 = vmul.f32 %v620, %v630
        %v638 = vmul.f32 %v616, %v634
        %v639 = vmul.f32 %v621, %v630
        %v640 = vmul.f32 %v617, %v634
        %v641 = vmul.f32 %v622, %v630
        %v642 = vmul.f32 %v618, %v634
        %v643 = vmul.f32 %v623, %v630
        %v644 = vmul.f32 %v619, %v634
        %645 = vset.pattern.permute.xlu0 1
        %646 = vperm.xlu0 %645, %v512
        %v647 = vpop.permute.xlu0 %646
        %649 = vset.pattern.permute.xlu0 1
        %650 = vperm.xlu0 %649, %v513
        %v651 = vpop.permute.xlu0 %650
        %653 = vset.pattern.permute.xlu0 1
        %654 = vperm.xlu0 %653, %v514
        %v655 = vpop.permute.xlu0 %654
        %657 = vset.pattern.permute.xlu0 1
        %658 = vperm.xlu0 %657, %v515
        %v659 = vpop.permute.xlu0 %658
        %v661 = vmul.f32 %v637, %v647
        %v662 = vmul.f32 %v638, %v647
        %v663 = vmul.f32 %v639, %v651
        %v664 = vmul.f32 %v640, %v651
        %v665 = vmul.f32 %v641, %v655
        %v666 = vmul.f32 %v642, %v655
        %v667 = vmul.f32 %v643, %v659
        %v668 = vmul.f32 %v644, %v659
        %v669 = vadd.f32 %v591, %v661
        %v670 = vadd.f32 %v592, %v662
        %v671 = vadd.f32 %v593, %v663
        %v672 = vadd.f32 %v594, %v664
        %v673 = vadd.f32 %v595, %v665
        %v674 = vadd.f32 %v596, %v666
        %v675 = vadd.f32 %v597, %v667
        %v676 = vadd.f32 %v598, %v668
        %677 = vrot.lane.b32.xlu0 %v421, 15
        %v678 = vpop.permute.xlu0 %677
        %679 = vrot.lane.b32.xlu0 %v425, 15
        %v680 = vpop.permute.xlu0 %679
        %681 = vrot.lane.b32.xlu0 %v431, 15
        %v682 = vpop.permute.xlu0 %681
        %683 = vrot.lane.b32.xlu0 %v435, 15
        %v684 = vpop.permute.xlu0 %683
        %685 = vrot.lane.b32.xlu0 %v423, 15
        %v686 = vpop.permute.xlu0 %685
        %687 = vrot.lane.b32.xlu0 %v427, 15
        %v688 = vpop.permute.xlu0 %687
        %689 = vrot.lane.b32.xlu0 %v433, 15
        %v690 = vpop.permute.xlu0 %689
        %691 = vrot.lane.b32.xlu0 %v437, 15
        %v692 = vpop.permute.xlu0 %691
        %vm693 = vcmp.lt.s32.totalorder %v533, 15
        %v694 = vsel %vm693, %v678, %v686
        %v695 = vsel %vm693, %v680, %v688
        %v696 = vsel %vm693, %v682, %v690
        %v697 = vsel %vm693, %v684, %v692
        %v698 = vsel %vm693, %v686, %v678
        %v699 = vsel %vm693, %v688, %v680
        %v700 = vsel %vm693, %v690, %v682
        %v701 = vsel %vm693, %v692, %v684
        %s702 = scalar_lea.vmem %s9, 2
        %v703 = vld [vmem:[%s702] ss:$8 sm:$0x3]
        %v705 = vlaneseq
        %v706 = vshrl.u32 %v705, 7
        %v707 = vsub.s32 0, %v706
        %v708 = vrot.slane %v703, %v707
        %v709 = vlaneseq
        %v710 = vshrl.u32 %v709, 7
        %v711 = vsub.s32 1, %v710
        %v712 = vrot.slane %v703, %v711
        %v715 = vmul.f32 %v698, %v708
        %v716 = vmul.f32 %v694, %v712
        %v717 = vmul.f32 %v699, %v708
        %v718 = vmul.f32 %v695, %v712
        %v719 = vmul.f32 %v700, %v708
        %v720 = vmul.f32 %v696, %v712
        %v721 = vmul.f32 %v701, %v708
        %v722 = vmul.f32 %v697, %v712
        %723 = vset.pattern.permute.xlu0 2
        %724 = vperm.xlu0 %723, %v512
        %v725 = vpop.permute.xlu0 %724
        %727 = vset.pattern.permute.xlu0 2
        %728 = vperm.xlu0 %727, %v513
        %v729 = vpop.permute.xlu0 %728
        %731 = vset.pattern.permute.xlu0 2
        %732 = vperm.xlu0 %731, %v514
        %v733 = vpop.permute.xlu0 %732
        %735 = vset.pattern.permute.xlu0 2
        %736 = vperm.xlu0 %735, %v515
        %v737 = vpop.permute.xlu0 %736
        %v739 = vmul.f32 %v715, %v725
        %v740 = vmul.f32 %v716, %v725
        %v741 = vmul.f32 %v717, %v729
        %v742 = vmul.f32 %v718, %v729
        %v743 = vmul.f32 %v719, %v733
        %v744 = vmul.f32 %v720, %v733
        %v745 = vmul.f32 %v721, %v737
        %v746 = vmul.f32 %v722, %v737
        %v747 = vadd.f32 %v669, %v739
        %v748 = vadd.f32 %v670, %v740
        %v749 = vadd.f32 %v671, %v741
        %v750 = vadd.f32 %v672, %v742
        %v751 = vadd.f32 %v673, %v743
        %v752 = vadd.f32 %v674, %v744
        %v753 = vadd.f32 %v675, %v745
        %v754 = vadd.f32 %v676, %v746
        %755 = vrot.lane.b32.xlu0 %v421, 1
        %v756 = vpop.permute.xlu0 %755
        %757 = vrot.lane.b32.xlu0 %v425, 1
        %v758 = vpop.permute.xlu0 %757
        %759 = vrot.lane.b32.xlu0 %v431, 1
        %v760 = vpop.permute.xlu0 %759
        %761 = vrot.lane.b32.xlu0 %v435, 1
        %v762 = vpop.permute.xlu0 %761
        %763 = vrot.lane.b32.xlu0 %v423, 1
        %v764 = vpop.permute.xlu0 %763
        %765 = vrot.lane.b32.xlu0 %v427, 1
        %v766 = vpop.permute.xlu0 %765
        %767 = vrot.lane.b32.xlu0 %v433, 1
        %v768 = vpop.permute.xlu0 %767
        %769 = vrot.lane.b32.xlu0 %v437, 1
        %v770 = vpop.permute.xlu0 %769
        %vm771 = vcmp.lt.s32.totalorder %v533, 1
        %v772 = vsel %vm771, %v756, %v764
        %v773 = vsel %vm771, %v758, %v766
        %v774 = vsel %vm771, %v760, %v768
        %v775 = vsel %vm771, %v762, %v770
        %v776 = vsel %vm771, %v764, %v756
        %v777 = vsel %vm771, %v766, %v758
        %v778 = vsel %vm771, %v768, %v760
        %v779 = vsel %vm771, %v770, %v762
        %s780 = scalar_lea.vmem %s9, 3
        %v781 = vld [vmem:[%s780] ss:$8 sm:$0x3]
        %v783 = vlaneseq
        %v784 = vshrl.u32 %v783, 7
        %v785 = vsub.s32 0, %v784
        %v786 = vrot.slane %v781, %v785
        %v787 = vlaneseq
        %v788 = vshrl.u32 %v787, 7
        %v789 = vsub.s32 1, %v788
        %v790 = vrot.slane %v781, %v789
        %v793 = vmul.f32 %v776, %v786
        %v794 = vmul.f32 %v772, %v790
        %v795 = vmul.f32 %v777, %v786
        %v796 = vmul.f32 %v773, %v790
        %v797 = vmul.f32 %v778, %v786
        %v798 = vmul.f32 %v774, %v790
        %v799 = vmul.f32 %v779, %v786
        %v800 = vmul.f32 %v775, %v790
        %801 = vset.pattern.permute.xlu0 3
        %802 = vperm.xlu0 %801, %v512
        %v803 = vpop.permute.xlu0 %802
        %805 = vset.pattern.permute.xlu0 3
        %806 = vperm.xlu0 %805, %v513
        %v807 = vpop.permute.xlu0 %806
        %809 = vset.pattern.permute.xlu0 3
        %810 = vperm.xlu0 %809, %v514
        %v811 = vpop.permute.xlu0 %810
        %813 = vset.pattern.permute.xlu0 3
        %814 = vperm.xlu0 %813, %v515
        %v815 = vpop.permute.xlu0 %814
        %v817 = vmul.f32 %v793, %v803
        %v818 = vmul.f32 %v794, %v803
        %v819 = vmul.f32 %v795, %v807
        %v820 = vmul.f32 %v796, %v807
        %v821 = vmul.f32 %v797, %v811
        %v822 = vmul.f32 %v798, %v811
        %v823 = vmul.f32 %v799, %v815
        %v824 = vmul.f32 %v800, %v815
        %v825 = vadd.f32 %v747, %v817
        %v826 = vadd.f32 %v748, %v818
        %v827 = vadd.f32 %v749, %v819
        %v828 = vadd.f32 %v750, %v820
        %v829 = vadd.f32 %v751, %v821
        %v830 = vadd.f32 %v752, %v822
        %v831 = vadd.f32 %v753, %v823
        %v832 = vadd.f32 %v754, %v824
        %833 = vset.pattern.permute.xlu0 4
        %834 = vperm.xlu0 %833, %v512
        %v835 = vpop.permute.xlu0 %834
        %837 = vset.pattern.permute.xlu0 4
        %838 = vperm.xlu0 %837, %v513
        %v839 = vpop.permute.xlu0 %838
        %841 = vset.pattern.permute.xlu0 4
        %842 = vperm.xlu0 %841, %v514
        %v843 = vpop.permute.xlu0 %842
        %845 = vset.pattern.permute.xlu0 4
        %846 = vperm.xlu0 %845, %v515
        %v847 = vpop.permute.xlu0 %846
        %v849 = vmul.f32 %v421, %v835
        %v850 = vmul.f32 %v423, %v835
        %v851 = vmul.f32 %v425, %v839
        %v852 = vmul.f32 %v427, %v839
        %v853 = vmul.f32 %v431, %v843
        %v854 = vmul.f32 %v433, %v843
        %v855 = vmul.f32 %v435, %v847
        %v856 = vmul.f32 %v437, %v847
        %v857 = vadd.f32 %v825, %v849
        %v858 = vadd.f32 %v826, %v850
        %v859 = vadd.f32 %v827, %v851
        %v860 = vadd.f32 %v828, %v852
        %v861 = vadd.f32 %v829, %v853
        %v862 = vadd.f32 %v830, %v854
        %v863 = vadd.f32 %v831, %v855
        %v864 = vadd.f32 %v832, %v856
        %865 = vrot.lane.b32.xlu0 %v421, 127
        %v866 = vpop.permute.xlu0 %865
        %867 = vrot.lane.b32.xlu0 %v425, 127
        %v868 = vpop.permute.xlu0 %867
        %869 = vrot.lane.b32.xlu0 %v431, 127
        %v870 = vpop.permute.xlu0 %869
        %871 = vrot.lane.b32.xlu0 %v435, 127
        %v872 = vpop.permute.xlu0 %871
        %873 = vrot.lane.b32.xlu0 %v423, 127
        %v874 = vpop.permute.xlu0 %873
        %875 = vrot.lane.b32.xlu0 %v427, 127
        %v876 = vpop.permute.xlu0 %875
        %877 = vrot.lane.b32.xlu0 %v433, 127
        %v878 = vpop.permute.xlu0 %877
        %879 = vrot.lane.b32.xlu0 %v437, 127
        %v880 = vpop.permute.xlu0 %879
        %vm881 = vcmp.lt.s32.totalorder %v533, 127
        %v882 = vsel %vm881, %v866, %v874
        %v883 = vsel %vm881, %v868, %v876
        %v884 = vsel %vm881, %v870, %v878
        %v885 = vsel %vm881, %v872, %v880
        %v886 = vsel %vm881, %v874, %v866
        %v887 = vsel %vm881, %v876, %v868
        %v888 = vsel %vm881, %v878, %v870
        %v889 = vsel %vm881, %v880, %v872
        %s890 = scalar_lea.vmem %s9, 5
        %v891 = vld [vmem:[%s890] ss:$8 sm:$0x3]
        %v893 = vlaneseq
        %v894 = vshrl.u32 %v893, 7
        %v895 = vsub.s32 0, %v894
        %v896 = vrot.slane %v891, %v895
        %v897 = vlaneseq
        %v898 = vshrl.u32 %v897, 7
        %v899 = vsub.s32 1, %v898
        %v900 = vrot.slane %v891, %v899
        %v903 = vmul.f32 %v882, %v896
        %v904 = vmul.f32 %v886, %v900
        %v905 = vmul.f32 %v883, %v896
        %v906 = vmul.f32 %v887, %v900
        %v907 = vmul.f32 %v884, %v896
        %v908 = vmul.f32 %v888, %v900
        %v909 = vmul.f32 %v885, %v896
        %v910 = vmul.f32 %v889, %v900
        %911 = vset.pattern.permute.xlu0 5
        %912 = vperm.xlu0 %911, %v512
        %v913 = vpop.permute.xlu0 %912
        %915 = vset.pattern.permute.xlu0 5
        %916 = vperm.xlu0 %915, %v513
        %v917 = vpop.permute.xlu0 %916
        %919 = vset.pattern.permute.xlu0 5
        %920 = vperm.xlu0 %919, %v514
        %v921 = vpop.permute.xlu0 %920
        %923 = vset.pattern.permute.xlu0 5
        %924 = vperm.xlu0 %923, %v515
        %v925 = vpop.permute.xlu0 %924
        %v927 = vmul.f32 %v903, %v913
        %v928 = vmul.f32 %v904, %v913
        %v929 = vmul.f32 %v905, %v917
        %v930 = vmul.f32 %v906, %v917
        %v931 = vmul.f32 %v907, %v921
        %v932 = vmul.f32 %v908, %v921
        %v933 = vmul.f32 %v909, %v925
        %v934 = vmul.f32 %v910, %v925
        %v935 = vadd.f32 %v857, %v927
        %v936 = vadd.f32 %v858, %v928
        %v937 = vadd.f32 %v859, %v929
        %v938 = vadd.f32 %v860, %v930
        %v939 = vadd.f32 %v861, %v931
        %v940 = vadd.f32 %v862, %v932
        %v941 = vadd.f32 %v863, %v933
        %v942 = vadd.f32 %v864, %v934
        %943 = vrot.lane.b32.xlu0 %v421, 113
        %v944 = vpop.permute.xlu0 %943
        %945 = vrot.lane.b32.xlu0 %v425, 113
        %v946 = vpop.permute.xlu0 %945
        %947 = vrot.lane.b32.xlu0 %v431, 113
        %v948 = vpop.permute.xlu0 %947
        %949 = vrot.lane.b32.xlu0 %v435, 113
        %v950 = vpop.permute.xlu0 %949
        %951 = vrot.lane.b32.xlu0 %v423, 113
        %v952 = vpop.permute.xlu0 %951
        %953 = vrot.lane.b32.xlu0 %v427, 113
        %v954 = vpop.permute.xlu0 %953
        %955 = vrot.lane.b32.xlu0 %v433, 113
        %v956 = vpop.permute.xlu0 %955
        %957 = vrot.lane.b32.xlu0 %v437, 113
        %v958 = vpop.permute.xlu0 %957
        %vm959 = vcmp.lt.s32.totalorder %v533, 113
        %v960 = vsel %vm959, %v944, %v952
        %v961 = vsel %vm959, %v946, %v954
        %v962 = vsel %vm959, %v948, %v956
        %v963 = vsel %vm959, %v950, %v958
        %v964 = vsel %vm959, %v952, %v944
        %v965 = vsel %vm959, %v954, %v946
        %v966 = vsel %vm959, %v956, %v948
        %v967 = vsel %vm959, %v958, %v950
        %s968 = scalar_lea.vmem %s9, 6
        %v969 = vld [vmem:[%s968] ss:$8 sm:$0x3]
        %v971 = vlaneseq
        %v972 = vshrl.u32 %v971, 7
        %v973 = vsub.s32 0, %v972
        %v974 = vrot.slane %v969, %v973
        %v975 = vlaneseq
        %v976 = vshrl.u32 %v975, 7
        %v977 = vsub.s32 1, %v976
        %v978 = vrot.slane %v969, %v977
        %v981 = vmul.f32 %v960, %v974
        %v982 = vmul.f32 %v964, %v978
        %v983 = vmul.f32 %v961, %v974
        %v984 = vmul.f32 %v965, %v978
        %v985 = vmul.f32 %v962, %v974
        %v986 = vmul.f32 %v966, %v978
        %v987 = vmul.f32 %v963, %v974
        %v988 = vmul.f32 %v967, %v978
        %989 = vset.pattern.permute.xlu0 6
        %990 = vperm.xlu0 %989, %v512
        %v991 = vpop.permute.xlu0 %990
        %993 = vset.pattern.permute.xlu0 6
        %994 = vperm.xlu0 %993, %v513
        %v995 = vpop.permute.xlu0 %994
        %997 = vset.pattern.permute.xlu0 6
        %998 = vperm.xlu0 %997, %v514
        %v999 = vpop.permute.xlu0 %998
        %1001 = vset.pattern.permute.xlu0 6
        %1002 = vperm.xlu0 %1001, %v515
        %v1003 = vpop.permute.xlu0 %1002
        %v1005 = vmul.f32 %v981, %v991
        %v1006 = vmul.f32 %v982, %v991
        %v1007 = vmul.f32 %v983, %v995
        %v1008 = vmul.f32 %v984, %v995
        %v1009 = vmul.f32 %v985, %v999
        %v1010 = vmul.f32 %v986, %v999
        %v1011 = vmul.f32 %v987, %v1003
        %v1012 = vmul.f32 %v988, %v1003
        %v1013 = vadd.f32 %v935, %v1005
        %v1014 = vadd.f32 %v936, %v1006
        %v1015 = vadd.f32 %v937, %v1007
        %v1016 = vadd.f32 %v938, %v1008
        %v1017 = vadd.f32 %v939, %v1009
        %v1018 = vadd.f32 %v940, %v1010
        %v1019 = vadd.f32 %v941, %v1011
        %v1020 = vadd.f32 %v942, %v1012
        %1021 = vrot.lane.b32.xlu0 %v421, 112
        %v1022 = vpop.permute.xlu0 %1021
        %1023 = vrot.lane.b32.xlu0 %v425, 112
        %v1024 = vpop.permute.xlu0 %1023
        %1025 = vrot.lane.b32.xlu0 %v431, 112
        %v1026 = vpop.permute.xlu0 %1025
        %1027 = vrot.lane.b32.xlu0 %v435, 112
        %v1028 = vpop.permute.xlu0 %1027
        %1029 = vrot.lane.b32.xlu0 %v423, 112
        %v1030 = vpop.permute.xlu0 %1029
        %1031 = vrot.lane.b32.xlu0 %v427, 112
        %v1032 = vpop.permute.xlu0 %1031
        %1033 = vrot.lane.b32.xlu0 %v433, 112
        %v1034 = vpop.permute.xlu0 %1033
        %1035 = vrot.lane.b32.xlu0 %v437, 112
        %v1036 = vpop.permute.xlu0 %1035
        %vm1037 = vcmp.lt.s32.totalorder %v533, 112
        %v1038 = vsel %vm1037, %v1022, %v1030
        %v1039 = vsel %vm1037, %v1024, %v1032
        %v1040 = vsel %vm1037, %v1026, %v1034
        %v1041 = vsel %vm1037, %v1028, %v1036
        %v1042 = vsel %vm1037, %v1030, %v1022
        %v1043 = vsel %vm1037, %v1032, %v1024
        %v1044 = vsel %vm1037, %v1034, %v1026
        %v1045 = vsel %vm1037, %v1036, %v1028
        %s1046 = scalar_lea.vmem %s9, 7
        %v1047 = vld [vmem:[%s1046] ss:$8 sm:$0x3]
        %v1049 = vlaneseq
        %v1050 = vshrl.u32 %v1049, 7
        %v1051 = vsub.s32 0, %v1050
        %v1052 = vrot.slane %v1047, %v1051
        %v1053 = vlaneseq
        %v1054 = vshrl.u32 %v1053, 7
        %v1055 = vsub.s32 1, %v1054
        %v1056 = vrot.slane %v1047, %v1055
        %v1059 = vmul.f32 %v1038, %v1052
        %v1060 = vmul.f32 %v1042, %v1056
        %v1061 = vmul.f32 %v1039, %v1052
        %v1062 = vmul.f32 %v1043, %v1056
        %v1063 = vmul.f32 %v1040, %v1052
        %v1064 = vmul.f32 %v1044, %v1056
        %v1065 = vmul.f32 %v1041, %v1052
        %v1066 = vmul.f32 %v1045, %v1056
        %1067 = vset.pattern.permute.xlu0 7
        %1068 = vperm.xlu0 %1067, %v512
        %v1069 = vpop.permute.xlu0 %1068
        %1071 = vset.pattern.permute.xlu0 7
        %1072 = vperm.xlu0 %1071, %v513
        %v1073 = vpop.permute.xlu0 %1072
        %1075 = vset.pattern.permute.xlu0 7
        %1076 = vperm.xlu0 %1075, %v514
        %v1077 = vpop.permute.xlu0 %1076
        %1079 = vset.pattern.permute.xlu0 7
        %1080 = vperm.xlu0 %1079, %v515
        %v1081 = vpop.permute.xlu0 %1080
        %v1083 = vmul.f32 %v1059, %v1069
        %v1084 = vmul.f32 %v1060, %v1069
        %v1085 = vmul.f32 %v1061, %v1073
        %v1086 = vmul.f32 %v1062, %v1073
        %v1087 = vmul.f32 %v1063, %v1077
        %v1088 = vmul.f32 %v1064, %v1077
        %v1089 = vmul.f32 %v1065, %v1081
        %v1090 = vmul.f32 %v1066, %v1081
        %v1091 = vadd.f32 %v1013, %v1083
        %v1092 = vadd.f32 %v1014, %v1084
        %v1093 = vadd.f32 %v1015, %v1085
        %v1094 = vadd.f32 %v1016, %v1086
        %v1095 = vadd.f32 %v1017, %v1087
        %v1096 = vadd.f32 %v1018, %v1088
        %v1097 = vadd.f32 %v1019, %v1089
        %v1098 = vadd.f32 %v1020, %v1090
        %1099 = vrot.lane.b32.xlu0 %v421, 111
        %v1100 = vpop.permute.xlu0 %1099
        %1101 = vrot.lane.b32.xlu0 %v425, 111
        %v1102 = vpop.permute.xlu0 %1101
        %1103 = vrot.lane.b32.xlu0 %v431, 111
        %v1104 = vpop.permute.xlu0 %1103
        %1105 = vrot.lane.b32.xlu0 %v435, 111
        %v1106 = vpop.permute.xlu0 %1105
        %1107 = vrot.lane.b32.xlu0 %v423, 111
        %v1108 = vpop.permute.xlu0 %1107
        %1109 = vrot.lane.b32.xlu0 %v427, 111
        %v1110 = vpop.permute.xlu0 %1109
        %1111 = vrot.lane.b32.xlu0 %v433, 111
        %v1112 = vpop.permute.xlu0 %1111
        %1113 = vrot.lane.b32.xlu0 %v437, 111
        %v1114 = vpop.permute.xlu0 %1113
        %vm1115 = vcmp.lt.s32.totalorder %v533, 111
        %v1116 = vsel %vm1115, %v1100, %v1108
        %v1117 = vsel %vm1115, %v1102, %v1110
        %v1118 = vsel %vm1115, %v1104, %v1112
        %v1119 = vsel %vm1115, %v1106, %v1114
        %v1120 = vsel %vm1115, %v1108, %v1100
        %v1121 = vsel %vm1115, %v1110, %v1102
        %v1122 = vsel %vm1115, %v1112, %v1104
        %v1123 = vsel %vm1115, %v1114, %v1106
        %s1124 = scalar_lea.vmem %s9, 16
        %v1125 = vld [vmem:[%s1124] ss:$8 sm:$0x3]
        %v1127 = vlaneseq
        %v1128 = vshrl.u32 %v1127, 7
        %v1129 = vsub.s32 0, %v1128
        %v1130 = vrot.slane %v1125, %v1129
        %v1131 = vlaneseq
        %v1132 = vshrl.u32 %v1131, 7
        %v1133 = vsub.s32 1, %v1132
        %v1134 = vrot.slane %v1125, %v1133
        %v1137 = vmul.f32 %v1116, %v1130
        %v1138 = vmul.f32 %v1120, %v1134
        %v1139 = vmul.f32 %v1117, %v1130
        %v1140 = vmul.f32 %v1121, %v1134
        %v1141 = vmul.f32 %v1118, %v1130
        %v1142 = vmul.f32 %v1122, %v1134
        %v1143 = vmul.f32 %v1119, %v1130
        %v1144 = vmul.f32 %v1123, %v1134
        %1145 = vset.pattern.permute.xlu0 8
        %1146 = vperm.xlu0 %1145, %v512
        %v1147 = vpop.permute.xlu0 %1146
        %1149 = vset.pattern.permute.xlu0 8
        %1150 = vperm.xlu0 %1149, %v513
        %v1151 = vpop.permute.xlu0 %1150
        %1153 = vset.pattern.permute.xlu0 8
        %1154 = vperm.xlu0 %1153, %v514
        %v1155 = vpop.permute.xlu0 %1154
        %1157 = vset.pattern.permute.xlu0 8
        %1158 = vperm.xlu0 %1157, %v515
        %v1159 = vpop.permute.xlu0 %1158
        %v1161 = vmul.f32 %v1137, %v1147
        %v1162 = vmul.f32 %v1138, %v1147
        %v1163 = vmul.f32 %v1139, %v1151
        %v1164 = vmul.f32 %v1140, %v1151
        %v1165 = vmul.f32 %v1141, %v1155
        %v1166 = vmul.f32 %v1142, %v1155
        %v1167 = vmul.f32 %v1143, %v1159
        %v1168 = vmul.f32 %v1144, %v1159
        %v1169 = vadd.f32 %v1091, %v1161
        %v1170 = vadd.f32 %v1092, %v1162
        %v1171 = vadd.f32 %v1093, %v1163
        %v1172 = vadd.f32 %v1094, %v1164
        %v1173 = vadd.f32 %v1095, %v1165
        %v1174 = vadd.f32 %v1096, %v1166
        %v1175 = vadd.f32 %v1097, %v1167
        %v1176 = vadd.f32 %v1098, %v1168
        %v1177 = vld [vmem:[%s5] sm:$0xff]
        %v1178 = vld [vmem:[%s5 + $0x8] sm:$0xff]
        %v1179 = vld [vmem:[%s5 + $0x10] sm:$0xff]
        %v1180 = vld [vmem:[%s5 + $0x18] sm:$0xff]
        %1182 = vset.pattern.permute.xlu0 0
        %1183 = vperm.xlu0 %1182, %v1177
        %v1184 = vpop.permute.xlu0 %1183
        %1187 = vset.pattern.permute.xlu0 0
        %1188 = vperm.xlu0 %1187, %v1178
        %v1189 = vpop.permute.xlu0 %1188
        %1192 = vset.pattern.permute.xlu0 0
        %1193 = vperm.xlu0 %1192, %v1179
        %v1194 = vpop.permute.xlu0 %1193
        %1197 = vset.pattern.permute.xlu0 0
        %1198 = vperm.xlu0 %1197, %v1180
        %v1199 = vpop.permute.xlu0 %1198
        %v1201 = vadd.f32 %v1169, %v1184
        %v1202 = vadd.f32 %v1170, %v1184
        %v1203 = vadd.f32 %v1171, %v1189
        %v1204 = vadd.f32 %v1172, %v1189
        %v1205 = vadd.f32 %v1173, %v1194
        %v1206 = vadd.f32 %v1174, %v1194
        %v1207 = vadd.f32 %v1175, %v1199
        %v1208 = vadd.f32 %v1176, %v1199
        %v1209 = vld [vmem:[%s4] sm:$0xff]
        %v1210 = vld [vmem:[%s4 + $0x8] sm:$0xff]
        %v1211 = vld [vmem:[%s4 + $0x10] sm:$0xff]
        %v1212 = vld [vmem:[%s4 + $0x18] sm:$0xff]
        %1213 = vrot.lane.b32.xlu0 %v494, 17
        %v1214 = vpop.permute.xlu0 %1213
        %1215 = vrot.lane.b32.xlu0 %v498, 17
        %v1216 = vpop.permute.xlu0 %1215
        %1217 = vrot.lane.b32.xlu0 %v504, 17
        %v1218 = vpop.permute.xlu0 %1217
        %1219 = vrot.lane.b32.xlu0 %v508, 17
        %v1220 = vpop.permute.xlu0 %1219
        %1221 = vrot.lane.b32.xlu0 %v496, 17
        %v1222 = vpop.permute.xlu0 %1221
        %1223 = vrot.lane.b32.xlu0 %v500, 17
        %v1224 = vpop.permute.xlu0 %1223
        %1225 = vrot.lane.b32.xlu0 %v506, 17
        %v1226 = vpop.permute.xlu0 %1225
        %1227 = vrot.lane.b32.xlu0 %v510, 17
        %v1228 = vpop.permute.xlu0 %1227
        %v1229 = vsel %vm534, %v1214, %v1222
        %v1230 = vsel %vm534, %v1216, %v1224
        %v1231 = vsel %vm534, %v1218, %v1226
        %v1232 = vsel %vm534, %v1220, %v1228
        %v1233 = vsel %vm534, %v1222, %v1214
        %v1234 = vsel %vm534, %v1224, %v1216
        %v1235 = vsel %vm534, %v1226, %v1218
        %v1236 = vsel %vm534, %v1228, %v1220
        %v1237 = vmul.f32 %v1233, %v548
        %v1238 = vmul.f32 %v1229, %v552
        %v1239 = vmul.f32 %v1234, %v548
        %v1240 = vmul.f32 %v1230, %v552
        %v1241 = vmul.f32 %v1235, %v548
        %v1242 = vmul.f32 %v1231, %v552
        %v1243 = vmul.f32 %v1236, %v548
        %v1244 = vmul.f32 %v1232, %v552
        %1246 = vset.pattern.permute.xlu0 0
        %1247 = vperm.xlu0 %1246, %v1209
        %v1248 = vpop.permute.xlu0 %1247
        %1251 = vset.pattern.permute.xlu0 0
        %1252 = vperm.xlu0 %1251, %v1210
        %v1253 = vpop.permute.xlu0 %1252
        %1256 = vset.pattern.permute.xlu0 0
        %1257 = vperm.xlu0 %1256, %v1211
        %v1258 = vpop.permute.xlu0 %1257
        %1261 = vset.pattern.permute.xlu0 0
        %1262 = vperm.xlu0 %1261, %v1212
        %v1263 = vpop.permute.xlu0 %1262
        %v1265 = vmul.f32 %v1237, %v1248
        %v1266 = vmul.f32 %v1238, %v1248
        %v1267 = vmul.f32 %v1239, %v1253
        %v1268 = vmul.f32 %v1240, %v1253
        %v1269 = vmul.f32 %v1241, %v1258
        %v1270 = vmul.f32 %v1242, %v1258
        %v1271 = vmul.f32 %v1243, %v1263
        %v1272 = vmul.f32 %v1244, %v1263
        %v1273 = vadd.f32 %v1265, 0.0
        %v1274 = vadd.f32 %v1266, 0.0
        %v1275 = vadd.f32 %v1267, 0.0
        %v1276 = vadd.f32 %v1268, 0.0
        %v1277 = vadd.f32 %v1269, 0.0
        %v1278 = vadd.f32 %v1270, 0.0
        %v1279 = vadd.f32 %v1271, 0.0
        %v1280 = vadd.f32 %v1272, 0.0
        %1281 = vrot.lane.b32.xlu0 %v494, 16
        %v1282 = vpop.permute.xlu0 %1281
        %1283 = vrot.lane.b32.xlu0 %v498, 16
        %v1284 = vpop.permute.xlu0 %1283
        %1285 = vrot.lane.b32.xlu0 %v504, 16
        %v1286 = vpop.permute.xlu0 %1285
        %1287 = vrot.lane.b32.xlu0 %v508, 16
        %v1288 = vpop.permute.xlu0 %1287
        %1289 = vrot.lane.b32.xlu0 %v496, 16
        %v1290 = vpop.permute.xlu0 %1289
        %1291 = vrot.lane.b32.xlu0 %v500, 16
        %v1292 = vpop.permute.xlu0 %1291
        %1293 = vrot.lane.b32.xlu0 %v506, 16
        %v1294 = vpop.permute.xlu0 %1293
        %1295 = vrot.lane.b32.xlu0 %v510, 16
        %v1296 = vpop.permute.xlu0 %1295
        %v1297 = vsel %vm615, %v1282, %v1290
        %v1298 = vsel %vm615, %v1284, %v1292
        %v1299 = vsel %vm615, %v1286, %v1294
        %v1300 = vsel %vm615, %v1288, %v1296
        %v1301 = vsel %vm615, %v1290, %v1282
        %v1302 = vsel %vm615, %v1292, %v1284
        %v1303 = vsel %vm615, %v1294, %v1286
        %v1304 = vsel %vm615, %v1296, %v1288
        %v1305 = vmul.f32 %v1301, %v630
        %v1306 = vmul.f32 %v1297, %v634
        %v1307 = vmul.f32 %v1302, %v630
        %v1308 = vmul.f32 %v1298, %v634
        %v1309 = vmul.f32 %v1303, %v630
        %v1310 = vmul.f32 %v1299, %v634
        %v1311 = vmul.f32 %v1304, %v630
        %v1312 = vmul.f32 %v1300, %v634
        %1313 = vset.pattern.permute.xlu0 1
        %1314 = vperm.xlu0 %1313, %v1209
        %v1315 = vpop.permute.xlu0 %1314
        %1317 = vset.pattern.permute.xlu0 1
        %1318 = vperm.xlu0 %1317, %v1210
        %v1319 = vpop.permute.xlu0 %1318
        %1321 = vset.pattern.permute.xlu0 1
        %1322 = vperm.xlu0 %1321, %v1211
        %v1323 = vpop.permute.xlu0 %1322
        %1325 = vset.pattern.permute.xlu0 1
        %1326 = vperm.xlu0 %1325, %v1212
        %v1327 = vpop.permute.xlu0 %1326
        %v1329 = vmul.f32 %v1305, %v1315
        %v1330 = vmul.f32 %v1306, %v1315
        %v1331 = vmul.f32 %v1307, %v1319
        %v1332 = vmul.f32 %v1308, %v1319
        %v1333 = vmul.f32 %v1309, %v1323
        %v1334 = vmul.f32 %v1310, %v1323
        %v1335 = vmul.f32 %v1311, %v1327
        %v1336 = vmul.f32 %v1312, %v1327
        %v1337 = vadd.f32 %v1273, %v1329
        %v1338 = vadd.f32 %v1274, %v1330
        %v1339 = vadd.f32 %v1275, %v1331
        %v1340 = vadd.f32 %v1276, %v1332
        %v1341 = vadd.f32 %v1277, %v1333
        %v1342 = vadd.f32 %v1278, %v1334
        %v1343 = vadd.f32 %v1279, %v1335
        %v1344 = vadd.f32 %v1280, %v1336
        %1345 = vrot.lane.b32.xlu0 %v494, 15
        %v1346 = vpop.permute.xlu0 %1345
        %1347 = vrot.lane.b32.xlu0 %v498, 15
        %v1348 = vpop.permute.xlu0 %1347
        %1349 = vrot.lane.b32.xlu0 %v504, 15
        %v1350 = vpop.permute.xlu0 %1349
        %1351 = vrot.lane.b32.xlu0 %v508, 15
        %v1352 = vpop.permute.xlu0 %1351
        %1353 = vrot.lane.b32.xlu0 %v496, 15
        %v1354 = vpop.permute.xlu0 %1353
        %1355 = vrot.lane.b32.xlu0 %v500, 15
        %v1356 = vpop.permute.xlu0 %1355
        %1357 = vrot.lane.b32.xlu0 %v506, 15
        %v1358 = vpop.permute.xlu0 %1357
        %1359 = vrot.lane.b32.xlu0 %v510, 15
        %v1360 = vpop.permute.xlu0 %1359
        %v1361 = vsel %vm693, %v1346, %v1354
        %v1362 = vsel %vm693, %v1348, %v1356
        %v1363 = vsel %vm693, %v1350, %v1358
        %v1364 = vsel %vm693, %v1352, %v1360
        %v1365 = vsel %vm693, %v1354, %v1346
        %v1366 = vsel %vm693, %v1356, %v1348
        %v1367 = vsel %vm693, %v1358, %v1350
        %v1368 = vsel %vm693, %v1360, %v1352
        %v1369 = vmul.f32 %v1365, %v708
        %v1370 = vmul.f32 %v1361, %v712
        %v1371 = vmul.f32 %v1366, %v708
        %v1372 = vmul.f32 %v1362, %v712
        %v1373 = vmul.f32 %v1367, %v708
        %v1374 = vmul.f32 %v1363, %v712
        %v1375 = vmul.f32 %v1368, %v708
        %v1376 = vmul.f32 %v1364, %v712
        %1377 = vset.pattern.permute.xlu0 2
        %1378 = vperm.xlu0 %1377, %v1209
        %v1379 = vpop.permute.xlu0 %1378
        %1381 = vset.pattern.permute.xlu0 2
        %1382 = vperm.xlu0 %1381, %v1210
        %v1383 = vpop.permute.xlu0 %1382
        %1385 = vset.pattern.permute.xlu0 2
        %1386 = vperm.xlu0 %1385, %v1211
        %v1387 = vpop.permute.xlu0 %1386
        %1389 = vset.pattern.permute.xlu0 2
        %1390 = vperm.xlu0 %1389, %v1212
        %v1391 = vpop.permute.xlu0 %1390
        %v1393 = vmul.f32 %v1369, %v1379
        %v1394 = vmul.f32 %v1370, %v1379
        %v1395 = vmul.f32 %v1371, %v1383
        %v1396 = vmul.f32 %v1372, %v1383
        %v1397 = vmul.f32 %v1373, %v1387
        %v1398 = vmul.f32 %v1374, %v1387
        %v1399 = vmul.f32 %v1375, %v1391
        %v1400 = vmul.f32 %v1376, %v1391
        %v1401 = vadd.f32 %v1337, %v1393
        %v1402 = vadd.f32 %v1338, %v1394
        %v1403 = vadd.f32 %v1339, %v1395
        %v1404 = vadd.f32 %v1340, %v1396
        %v1405 = vadd.f32 %v1341, %v1397
        %v1406 = vadd.f32 %v1342, %v1398
        %v1407 = vadd.f32 %v1343, %v1399
        %v1408 = vadd.f32 %v1344, %v1400
        %1409 = vrot.lane.b32.xlu0 %v494, 1
        %v1410 = vpop.permute.xlu0 %1409
        %1411 = vrot.lane.b32.xlu0 %v498, 1
        %v1412 = vpop.permute.xlu0 %1411
        %1413 = vrot.lane.b32.xlu0 %v504, 1
        %v1414 = vpop.permute.xlu0 %1413
        %1415 = vrot.lane.b32.xlu0 %v508, 1
        %v1416 = vpop.permute.xlu0 %1415
        %1417 = vrot.lane.b32.xlu0 %v496, 1
        %v1418 = vpop.permute.xlu0 %1417
        %1419 = vrot.lane.b32.xlu0 %v500, 1
        %v1420 = vpop.permute.xlu0 %1419
        %1421 = vrot.lane.b32.xlu0 %v506, 1
        %v1422 = vpop.permute.xlu0 %1421
        %1423 = vrot.lane.b32.xlu0 %v510, 1
        %v1424 = vpop.permute.xlu0 %1423
        %v1425 = vsel %vm771, %v1410, %v1418
        %v1426 = vsel %vm771, %v1412, %v1420
        %v1427 = vsel %vm771, %v1414, %v1422
        %v1428 = vsel %vm771, %v1416, %v1424
        %v1429 = vsel %vm771, %v1418, %v1410
        %v1430 = vsel %vm771, %v1420, %v1412
        %v1431 = vsel %vm771, %v1422, %v1414
        %v1432 = vsel %vm771, %v1424, %v1416
        %v1433 = vmul.f32 %v1429, %v786
        %v1434 = vmul.f32 %v1425, %v790
        %v1435 = vmul.f32 %v1430, %v786
        %v1436 = vmul.f32 %v1426, %v790
        %v1437 = vmul.f32 %v1431, %v786
        %v1438 = vmul.f32 %v1427, %v790
        %v1439 = vmul.f32 %v1432, %v786
        %v1440 = vmul.f32 %v1428, %v790
        %1441 = vset.pattern.permute.xlu0 3
        %1442 = vperm.xlu0 %1441, %v1209
        %v1443 = vpop.permute.xlu0 %1442
        %1445 = vset.pattern.permute.xlu0 3
        %1446 = vperm.xlu0 %1445, %v1210
        %v1447 = vpop.permute.xlu0 %1446
        %1449 = vset.pattern.permute.xlu0 3
        %1450 = vperm.xlu0 %1449, %v1211
        %v1451 = vpop.permute.xlu0 %1450
        %1453 = vset.pattern.permute.xlu0 3
        %1454 = vperm.xlu0 %1453, %v1212
        %v1455 = vpop.permute.xlu0 %1454
        %v1457 = vmul.f32 %v1433, %v1443
        %v1458 = vmul.f32 %v1434, %v1443
        %v1459 = vmul.f32 %v1435, %v1447
        %v1460 = vmul.f32 %v1436, %v1447
        %v1461 = vmul.f32 %v1437, %v1451
        %v1462 = vmul.f32 %v1438, %v1451
        %v1463 = vmul.f32 %v1439, %v1455
        %v1464 = vmul.f32 %v1440, %v1455
        %v1465 = vadd.f32 %v1401, %v1457
        %v1466 = vadd.f32 %v1402, %v1458
        %v1467 = vadd.f32 %v1403, %v1459
        %v1468 = vadd.f32 %v1404, %v1460
        %v1469 = vadd.f32 %v1405, %v1461
        %v1470 = vadd.f32 %v1406, %v1462
        %v1471 = vadd.f32 %v1407, %v1463
        %v1472 = vadd.f32 %v1408, %v1464
        %1473 = vset.pattern.permute.xlu0 4
        %1474 = vperm.xlu0 %1473, %v1209
        %v1475 = vpop.permute.xlu0 %1474
        %1477 = vset.pattern.permute.xlu0 4
        %1478 = vperm.xlu0 %1477, %v1210
        %v1479 = vpop.permute.xlu0 %1478
        %1481 = vset.pattern.permute.xlu0 4
        %1482 = vperm.xlu0 %1481, %v1211
        %v1483 = vpop.permute.xlu0 %1482
        %1485 = vset.pattern.permute.xlu0 4
        %1486 = vperm.xlu0 %1485, %v1212
        %v1487 = vpop.permute.xlu0 %1486
        %v1489 = vmul.f32 %v494, %v1475
        %v1490 = vmul.f32 %v496, %v1475
        %v1491 = vmul.f32 %v498, %v1479
        %v1492 = vmul.f32 %v500, %v1479
        %v1493 = vmul.f32 %v504, %v1483
        %v1494 = vmul.f32 %v506, %v1483
        %v1495 = vmul.f32 %v508, %v1487
        %v1496 = vmul.f32 %v510, %v1487
        %v1497 = vadd.f32 %v1465, %v1489
        %v1498 = vadd.f32 %v1466, %v1490
        %v1499 = vadd.f32 %v1467, %v1491
        %v1500 = vadd.f32 %v1468, %v1492
        %v1501 = vadd.f32 %v1469, %v1493
        %v1502 = vadd.f32 %v1470, %v1494
        %v1503 = vadd.f32 %v1471, %v1495
        %v1504 = vadd.f32 %v1472, %v1496
        %1505 = vrot.lane.b32.xlu0 %v494, 127
        %v1506 = vpop.permute.xlu0 %1505
        %1507 = vrot.lane.b32.xlu0 %v498, 127
        %v1508 = vpop.permute.xlu0 %1507
        %1509 = vrot.lane.b32.xlu0 %v504, 127
        %v1510 = vpop.permute.xlu0 %1509
        %1511 = vrot.lane.b32.xlu0 %v508, 127
        %v1512 = vpop.permute.xlu0 %1511
        %1513 = vrot.lane.b32.xlu0 %v496, 127
        %v1514 = vpop.permute.xlu0 %1513
        %1515 = vrot.lane.b32.xlu0 %v500, 127
        %v1516 = vpop.permute.xlu0 %1515
        %1517 = vrot.lane.b32.xlu0 %v506, 127
        %v1518 = vpop.permute.xlu0 %1517
        %1519 = vrot.lane.b32.xlu0 %v510, 127
        %v1520 = vpop.permute.xlu0 %1519
        %v1521 = vsel %vm881, %v1506, %v1514
        %v1522 = vsel %vm881, %v1508, %v1516
        %v1523 = vsel %vm881, %v1510, %v1518
        %v1524 = vsel %vm881, %v1512, %v1520
        %v1525 = vsel %vm881, %v1514, %v1506
        %v1526 = vsel %vm881, %v1516, %v1508
        %v1527 = vsel %vm881, %v1518, %v1510
        %v1528 = vsel %vm881, %v1520, %v1512
        %v1529 = vmul.f32 %v1521, %v896
        %v1530 = vmul.f32 %v1525, %v900
        %v1531 = vmul.f32 %v1522, %v896
        %v1532 = vmul.f32 %v1526, %v900
        %v1533 = vmul.f32 %v1523, %v896
        %v1534 = vmul.f32 %v1527, %v900
        %v1535 = vmul.f32 %v1524, %v896
        %v1536 = vmul.f32 %v1528, %v900
        %1537 = vset.pattern.permute.xlu0 5
        %1538 = vperm.xlu0 %1537, %v1209
        %v1539 = vpop.permute.xlu0 %1538
        %1541 = vset.pattern.permute.xlu0 5
        %1542 = vperm.xlu0 %1541, %v1210
        %v1543 = vpop.permute.xlu0 %1542
        %1545 = vset.pattern.permute.xlu0 5
        %1546 = vperm.xlu0 %1545, %v1211
        %v1547 = vpop.permute.xlu0 %1546
        %1549 = vset.pattern.permute.xlu0 5
        %1550 = vperm.xlu0 %1549, %v1212
        %v1551 = vpop.permute.xlu0 %1550
        %v1553 = vmul.f32 %v1529, %v1539
        %v1554 = vmul.f32 %v1530, %v1539
        %v1555 = vmul.f32 %v1531, %v1543
        %v1556 = vmul.f32 %v1532, %v1543
        %v1557 = vmul.f32 %v1533, %v1547
        %v1558 = vmul.f32 %v1534, %v1547
        %v1559 = vmul.f32 %v1535, %v1551
        %v1560 = vmul.f32 %v1536, %v1551
        %v1561 = vadd.f32 %v1497, %v1553
        %v1562 = vadd.f32 %v1498, %v1554
        %v1563 = vadd.f32 %v1499, %v1555
        %v1564 = vadd.f32 %v1500, %v1556
        %v1565 = vadd.f32 %v1501, %v1557
        %v1566 = vadd.f32 %v1502, %v1558
        %v1567 = vadd.f32 %v1503, %v1559
        %v1568 = vadd.f32 %v1504, %v1560
        %1569 = vrot.lane.b32.xlu0 %v494, 113
        %v1570 = vpop.permute.xlu0 %1569
        %1571 = vrot.lane.b32.xlu0 %v498, 113
        %v1572 = vpop.permute.xlu0 %1571
        %1573 = vrot.lane.b32.xlu0 %v504, 113
        %v1574 = vpop.permute.xlu0 %1573
        %1575 = vrot.lane.b32.xlu0 %v508, 113
        %v1576 = vpop.permute.xlu0 %1575
        %1577 = vrot.lane.b32.xlu0 %v496, 113
        %v1578 = vpop.permute.xlu0 %1577
        %1579 = vrot.lane.b32.xlu0 %v500, 113
        %v1580 = vpop.permute.xlu0 %1579
        %1581 = vrot.lane.b32.xlu0 %v506, 113
        %v1582 = vpop.permute.xlu0 %1581
        %1583 = vrot.lane.b32.xlu0 %v510, 113
        %v1584 = vpop.permute.xlu0 %1583
        %v1585 = vsel %vm959, %v1570, %v1578
        %v1586 = vsel %vm959, %v1572, %v1580
        %v1587 = vsel %vm959, %v1574, %v1582
        %v1588 = vsel %vm959, %v1576, %v1584
        %v1589 = vsel %vm959, %v1578, %v1570
        %v1590 = vsel %vm959, %v1580, %v1572
        %v1591 = vsel %vm959, %v1582, %v1574
        %v1592 = vsel %vm959, %v1584, %v1576
        %v1593 = vmul.f32 %v1585, %v974
        %v1594 = vmul.f32 %v1589, %v978
        %v1595 = vmul.f32 %v1586, %v974
        %v1596 = vmul.f32 %v1590, %v978
        %v1597 = vmul.f32 %v1587, %v974
        %v1598 = vmul.f32 %v1591, %v978
        %v1599 = vmul.f32 %v1588, %v974
        %v1600 = vmul.f32 %v1592, %v978
        %1601 = vset.pattern.permute.xlu0 6
        %1602 = vperm.xlu0 %1601, %v1209
        %v1603 = vpop.permute.xlu0 %1602
        %1605 = vset.pattern.permute.xlu0 6
        %1606 = vperm.xlu0 %1605, %v1210
        %v1607 = vpop.permute.xlu0 %1606
        %1609 = vset.pattern.permute.xlu0 6
        %1610 = vperm.xlu0 %1609, %v1211
        %v1611 = vpop.permute.xlu0 %1610
        %1613 = vset.pattern.permute.xlu0 6
        %1614 = vperm.xlu0 %1613, %v1212
        %v1615 = vpop.permute.xlu0 %1614
        %v1617 = vmul.f32 %v1593, %v1603
        %v1618 = vmul.f32 %v1594, %v1603
        %v1619 = vmul.f32 %v1595, %v1607
        %v1620 = vmul.f32 %v1596, %v1607
        %v1621 = vmul.f32 %v1597, %v1611
        %v1622 = vmul.f32 %v1598, %v1611
        %v1623 = vmul.f32 %v1599, %v1615
        %v1624 = vmul.f32 %v1600, %v1615
        %v1625 = vadd.f32 %v1561, %v1617
        %v1626 = vadd.f32 %v1562, %v1618
        %v1627 = vadd.f32 %v1563, %v1619
        %v1628 = vadd.f32 %v1564, %v1620
        %v1629 = vadd.f32 %v1565, %v1621
        %v1630 = vadd.f32 %v1566, %v1622
        %v1631 = vadd.f32 %v1567, %v1623
        %v1632 = vadd.f32 %v1568, %v1624
        %1633 = vrot.lane.b32.xlu0 %v494, 112
        %v1634 = vpop.permute.xlu0 %1633
        %1635 = vrot.lane.b32.xlu0 %v498, 112
        %v1636 = vpop.permute.xlu0 %1635
        %1637 = vrot.lane.b32.xlu0 %v504, 112
        %v1638 = vpop.permute.xlu0 %1637
        %1639 = vrot.lane.b32.xlu0 %v508, 112
        %v1640 = vpop.permute.xlu0 %1639
        %1641 = vrot.lane.b32.xlu0 %v496, 112
        %v1642 = vpop.permute.xlu0 %1641
        %1643 = vrot.lane.b32.xlu0 %v500, 112
        %v1644 = vpop.permute.xlu0 %1643
        %1645 = vrot.lane.b32.xlu0 %v506, 112
        %v1646 = vpop.permute.xlu0 %1645
        %1647 = vrot.lane.b32.xlu0 %v510, 112
        %v1648 = vpop.permute.xlu0 %1647
        %v1649 = vsel %vm1037, %v1634, %v1642
        %v1650 = vsel %vm1037, %v1636, %v1644
        %v1651 = vsel %vm1037, %v1638, %v1646
        %v1652 = vsel %vm1037, %v1640, %v1648
        %v1653 = vsel %vm1037, %v1642, %v1634
        %v1654 = vsel %vm1037, %v1644, %v1636
        %v1655 = vsel %vm1037, %v1646, %v1638
        %v1656 = vsel %vm1037, %v1648, %v1640
        %v1657 = vmul.f32 %v1649, %v1052
        %v1658 = vmul.f32 %v1653, %v1056
        %v1659 = vmul.f32 %v1650, %v1052
        %v1660 = vmul.f32 %v1654, %v1056
        %v1661 = vmul.f32 %v1651, %v1052
        %v1662 = vmul.f32 %v1655, %v1056
        %v1663 = vmul.f32 %v1652, %v1052
        %v1664 = vmul.f32 %v1656, %v1056
        %1665 = vset.pattern.permute.xlu0 7
        %1666 = vperm.xlu0 %1665, %v1209
        %v1667 = vpop.permute.xlu0 %1666
        %1669 = vset.pattern.permute.xlu0 7
        %1670 = vperm.xlu0 %1669, %v1210
        %v1671 = vpop.permute.xlu0 %1670
        %1673 = vset.pattern.permute.xlu0 7
        %1674 = vperm.xlu0 %1673, %v1211
        %v1675 = vpop.permute.xlu0 %1674
        %1677 = vset.pattern.permute.xlu0 7
        %1678 = vperm.xlu0 %1677, %v1212
        %v1679 = vpop.permute.xlu0 %1678
        %v1681 = vmul.f32 %v1657, %v1667
        %v1682 = vmul.f32 %v1658, %v1667
        %v1683 = vmul.f32 %v1659, %v1671
        %v1684 = vmul.f32 %v1660, %v1671
        %v1685 = vmul.f32 %v1661, %v1675
        %v1686 = vmul.f32 %v1662, %v1675
        %v1687 = vmul.f32 %v1663, %v1679
        %v1688 = vmul.f32 %v1664, %v1679
        %v1689 = vadd.f32 %v1625, %v1681
        %v1690 = vadd.f32 %v1626, %v1682
        %v1691 = vadd.f32 %v1627, %v1683
        %v1692 = vadd.f32 %v1628, %v1684
        %v1693 = vadd.f32 %v1629, %v1685
        %v1694 = vadd.f32 %v1630, %v1686
        %v1695 = vadd.f32 %v1631, %v1687
        %v1696 = vadd.f32 %v1632, %v1688
        %1697 = vrot.lane.b32.xlu0 %v494, 111
        %v1698 = vpop.permute.xlu0 %1697
        %1699 = vrot.lane.b32.xlu0 %v498, 111
        %v1700 = vpop.permute.xlu0 %1699
        %1701 = vrot.lane.b32.xlu0 %v504, 111
        %v1702 = vpop.permute.xlu0 %1701
        %1703 = vrot.lane.b32.xlu0 %v508, 111
        %v1704 = vpop.permute.xlu0 %1703
        %1705 = vrot.lane.b32.xlu0 %v496, 111
        %v1706 = vpop.permute.xlu0 %1705
        %1707 = vrot.lane.b32.xlu0 %v500, 111
        %v1708 = vpop.permute.xlu0 %1707
        %1709 = vrot.lane.b32.xlu0 %v506, 111
        %v1710 = vpop.permute.xlu0 %1709
        %1711 = vrot.lane.b32.xlu0 %v510, 111
        %v1712 = vpop.permute.xlu0 %1711
        %v1713 = vsel %vm1115, %v1698, %v1706
        %v1714 = vsel %vm1115, %v1700, %v1708
        %v1715 = vsel %vm1115, %v1702, %v1710
        %v1716 = vsel %vm1115, %v1704, %v1712
        %v1717 = vsel %vm1115, %v1706, %v1698
        %v1718 = vsel %vm1115, %v1708, %v1700
        %v1719 = vsel %vm1115, %v1710, %v1702
        %v1720 = vsel %vm1115, %v1712, %v1704
        %v1721 = vmul.f32 %v1713, %v1130
        %v1722 = vmul.f32 %v1717, %v1134
        %v1723 = vmul.f32 %v1714, %v1130
        %v1724 = vmul.f32 %v1718, %v1134
        %v1725 = vmul.f32 %v1715, %v1130
        %v1726 = vmul.f32 %v1719, %v1134
        %v1727 = vmul.f32 %v1716, %v1130
        %v1728 = vmul.f32 %v1720, %v1134
        %1729 = vset.pattern.permute.xlu0 8
        %1730 = vperm.xlu0 %1729, %v1209
        %v1731 = vpop.permute.xlu0 %1730
        %1733 = vset.pattern.permute.xlu0 8
        %1734 = vperm.xlu0 %1733, %v1210
        %v1735 = vpop.permute.xlu0 %1734
        %1737 = vset.pattern.permute.xlu0 8
        %1738 = vperm.xlu0 %1737, %v1211
        %v1739 = vpop.permute.xlu0 %1738
        %1741 = vset.pattern.permute.xlu0 8
        %1742 = vperm.xlu0 %1741, %v1212
        %v1743 = vpop.permute.xlu0 %1742
        %v1745 = vmul.f32 %v1721, %v1731
        %v1746 = vmul.f32 %v1722, %v1731
        %v1747 = vmul.f32 %v1723, %v1735
        %v1748 = vmul.f32 %v1724, %v1735
        %v1749 = vmul.f32 %v1725, %v1739
        %v1750 = vmul.f32 %v1726, %v1739
        %v1751 = vmul.f32 %v1727, %v1743
        %v1752 = vmul.f32 %v1728, %v1743
        %v1753 = vadd.f32 %v1689, %v1745
        %v1754 = vadd.f32 %v1690, %v1746
        %v1755 = vadd.f32 %v1691, %v1747
        %v1756 = vadd.f32 %v1692, %v1748
        %v1757 = vadd.f32 %v1693, %v1749
        %v1758 = vadd.f32 %v1694, %v1750
        %v1759 = vadd.f32 %v1695, %v1751
        %v1760 = vadd.f32 %v1696, %v1752
        %v1761 = vld [vmem:[%s6] sm:$0xff]
        %v1762 = vld [vmem:[%s6 + $0x8] sm:$0xff]
        %v1763 = vld [vmem:[%s6 + $0x10] sm:$0xff]
        %v1764 = vld [vmem:[%s6 + $0x18] sm:$0xff]
        %1766 = vset.pattern.permute.xlu0 0
        %1767 = vperm.xlu0 %1766, %v1761
        %v1768 = vpop.permute.xlu0 %1767
        %1771 = vset.pattern.permute.xlu0 0
        %1772 = vperm.xlu0 %1771, %v1762
        %v1773 = vpop.permute.xlu0 %1772
        %1776 = vset.pattern.permute.xlu0 0
        %1777 = vperm.xlu0 %1776, %v1763
        %v1778 = vpop.permute.xlu0 %1777
        %1781 = vset.pattern.permute.xlu0 0
        %1782 = vperm.xlu0 %1781, %v1764
        %v1783 = vpop.permute.xlu0 %1782
        %v1785 = vadd.f32 %v1753, %v1768
        %v1786 = vadd.f32 %v1754, %v1768
        %v1787 = vadd.f32 %v1755, %v1773
        %v1788 = vadd.f32 %v1756, %v1773
        %v1789 = vadd.f32 %v1757, %v1778
        %v1790 = vadd.f32 %v1758, %v1778
        %v1791 = vadd.f32 %v1759, %v1783
        %v1792 = vadd.f32 %v1760, %v1783
        %v1793 = vmul.f32 %v1201, 0.5
        %v1794 = vmul.f32 %v1202, 0.5
        %v1795 = vmul.f32 %v1203, 0.5
        %v1796 = vmul.f32 %v1204, 0.5
        %v1797 = vmul.f32 %v1205, 0.5
        %v1798 = vmul.f32 %v1206, 0.5
        %v1799 = vmul.f32 %v1207, 0.5
        %v1800 = vmul.f32 %v1208, 0.5
        %v1801 = vmul.f32 %v1201, 0.70710677
        %v1802 = vmul.f32 %v1202, 0.70710677
        %v1803 = vmul.f32 %v1203, 0.70710677
        %v1804 = vmul.f32 %v1204, 0.70710677
        %v1805 = vmul.f32 %v1205, 0.70710677
        %v1806 = vmul.f32 %v1206, 0.70710677
        %v1807 = vmul.f32 %v1207, 0.70710677
        %v1808 = vmul.f32 %v1208, 0.70710677
        %v1809 = verf.f32.pop %v1801
        %v1810 = verf.f32.pop %v1802
        %v1811 = verf.f32.pop %v1803
        %v1812 = verf.f32.pop %v1804
        %v1813 = verf.f32.pop %v1805
        %v1814 = verf.f32.pop %v1806
        %v1815 = verf.f32.pop %v1807
        %v1816 = verf.f32.pop %v1808
        %v1817 = vadd.f32 %v1809, 1.0
        %v1818 = vadd.f32 %v1810, 1.0
        %v1819 = vadd.f32 %v1811, 1.0
        %v1820 = vadd.f32 %v1812, 1.0
        %v1821 = vadd.f32 %v1813, 1.0
        %v1822 = vadd.f32 %v1814, 1.0
        %v1823 = vadd.f32 %v1815, 1.0
        %v1824 = vadd.f32 %v1816, 1.0
        %v1825 = vmul.f32 %v1793, %v1817
        %v1826 = vmul.f32 %v1794, %v1818
        %v1827 = vmul.f32 %v1795, %v1819
        %v1828 = vmul.f32 %v1796, %v1820
        %v1829 = vmul.f32 %v1797, %v1821
        %v1830 = vmul.f32 %v1798, %v1822
        %v1831 = vmul.f32 %v1799, %v1823
        %v1832 = vmul.f32 %v1800, %v1824
        %v1833 = vmul.f32 %v1825, %v1785
        %v1834 = vmul.f32 %v1826, %v1786
        %v1835 = vmul.f32 %v1827, %v1787
        %v1836 = vmul.f32 %v1828, %v1788
        %v1837 = vmul.f32 %v1829, %v1789
        %v1838 = vmul.f32 %v1830, %v1790
        %v1839 = vmul.f32 %v1831, %v1791
        %v1840 = vmul.f32 %v1832, %v1792
        %v1841 = vpack.c.bf16 %v1835, %v1833
        %v1842 = vpack.c.bf16 %v1836, %v1834
        %v1843 = vpack.c.bf16 %v1839, %v1837
        %v1844 = vpack.c.bf16 %v1840, %v1838
        %1845 = vst [vmem:[#allocation2] sm:$0xff] %v1841
        %1846 = vst [vmem:[#allocation2 + $0x8] sm:$0xff] %v1842
        %1847 = vst [vmem:[#allocation2 + $0x10] sm:$0xff] %v1843
        %1848 = vst [vmem:[#allocation2 + $0x18] sm:$0xff] %v1844
        %v1849 = vld [vmem:[%s1 + $0x10] sm:$0xf]
        %v1850 = vld [vmem:[%s1 + $0x14] sm:$0xf]
        %v1851 = vld [vmem:[%s1 + $0x18] sm:$0xf]
        %v1852 = vld [vmem:[%s1 + $0x1c] sm:$0xf]
        %v1857 = vunpack.c.l.b16 %v1849
        %v1858 = vunpack.c.l.b16 %v1850
        %v1859 = vunpack.c.l.b16 %v1851
        %v1860 = vunpack.c.l.b16 %v1852
        %v1861 = vpack.c.b16 %v1858, %v1857
        %v1862 = vpack.c.b16 %v1860, %v1859
        %v1864 = vsel %vm379, %v1861, 0
        %v1867 = vsel %vm379, %v1862, 0
        %1869 = vmatprep.subr.bf16.mxu0 %v364
        %1870 = vmatpush1.bf16.msra.mxu0 %v363
        %1871 = vmatprep.subr.bf16.mxu0 0
        %1872 = vmatpush1.bf16.msra.mxu0 0
        %1873 = vmatprep.subr.bf16.mxu0 0
        %1874 = vmatpush1.bf16.msra.mxu0 0
        %1875 = vmatprep.subr.bf16.mxu0 0
        %1876 = vmatpush1.bf16.msra.mxu0 0
        %1877 = vmatprep.subr.bf16.mxu0 0
        %1878 = vmatpush1.bf16.msra.mxu0 0
        %1879 = vmatprep.subr.bf16.mxu0 0
        %1880 = vmatpush1.bf16.msra.mxu0 0
        %1881 = vmatprep.subr.bf16.mxu0 0
        %1882 = vmatpush1.bf16.msra.mxu0 0
        %1883 = vmatprep.subr.bf16.mxu0 0
        %1884 = vmatpush1.bf16.msra.mxu0 0
        %1885 = vmatprep.subr.bf16.mxu0 0
        %1886 = vmatpush1.bf16.msra.mxu0 0
        %1887 = vmatprep.subr.bf16.mxu0 0
        %1888 = vmatpush1.bf16.msra.mxu0 0
        %1889 = vmatprep.subr.bf16.mxu0 0
        %1890 = vmatpush1.bf16.msra.mxu0 0
        %1891 = vmatprep.subr.bf16.mxu0 0
        %1892 = vmatpush1.bf16.msra.mxu0 0
        %1893 = vmatprep.subr.bf16.mxu0 0
        %1894 = vmatpush1.bf16.msra.mxu0 0
        %1895 = vmatprep.subr.bf16.mxu0 0
        %1896 = vmatpush1.bf16.msra.mxu0 0
        %1897 = vmatprep.subr.bf16.mxu0 0
        %1898 = vmatpush1.bf16.msra.mxu0 0
        %1899 = vmatprep.subr.bf16.mxu0 0
        %1900 = vmatpush1.bf16.msra.mxu0 0
        %1901 = vmatprep.mubr.bf16.mxu0 0
        %1902 = vmatmul.mubr.bf16.gmra.mrb[0].mxu0 %v1864
        %v1903 = vpop.f32.mrb[0].mxu0
        %v1904 = vadd.f32 0.0, %v1903
        %v1905 = vpop.f32.mrb[0].mxu0
        %v1906 = vadd.f32 0.0, %v1905
        %v1907 = vpop.f32.mrb[0].mxu0
        %v1908 = vadd.f32 0.0, %v1907
        %v1909 = vpop.f32.mrb[0].mxu0
        %v1910 = vadd.f32 0.0, %v1909
        %1911 = vmatprep.mubr.bf16.mxu0 0
        %1912 = vmatmul.mubr.bf16.gmra.mrb[0].mxu0 %v1867
        %v1913 = vpop.f32.mrb[0].mxu0
        %v1914 = vadd.f32 0.0, %v1913
        %v1915 = vpop.f32.mrb[0].mxu0
        %v1916 = vadd.f32 0.0, %v1915
        %v1917 = vpop.f32.mrb[0].mxu0
        %v1918 = vadd.f32 0.0, %v1917
        %v1919 = vpop.f32.mrb[0].mxu0
        %v1920 = vadd.f32 0.0, %v1919
        %1921 = vdwg.mxu0
        %v1922 = vld [vmem:[%s2 + $0x10] sm:$0xf]
        %v1923 = vld [vmem:[%s2 + $0x14] sm:$0xf]
        %v1924 = vld [vmem:[%s2 + $0x18] sm:$0xf]
        %v1925 = vld [vmem:[%s2 + $0x1c] sm:$0xf]
        %v1930 = vunpack.c.l.b16 %v1922
        %v1931 = vunpack.c.l.b16 %v1923
        %v1932 = vunpack.c.l.b16 %v1924
        %v1933 = vunpack.c.l.b16 %v1925
        %v1934 = vpack.c.b16 %v1931, %v1930
        %v1935 = vpack.c.b16 %v1933, %v1932
        %v1937 = vsel %vm379, %v1934, 0
        %v1940 = vsel %vm379, %v1935, 0
        %1942 = vmatprep.subr.bf16.mxu0 %v364
        %1943 = vmatpush1.bf16.msra.mxu0 %v363
        %1944 = vmatprep.subr.bf16.mxu0 0
        %1945 = vmatpush1.bf16.msra.mxu0 0
        %1946 = vmatprep.subr.bf16.mxu0 0
        %1947 = vmatpush1.bf16.msra.mxu0 0
        %1948 = vmatprep.subr.bf16.mxu0 0
        %1949 = vmatpush1.bf16.msra.mxu0 0
        %1950 = vmatprep.subr.bf16.mxu0 0
        %1951 = vmatpush1.bf16.msra.mxu0 0
        %1952 = vmatprep.subr.bf16.mxu0 0
        %1953 = vmatpush1.bf16.msra.mxu0 0
        %1954 = vmatprep.subr.bf16.mxu0 0
        %1955 = vmatpush1.bf16.msra.mxu0 0
        %1956 = vmatprep.subr.bf16.mxu0 0
        %1957 = vmatpush1.bf16.msra.mxu0 0
        %1958 = vmatprep.subr.bf16.mxu0 0
        %1959 = vmatpush1.bf16.msra.mxu0 0
        %1960 = vmatprep.subr.bf16.mxu0 0
        %1961 = vmatpush1.bf16.msra.mxu0 0
        %1962 = vmatprep.subr.bf16.mxu0 0
        %1963 = vmatpush1.bf16.msra.mxu0 0
        %1964 = vmatprep.subr.bf16.mxu0 0
        %1965 = vmatpush1.bf16.msra.mxu0 0
        %1966 = vmatprep.subr.bf16.mxu0 0
        %1967 = vmatpush1.bf16.msra.mxu0 0
        %1968 = vmatprep.subr.bf16.mxu0 0
        %1969 = vmatpush1.bf16.msra.mxu0 0
        %1970 = vmatprep.subr.bf16.mxu0 0
        %1971 = vmatpush1.bf16.msra.mxu0 0
        %1972 = vmatprep.subr.bf16.mxu0 0
        %1973 = vmatpush1.bf16.msra.mxu0 0
        %1974 = vmatprep.mubr.bf16.mxu0 0
        %1975 = vmatmul.mubr.bf16.gmra.mrb[0].mxu0 %v1937
        %v1976 = vpop.f32.mrb[0].mxu0
        %v1977 = vadd.f32 0.0, %v1976
        %v1978 = vpop.f32.mrb[0].mxu0
        %v1979 = vadd.f32 0.0, %v1978
        %v1980 = vpop.f32.mrb[0].mxu0
        %v1981 = vadd.f32 0.0, %v1980
        %v1982 = vpop.f32.mrb[0].mxu0
        %v1983 = vadd.f32 0.0, %v1982
        %1984 = vmatprep.mubr.bf16.mxu0 0
        %1985 = vmatmul.mubr.bf16.gmra.mrb[0].mxu0 %v1940
        %v1986 = vpop.f32.mrb[0].mxu0
        %v1987 = vadd.f32 0.0, %v1986
        %v1988 = vpop.f32.mrb[0].mxu0
        %v1989 = vadd.f32 0.0, %v1988
        %v1990 = vpop.f32.mrb[0].mxu0
        %v1991 = vadd.f32 0.0, %v1990
        %v1992 = vpop.f32.mrb[0].mxu0
        %v1993 = vadd.f32 0.0, %v1992
        %1994 = vdwg.mxu0
        %v1995 = vld [vmem:[%s3 + $0x20] sm:$0xff]
        %v1996 = vld [vmem:[%s3 + $0x28] sm:$0xff]
        %v1997 = vld [vmem:[%s3 + $0x30] sm:$0xff]
        %v1998 = vld [vmem:[%s3 + $0x38] sm:$0xff]
        %1999 = vrot.lane.b32.xlu0 %v1904, 17
        %v2000 = vpop.permute.xlu0 %1999
        %2001 = vrot.lane.b32.xlu0 %v1908, 17
        %v2002 = vpop.permute.xlu0 %2001
        %2003 = vrot.lane.b32.xlu0 %v1914, 17
        %v2004 = vpop.permute.xlu0 %2003
        %2005 = vrot.lane.b32.xlu0 %v1918, 17
        %v2006 = vpop.permute.xlu0 %2005
        %2007 = vrot.lane.b32.xlu0 %v1906, 17
        %v2008 = vpop.permute.xlu0 %2007
        %2009 = vrot.lane.b32.xlu0 %v1910, 17
        %v2010 = vpop.permute.xlu0 %2009
        %2011 = vrot.lane.b32.xlu0 %v1916, 17
        %v2012 = vpop.permute.xlu0 %2011
        %2013 = vrot.lane.b32.xlu0 %v1920, 17
        %v2014 = vpop.permute.xlu0 %2013
        %v2015 = vsel %vm534, %v2000, %v2008
        %v2016 = vsel %vm534, %v2002, %v2010
        %v2017 = vsel %vm534, %v2004, %v2012
        %v2018 = vsel %vm534, %v2006, %v2014
        %v2019 = vsel %vm534, %v2008, %v2000
        %v2020 = vsel %vm534, %v2010, %v2002
        %v2021 = vsel %vm534, %v2012, %v2004
        %v2022 = vsel %vm534, %v2014, %v2006
        %v2023 = vld [vmem:[%s9] ss:$8 sm:$0x3]
        %v2025 = vlaneseq
        %v2026 = vshrl.u32 %v2025, 7
        %v2027 = vsub.s32 0, %v2026
        %v2028 = vrot.slane %v2023, %v2027
        %v2029 = vlaneseq
        %v2030 = vshrl.u32 %v2029, 7
        %v2031 = vsub.s32 1, %v2030
        %v2032 = vrot.slane %v2023, %v2031
        %v2035 = vmul.f32 %v2019, %v2028
        %v2036 = vmul.f32 %v2015, %v2032
        %v2037 = vmul.f32 %v2020, %v2028
        %v2038 = vmul.f32 %v2016, %v2032
        %v2039 = vmul.f32 %v2021, %v2028
        %v2040 = vmul.f32 %v2017, %v2032
        %v2041 = vmul.f32 %v2022, %v2028
        %v2042 = vmul.f32 %v2018, %v2032
        %2044 = vset.pattern.permute.xlu0 0
        %2045 = vperm.xlu0 %2044, %v1995
        %v2046 = vpop.permute.xlu0 %2045
        %2049 = vset.pattern.permute.xlu0 0
        %2050 = vperm.xlu0 %2049, %v1996
        %v2051 = vpop.permute.xlu0 %2050
        %2054 = vset.pattern.permute.xlu0 0
        %2055 = vperm.xlu0 %2054, %v1997
        %v2056 = vpop.permute.xlu0 %2055
        %2059 = vset.pattern.permute.xlu0 0
        %2060 = vperm.xlu0 %2059, %v1998
        %v2061 = vpop.permute.xlu0 %2060
        %v2063 = vmul.f32 %v2035, %v2046
        %v2064 = vmul.f32 %v2036, %v2046
        %v2065 = vmul.f32 %v2037, %v2051
        %v2066 = vmul.f32 %v2038, %v2051
        %v2067 = vmul.f32 %v2039, %v2056
        %v2068 = vmul.f32 %v2040, %v2056
        %v2069 = vmul.f32 %v2041, %v2061
        %v2070 = vmul.f32 %v2042, %v2061
        %v2071 = vadd.f32 %v2063, 0.0
        %v2072 = vadd.f32 %v2064, 0.0
        %v2073 = vadd.f32 %v2065, 0.0
        %v2074 = vadd.f32 %v2066, 0.0
        %v2075 = vadd.f32 %v2067, 0.0
        %v2076 = vadd.f32 %v2068, 0.0
        %v2077 = vadd.f32 %v2069, 0.0
        %v2078 = vadd.f32 %v2070, 0.0
        %2079 = vrot.lane.b32.xlu0 %v1904, 16
        %v2080 = vpop.permute.xlu0 %2079
        %2081 = vrot.lane.b32.xlu0 %v1908, 16
        %v2082 = vpop.permute.xlu0 %2081
        %2083 = vrot.lane.b32.xlu0 %v1914, 16
        %v2084 = vpop.permute.xlu0 %2083
        %2085 = vrot.lane.b32.xlu0 %v1918, 16
        %v2086 = vpop.permute.xlu0 %2085
        %2087 = vrot.lane.b32.xlu0 %v1906, 16
        %v2088 = vpop.permute.xlu0 %2087
        %2089 = vrot.lane.b32.xlu0 %v1910, 16
        %v2090 = vpop.permute.xlu0 %2089
        %2091 = vrot.lane.b32.xlu0 %v1916, 16
        %v2092 = vpop.permute.xlu0 %2091
        %2093 = vrot.lane.b32.xlu0 %v1920, 16
        %v2094 = vpop.permute.xlu0 %2093
        %v2095 = vsel %vm615, %v2080, %v2088
        %v2096 = vsel %vm615, %v2082, %v2090
        %v2097 = vsel %vm615, %v2084, %v2092
        %v2098 = vsel %vm615, %v2086, %v2094
        %v2099 = vsel %vm615, %v2088, %v2080
        %v2100 = vsel %vm615, %v2090, %v2082
        %v2101 = vsel %vm615, %v2092, %v2084
        %v2102 = vsel %vm615, %v2094, %v2086
        %v2103 = vld [vmem:[%s624] ss:$8 sm:$0x3]
        %v2105 = vlaneseq
        %v2106 = vshrl.u32 %v2105, 7
        %v2107 = vsub.s32 0, %v2106
        %v2108 = vrot.slane %v2103, %v2107
        %v2109 = vlaneseq
        %v2110 = vshrl.u32 %v2109, 7
        %v2111 = vsub.s32 1, %v2110
        %v2112 = vrot.slane %v2103, %v2111
        %v2115 = vmul.f32 %v2099, %v2108
        %v2116 = vmul.f32 %v2095, %v2112
        %v2117 = vmul.f32 %v2100, %v2108
        %v2118 = vmul.f32 %v2096, %v2112
        %v2119 = vmul.f32 %v2101, %v2108
        %v2120 = vmul.f32 %v2097, %v2112
        %v2121 = vmul.f32 %v2102, %v2108
        %v2122 = vmul.f32 %v2098, %v2112
        %2123 = vset.pattern.permute.xlu0 1
        %2124 = vperm.xlu0 %2123, %v1995
        %v2125 = vpop.permute.xlu0 %2124
        %2127 = vset.pattern.permute.xlu0 1
        %2128 = vperm.xlu0 %2127, %v1996
        %v2129 = vpop.permute.xlu0 %2128
        %2131 = vset.pattern.permute.xlu0 1
        %2132 = vperm.xlu0 %2131, %v1997
        %v2133 = vpop.permute.xlu0 %2132
        %2135 = vset.pattern.permute.xlu0 1
        %2136 = vperm.xlu0 %2135, %v1998
        %v2137 = vpop.permute.xlu0 %2136
        %v2139 = vmul.f32 %v2115, %v2125
        %v2140 = vmul.f32 %v2116, %v2125
        %v2141 = vmul.f32 %v2117, %v2129
        %v2142 = vmul.f32 %v2118, %v2129
        %v2143 = vmul.f32 %v2119, %v2133
        %v2144 = vmul.f32 %v2120, %v2133
        %v2145 = vmul.f32 %v2121, %v2137
        %v2146 = vmul.f32 %v2122, %v2137
        %v2147 = vadd.f32 %v2071, %v2139
        %v2148 = vadd.f32 %v2072, %v2140
        %v2149 = vadd.f32 %v2073, %v2141
        %v2150 = vadd.f32 %v2074, %v2142
        %v2151 = vadd.f32 %v2075, %v2143
        %v2152 = vadd.f32 %v2076, %v2144
        %v2153 = vadd.f32 %v2077, %v2145
        %v2154 = vadd.f32 %v2078, %v2146
        %2155 = vrot.lane.b32.xlu0 %v1904, 15
        %v2156 = vpop.permute.xlu0 %2155
        %2157 = vrot.lane.b32.xlu0 %v1908, 15
        %v2158 = vpop.permute.xlu0 %2157
        %2159 = vrot.lane.b32.xlu0 %v1914, 15
        %v2160 = vpop.permute.xlu0 %2159
        %2161 = vrot.lane.b32.xlu0 %v1918, 15
        %v2162 = vpop.permute.xlu0 %2161
        %2163 = vrot.lane.b32.xlu0 %v1906, 15
        %v2164 = vpop.permute.xlu0 %2163
        %2165 = vrot.lane.b32.xlu0 %v1910, 15
        %v2166 = vpop.permute.xlu0 %2165
        %2167 = vrot.lane.b32.xlu0 %v1916, 15
        %v2168 = vpop.permute.xlu0 %2167
        %2169 = vrot.lane.b32.xlu0 %v1920, 15
        %v2170 = vpop.permute.xlu0 %2169
        %v2171 = vsel %vm693, %v2156, %v2164
        %v2172 = vsel %vm693, %v2158, %v2166
        %v2173 = vsel %vm693, %v2160, %v2168
        %v2174 = vsel %vm693, %v2162, %v2170
        %v2175 = vsel %vm693, %v2164, %v2156
        %v2176 = vsel %vm693, %v2166, %v2158
        %v2177 = vsel %vm693, %v2168, %v2160
        %v2178 = vsel %vm693, %v2170, %v2162
        %v2179 = vld [vmem:[%s702] ss:$8 sm:$0x3]
        %v2181 = vlaneseq
        %v2182 = vshrl.u32 %v2181, 7
        %v2183 = vsub.s32 0, %v2182
        %v2184 = vrot.slane %v2179, %v2183
        %v2185 = vlaneseq
        %v2186 = vshrl.u32 %v2185, 7
        %v2187 = vsub.s32 1, %v2186
        %v2188 = vrot.slane %v2179, %v2187
        %v2191 = vmul.f32 %v2175, %v2184
        %v2192 = vmul.f32 %v2171, %v2188
        %v2193 = vmul.f32 %v2176, %v2184
        %v2194 = vmul.f32 %v2172, %v2188
        %v2195 = vmul.f32 %v2177, %v2184
        %v2196 = vmul.f32 %v2173, %v2188
        %v2197 = vmul.f32 %v2178, %v2184
        %v2198 = vmul.f32 %v2174, %v2188
        %2199 = vset.pattern.permute.xlu0 2
        %2200 = vperm.xlu0 %2199, %v1995
        %v2201 = vpop.permute.xlu0 %2200
        %2203 = vset.pattern.permute.xlu0 2
        %2204 = vperm.xlu0 %2203, %v1996
        %v2205 = vpop.permute.xlu0 %2204
        %2207 = vset.pattern.permute.xlu0 2
        %2208 = vperm.xlu0 %2207, %v1997
        %v2209 = vpop.permute.xlu0 %2208
        %2211 = vset.pattern.permute.xlu0 2
        %2212 = vperm.xlu0 %2211, %v1998
        %v2213 = vpop.permute.xlu0 %2212
        %v2215 = vmul.f32 %v2191, %v2201
        %v2216 = vmul.f32 %v2192, %v2201
        %v2217 = vmul.f32 %v2193, %v2205
        %v2218 = vmul.f32 %v2194, %v2205
        %v2219 = vmul.f32 %v2195, %v2209
        %v2220 = vmul.f32 %v2196, %v2209
        %v2221 = vmul.f32 %v2197, %v2213
        %v2222 = vmul.f32 %v2198, %v2213
        %v2223 = vadd.f32 %v2147, %v2215
        %v2224 = vadd.f32 %v2148, %v2216
        %v2225 = vadd.f32 %v2149, %v2217
        %v2226 = vadd.f32 %v2150, %v2218
        %v2227 = vadd.f32 %v2151, %v2219
        %v2228 = vadd.f32 %v2152, %v2220
        %v2229 = vadd.f32 %v2153, %v2221
        %v2230 = vadd.f32 %v2154, %v2222
        %2231 = vrot.lane.b32.xlu0 %v1904, 1
        %v2232 = vpop.permute.xlu0 %2231
        %2233 = vrot.lane.b32.xlu0 %v1908, 1
        %v2234 = vpop.permute.xlu0 %2233
        %2235 = vrot.lane.b32.xlu0 %v1914, 1
        %v2236 = vpop.permute.xlu0 %2235
        %2237 = vrot.lane.b32.xlu0 %v1918, 1
        %v2238 = vpop.permute.xlu0 %2237
        %2239 = vrot.lane.b32.xlu0 %v1906, 1
        %v2240 = vpop.permute.xlu0 %2239
        %2241 = vrot.lane.b32.xlu0 %v1910, 1
        %v2242 = vpop.permute.xlu0 %2241
        %2243 = vrot.lane.b32.xlu0 %v1916, 1
        %v2244 = vpop.permute.xlu0 %2243
        %2245 = vrot.lane.b32.xlu0 %v1920, 1
        %v2246 = vpop.permute.xlu0 %2245
        %v2247 = vsel %vm771, %v2232, %v2240
        %v2248 = vsel %vm771, %v2234, %v2242
        %v2249 = vsel %vm771, %v2236, %v2244
        %v2250 = vsel %vm771, %v2238, %v2246
        %v2251 = vsel %vm771, %v2240, %v2232
        %v2252 = vsel %vm771, %v2242, %v2234
        %v2253 = vsel %vm771, %v2244, %v2236
        %v2254 = vsel %vm771, %v2246, %v2238
        %v2255 = vld [vmem:[%s780] ss:$8 sm:$0x3]
        %v2257 = vlaneseq
        %v2258 = vshrl.u32 %v2257, 7
        %v2259 = vsub.s32 0, %v2258
        %v2260 = vrot.slane %v2255, %v2259
        %v2261 = vlaneseq
        %v2262 = vshrl.u32 %v2261, 7
        %v2263 = vsub.s32 1, %v2262
        %v2264 = vrot.slane %v2255, %v2263
        %v2267 = vmul.f32 %v2251, %v2260
        %v2268 = vmul.f32 %v2247, %v2264
        %v2269 = vmul.f32 %v2252, %v2260
        %v2270 = vmul.f32 %v2248, %v2264
        %v2271 = vmul.f32 %v2253, %v2260
        %v2272 = vmul.f32 %v2249, %v2264
        %v2273 = vmul.f32 %v2254, %v2260
        %v2274 = vmul.f32 %v2250, %v2264
        %2275 = vset.pattern.permute.xlu0 3
        %2276 = vperm.xlu0 %2275, %v1995
        %v2277 = vpop.permute.xlu0 %2276
        %2279 = vset.pattern.permute.xlu0 3
        %2280 = vperm.xlu0 %2279, %v1996
        %v2281 = vpop.permute.xlu0 %2280
        %2283 = vset.pattern.permute.xlu0 3
        %2284 = vperm.xlu0 %2283, %v1997
        %v2285 = vpop.permute.xlu0 %2284
        %2287 = vset.pattern.permute.xlu0 3
        %2288 = vperm.xlu0 %2287, %v1998
        %v2289 = vpop.permute.xlu0 %2288
        %v2291 = vmul.f32 %v2267, %v2277
        %v2292 = vmul.f32 %v2268, %v2277
        %v2293 = vmul.f32 %v2269, %v2281
        %v2294 = vmul.f32 %v2270, %v2281
        %v2295 = vmul.f32 %v2271, %v2285
        %v2296 = vmul.f32 %v2272, %v2285
        %v2297 = vmul.f32 %v2273, %v2289
        %v2298 = vmul.f32 %v2274, %v2289
        %v2299 = vadd.f32 %v2223, %v2291
        %v2300 = vadd.f32 %v2224, %v2292
        %v2301 = vadd.f32 %v2225, %v2293
        %v2302 = vadd.f32 %v2226, %v2294
        %v2303 = vadd.f32 %v2227, %v2295
        %v2304 = vadd.f32 %v2228, %v2296
        %v2305 = vadd.f32 %v2229, %v2297
        %v2306 = vadd.f32 %v2230, %v2298
        %2307 = vset.pattern.permute.xlu0 4
        %2308 = vperm.xlu0 %2307, %v1995
        %v2309 = vpop.permute.xlu0 %2308
        %2311 = vset.pattern.permute.xlu0 4
        %2312 = vperm.xlu0 %2311, %v1996
        %v2313 = vpop.permute.xlu0 %2312
        %2315 = vset.pattern.permute.xlu0 4
        %2316 = vperm.xlu0 %2315, %v1997
        %v2317 = vpop.permute.xlu0 %2316
        %2319 = vset.pattern.permute.xlu0 4
        %2320 = vperm.xlu0 %2319, %v1998
        %v2321 = vpop.permute.xlu0 %2320
        %v2323 = vmul.f32 %v1904, %v2309
        %v2324 = vmul.f32 %v1906, %v2309
        %v2325 = vmul.f32 %v1908, %v2313
        %v2326 = vmul.f32 %v1910, %v2313
        %v2327 = vmul.f32 %v1914, %v2317
        %v2328 = vmul.f32 %v1916, %v2317
        %v2329 = vmul.f32 %v1918, %v2321
        %v2330 = vmul.f32 %v1920, %v2321
        %v2331 = vadd.f32 %v2299, %v2323
        %v2332 = vadd.f32 %v2300, %v2324
        %v2333 = vadd.f32 %v2301, %v2325
        %v2334 = vadd.f32 %v2302, %v2326
        %v2335 = vadd.f32 %v2303, %v2327
        %v2336 = vadd.f32 %v2304, %v2328
        %v2337 = vadd.f32 %v2305, %v2329
        %v2338 = vadd.f32 %v2306, %v2330
        %2339 = vrot.lane.b32.xlu0 %v1904, 127
        %v2340 = vpop.permute.xlu0 %2339
        %2341 = vrot.lane.b32.xlu0 %v1908, 127
        %v2342 = vpop.permute.xlu0 %2341
        %2343 = vrot.lane.b32.xlu0 %v1914, 127
        %v2344 = vpop.permute.xlu0 %2343
        %2345 = vrot.lane.b32.xlu0 %v1918, 127
        %v2346 = vpop.permute.xlu0 %2345
        %2347 = vrot.lane.b32.xlu0 %v1906, 127
        %v2348 = vpop.permute.xlu0 %2347
        %2349 = vrot.lane.b32.xlu0 %v1910, 127
        %v2350 = vpop.permute.xlu0 %2349
        %2351 = vrot.lane.b32.xlu0 %v1916, 127
        %v2352 = vpop.permute.xlu0 %2351
        %2353 = vrot.lane.b32.xlu0 %v1920, 127
        %v2354 = vpop.permute.xlu0 %2353
        %v2355 = vsel %vm881, %v2340, %v2348
        %v2356 = vsel %vm881, %v2342, %v2350
        %v2357 = vsel %vm881, %v2344, %v2352
        %v2358 = vsel %vm881, %v2346, %v2354
        %v2359 = vsel %vm881, %v2348, %v2340
        %v2360 = vsel %vm881, %v2350, %v2342
        %v2361 = vsel %vm881, %v2352, %v2344
        %v2362 = vsel %vm881, %v2354, %v2346
        %v2363 = vld [vmem:[%s890] ss:$8 sm:$0x3]
        %v2365 = vlaneseq
        %v2366 = vshrl.u32 %v2365, 7
        %v2367 = vsub.s32 0, %v2366
        %v2368 = vrot.slane %v2363, %v2367
        %v2369 = vlaneseq
        %v2370 = vshrl.u32 %v2369, 7
        %v2371 = vsub.s32 1, %v2370
        %v2372 = vrot.slane %v2363, %v2371
        %v2375 = vmul.f32 %v2355, %v2368
        %v2376 = vmul.f32 %v2359, %v2372
        %v2377 = vmul.f32 %v2356, %v2368
        %v2378 = vmul.f32 %v2360, %v2372
        %v2379 = vmul.f32 %v2357, %v2368
        %v2380 = vmul.f32 %v2361, %v2372
        %v2381 = vmul.f32 %v2358, %v2368
        %v2382 = vmul.f32 %v2362, %v2372
        %2383 = vset.pattern.permute.xlu0 5
        %2384 = vperm.xlu0 %2383, %v1995
        %v2385 = vpop.permute.xlu0 %2384
        %2387 = vset.pattern.permute.xlu0 5
        %2388 = vperm.xlu0 %2387, %v1996
        %v2389 = vpop.permute.xlu0 %2388
        %2391 = vset.pattern.permute.xlu0 5
        %2392 = vperm.xlu0 %2391, %v1997
        %v2393 = vpop.permute.xlu0 %2392
        %2395 = vset.pattern.permute.xlu0 5
        %2396 = vperm.xlu0 %2395, %v1998
        %v2397 = vpop.permute.xlu0 %2396
        %v2399 = vmul.f32 %v2375, %v2385
        %v2400 = vmul.f32 %v2376, %v2385
        %v2401 = vmul.f32 %v2377, %v2389
        %v2402 = vmul.f32 %v2378, %v2389
        %v2403 = vmul.f32 %v2379, %v2393
        %v2404 = vmul.f32 %v2380, %v2393
        %v2405 = vmul.f32 %v2381, %v2397
        %v2406 = vmul.f32 %v2382, %v2397
        %v2407 = vadd.f32 %v2331, %v2399
        %v2408 = vadd.f32 %v2332, %v2400
        %v2409 = vadd.f32 %v2333, %v2401
        %v2410 = vadd.f32 %v2334, %v2402
        %v2411 = vadd.f32 %v2335, %v2403
        %v2412 = vadd.f32 %v2336, %v2404
        %v2413 = vadd.f32 %v2337, %v2405
        %v2414 = vadd.f32 %v2338, %v2406
        %2415 = vrot.lane.b32.xlu0 %v1904, 113
        %v2416 = vpop.permute.xlu0 %2415
        %2417 = vrot.lane.b32.xlu0 %v1908, 113
        %v2418 = vpop.permute.xlu0 %2417
        %2419 = vrot.lane.b32.xlu0 %v1914, 113
        %v2420 = vpop.permute.xlu0 %2419
        %2421 = vrot.lane.b32.xlu0 %v1918, 113
        %v2422 = vpop.permute.xlu0 %2421
        %2423 = vrot.lane.b32.xlu0 %v1906, 113
        %v2424 = vpop.permute.xlu0 %2423
        %2425 = vrot.lane.b32.xlu0 %v1910, 113
        %v2426 = vpop.permute.xlu0 %2425
        %2427 = vrot.lane.b32.xlu0 %v1916, 113
        %v2428 = vpop.permute.xlu0 %2427
        %2429 = vrot.lane.b32.xlu0 %v1920, 113
        %v2430 = vpop.permute.xlu0 %2429
        %v2431 = vsel %vm959, %v2416, %v2424
        %v2432 = vsel %vm959, %v2418, %v2426
        %v2433 = vsel %vm959, %v2420, %v2428
        %v2434 = vsel %vm959, %v2422, %v2430
        %v2435 = vsel %vm959, %v2424, %v2416
        %v2436 = vsel %vm959, %v2426, %v2418
        %v2437 = vsel %vm959, %v2428, %v2420
        %v2438 = vsel %vm959, %v2430, %v2422
        %v2439 = vld [vmem:[%s968] ss:$8 sm:$0x3]
        %v2441 = vlaneseq
        %v2442 = vshrl.u32 %v2441, 7
        %v2443 = vsub.s32 0, %v2442
        %v2444 = vrot.slane %v2439, %v2443
        %v2445 = vlaneseq
        %v2446 = vshrl.u32 %v2445, 7
        %v2447 = vsub.s32 1, %v2446
        %v2448 = vrot.slane %v2439, %v2447
        %v2451 = vmul.f32 %v2431, %v2444
        %v2452 = vmul.f32 %v2435, %v2448
        %v2453 = vmul.f32 %v2432, %v2444
        %v2454 = vmul.f32 %v2436, %v2448
        %v2455 = vmul.f32 %v2433, %v2444
        %v2456 = vmul.f32 %v2437, %v2448
        %v2457 = vmul.f32 %v2434, %v2444
        %v2458 = vmul.f32 %v2438, %v2448
        %2459 = vset.pattern.permute.xlu0 6
        %2460 = vperm.xlu0 %2459, %v1995
        %v2461 = vpop.permute.xlu0 %2460
        %2463 = vset.pattern.permute.xlu0 6
        %2464 = vperm.xlu0 %2463, %v1996
        %v2465 = vpop.permute.xlu0 %2464
        %2467 = vset.pattern.permute.xlu0 6
        %2468 = vperm.xlu0 %2467, %v1997
        %v2469 = vpop.permute.xlu0 %2468
        %2471 = vset.pattern.permute.xlu0 6
        %2472 = vperm.xlu0 %2471, %v1998
        %v2473 = vpop.permute.xlu0 %2472
        %v2475 = vmul.f32 %v2451, %v2461
        %v2476 = vmul.f32 %v2452, %v2461
        %v2477 = vmul.f32 %v2453, %v2465
        %v2478 = vmul.f32 %v2454, %v2465
        %v2479 = vmul.f32 %v2455, %v2469
        %v2480 = vmul.f32 %v2456, %v2469
        %v2481 = vmul.f32 %v2457, %v2473
        %v2482 = vmul.f32 %v2458, %v2473
        %v2483 = vadd.f32 %v2407, %v2475
        %v2484 = vadd.f32 %v2408, %v2476
        %v2485 = vadd.f32 %v2409, %v2477
        %v2486 = vadd.f32 %v2410, %v2478
        %v2487 = vadd.f32 %v2411, %v2479
        %v2488 = vadd.f32 %v2412, %v2480
        %v2489 = vadd.f32 %v2413, %v2481
        %v2490 = vadd.f32 %v2414, %v2482
        %2491 = vrot.lane.b32.xlu0 %v1904, 112
        %v2492 = vpop.permute.xlu0 %2491
        %2493 = vrot.lane.b32.xlu0 %v1908, 112
        %v2494 = vpop.permute.xlu0 %2493
        %2495 = vrot.lane.b32.xlu0 %v1914, 112
        %v2496 = vpop.permute.xlu0 %2495
        %2497 = vrot.lane.b32.xlu0 %v1918, 112
        %v2498 = vpop.permute.xlu0 %2497
        %2499 = vrot.lane.b32.xlu0 %v1906, 112
        %v2500 = vpop.permute.xlu0 %2499
        %2501 = vrot.lane.b32.xlu0 %v1910, 112
        %v2502 = vpop.permute.xlu0 %2501
        %2503 = vrot.lane.b32.xlu0 %v1916, 112
        %v2504 = vpop.permute.xlu0 %2503
        %2505 = vrot.lane.b32.xlu0 %v1920, 112
        %v2506 = vpop.permute.xlu0 %2505
        %v2507 = vsel %vm1037, %v2492, %v2500
        %v2508 = vsel %vm1037, %v2494, %v2502
        %v2509 = vsel %vm1037, %v2496, %v2504
        %v2510 = vsel %vm1037, %v2498, %v2506
        %v2511 = vsel %vm1037, %v2500, %v2492
        %v2512 = vsel %vm1037, %v2502, %v2494
        %v2513 = vsel %vm1037, %v2504, %v2496
        %v2514 = vsel %vm1037, %v2506, %v2498
        %v2515 = vld [vmem:[%s1046] ss:$8 sm:$0x3]
        %v2517 = vlaneseq
        %v2518 = vshrl.u32 %v2517, 7
        %v2519 = vsub.s32 0, %v2518
        %v2520 = vrot.slane %v2515, %v2519
        %v2521 = vlaneseq
        %v2522 = vshrl.u32 %v2521, 7
        %v2523 = vsub.s32 1, %v2522
        %v2524 = vrot.slane %v2515, %v2523
        %v2527 = vmul.f32 %v2507, %v2520
        %v2528 = vmul.f32 %v2511, %v2524
        %v2529 = vmul.f32 %v2508, %v2520
        %v2530 = vmul.f32 %v2512, %v2524
        %v2531 = vmul.f32 %v2509, %v2520
        %v2532 = vmul.f32 %v2513, %v2524
        %v2533 = vmul.f32 %v2510, %v2520
        %v2534 = vmul.f32 %v2514, %v2524
        %2535 = vset.pattern.permute.xlu0 7
        %2536 = vperm.xlu0 %2535, %v1995
        %v2537 = vpop.permute.xlu0 %2536
        %2539 = vset.pattern.permute.xlu0 7
        %2540 = vperm.xlu0 %2539, %v1996
        %v2541 = vpop.permute.xlu0 %2540
        %2543 = vset.pattern.permute.xlu0 7
        %2544 = vperm.xlu0 %2543, %v1997
        %v2545 = vpop.permute.xlu0 %2544
        %2547 = vset.pattern.permute.xlu0 7
        %2548 = vperm.xlu0 %2547, %v1998
        %v2549 = vpop.permute.xlu0 %2548
        %v2551 = vmul.f32 %v2527, %v2537
        %v2552 = vmul.f32 %v2528, %v2537
        %v2553 = vmul.f32 %v2529, %v2541
        %v2554 = vmul.f32 %v2530, %v2541
        %v2555 = vmul.f32 %v2531, %v2545
        %v2556 = vmul.f32 %v2532, %v2545
        %v2557 = vmul.f32 %v2533, %v2549
        %v2558 = vmul.f32 %v2534, %v2549
        %v2559 = vadd.f32 %v2483, %v2551
        %v2560 = vadd.f32 %v2484, %v2552
        %v2561 = vadd.f32 %v2485, %v2553
        %v2562 = vadd.f32 %v2486, %v2554
        %v2563 = vadd.f32 %v2487, %v2555
        %v2564 = vadd.f32 %v2488, %v2556
        %v2565 = vadd.f32 %v2489, %v2557
        %v2566 = vadd.f32 %v2490, %v2558
        %2567 = vrot.lane.b32.xlu0 %v1904, 111
        %v2568 = vpop.permute.xlu0 %2567
        %2569 = vrot.lane.b32.xlu0 %v1908, 111
        %v2570 = vpop.permute.xlu0 %2569
        %2571 = vrot.lane.b32.xlu0 %v1914, 111
        %v2572 = vpop.permute.xlu0 %2571
        %2573 = vrot.lane.b32.xlu0 %v1918, 111
        %v2574 = vpop.permute.xlu0 %2573
        %2575 = vrot.lane.b32.xlu0 %v1906, 111
        %v2576 = vpop.permute.xlu0 %2575
        %2577 = vrot.lane.b32.xlu0 %v1910, 111
        %v2578 = vpop.permute.xlu0 %2577
        %2579 = vrot.lane.b32.xlu0 %v1916, 111
        %v2580 = vpop.permute.xlu0 %2579
        %2581 = vrot.lane.b32.xlu0 %v1920, 111
        %v2582 = vpop.permute.xlu0 %2581
        %v2583 = vsel %vm1115, %v2568, %v2576
        %v2584 = vsel %vm1115, %v2570, %v2578
        %v2585 = vsel %vm1115, %v2572, %v2580
        %v2586 = vsel %vm1115, %v2574, %v2582
        %v2587 = vsel %vm1115, %v2576, %v2568
        %v2588 = vsel %vm1115, %v2578, %v2570
        %v2589 = vsel %vm1115, %v2580, %v2572
        %v2590 = vsel %vm1115, %v2582, %v2574
        %v2591 = vld [vmem:[%s1124] ss:$8 sm:$0x3]
        %v2593 = vlaneseq
        %v2594 = vshrl.u32 %v2593, 7
        %v2595 = vsub.s32 0, %v2594
        %v2596 = vrot.slane %v2591, %v2595
        %v2597 = vlaneseq
        %v2598 = vshrl.u32 %v2597, 7
        %v2599 = vsub.s32 1, %v2598
        %v2600 = vrot.slane %v2591, %v2599
        %v2603 = vmul.f32 %v2583, %v2596
        %v2604 = vmul.f32 %v2587, %v2600
        %v2605 = vmul.f32 %v2584, %v2596
        %v2606 = vmul.f32 %v2588, %v2600
        %v2607 = vmul.f32 %v2585, %v2596
        %v2608 = vmul.f32 %v2589, %v2600
        %v2609 = vmul.f32 %v2586, %v2596
        %v2610 = vmul.f32 %v2590, %v2600
        %2611 = vset.pattern.permute.xlu0 8
        %2612 = vperm.xlu0 %2611, %v1995
        %v2613 = vpop.permute.xlu0 %2612
        %2615 = vset.pattern.permute.xlu0 8
        %2616 = vperm.xlu0 %2615, %v1996
        %v2617 = vpop.permute.xlu0 %2616
        %2619 = vset.pattern.permute.xlu0 8
        %2620 = vperm.xlu0 %2619, %v1997
        %v2621 = vpop.permute.xlu0 %2620
        %2623 = vset.pattern.permute.xlu0 8
        %2624 = vperm.xlu0 %2623, %v1998
        %v2625 = vpop.permute.xlu0 %2624
        %v2627 = vmul.f32 %v2603, %v2613
        %v2628 = vmul.f32 %v2604, %v2613
        %v2629 = vmul.f32 %v2605, %v2617
        %v2630 = vmul.f32 %v2606, %v2617
        %v2631 = vmul.f32 %v2607, %v2621
        %v2632 = vmul.f32 %v2608, %v2621
        %v2633 = vmul.f32 %v2609, %v2625
        %v2634 = vmul.f32 %v2610, %v2625
        %v2635 = vadd.f32 %v2559, %v2627
        %v2636 = vadd.f32 %v2560, %v2628
        %v2637 = vadd.f32 %v2561, %v2629
        %v2638 = vadd.f32 %v2562, %v2630
        %v2639 = vadd.f32 %v2563, %v2631
        %v2640 = vadd.f32 %v2564, %v2632
        %v2641 = vadd.f32 %v2565, %v2633
        %v2642 = vadd.f32 %v2566, %v2634
        %v2643 = vld [vmem:[%s5 + $0x20] sm:$0xff]
        %v2644 = vld [vmem:[%s5 + $0x28] sm:$0xff]
        %v2645 = vld [vmem:[%s5 + $0x30] sm:$0xff]
        %v2646 = vld [vmem:[%s5 + $0x38] sm:$0xff]
        %2648 = vset.pattern.permute.xlu0 0
        %2649 = vperm.xlu0 %2648, %v2643
        %v2650 = vpop.permute.xlu0 %2649
        %2653 = vset.pattern.permute.xlu0 0
        %2654 = vperm.xlu0 %2653, %v2644
        %v2655 = vpop.permute.xlu0 %2654
        %2658 = vset.pattern.permute.xlu0 0
        %2659 = vperm.xlu0 %2658, %v2645
        %v2660 = vpop.permute.xlu0 %2659
        %2663 = vset.pattern.permute.xlu0 0
        %2664 = vperm.xlu0 %2663, %v2646
        %v2665 = vpop.permute.xlu0 %2664
        %v2667 = vadd.f32 %v2635, %v2650
        %v2668 = vadd.f32 %v2636, %v2650
        %v2669 = vadd.f32 %v2637, %v2655
        %v2670 = vadd.f32 %v2638, %v2655
        %v2671 = vadd.f32 %v2639, %v2660
        %v2672 = vadd.f32 %v2640, %v2660
        %v2673 = vadd.f32 %v2641, %v2665
        %v2674 = vadd.f32 %v2642, %v2665
        %v2675 = vld [vmem:[%s4 + $0x20] sm:$0xff]
        %v2676 = vld [vmem:[%s4 + $0x28] sm:$0xff]
        %v2677 = vld [vmem:[%s4 + $0x30] sm:$0xff]
        %v2678 = vld [vmem:[%s4 + $0x38] sm:$0xff]
        %2679 = vrot.lane.b32.xlu0 %v1977, 17
        %v2680 = vpop.permute.xlu0 %2679
        %2681 = vrot.lane.b32.xlu0 %v1981, 17
        %v2682 = vpop.permute.xlu0 %2681
        %2683 = vrot.lane.b32.xlu0 %v1987, 17
        %v2684 = vpop.permute.xlu0 %2683
        %2685 = vrot.lane.b32.xlu0 %v1991, 17
        %v2686 = vpop.permute.xlu0 %2685
        %2687 = vrot.lane.b32.xlu0 %v1979, 17
        %v2688 = vpop.permute.xlu0 %2687
        %2689 = vrot.lane.b32.xlu0 %v1983, 17
        %v2690 = vpop.permute.xlu0 %2689
        %2691 = vrot.lane.b32.xlu0 %v1989, 17
        %v2692 = vpop.permute.xlu0 %2691
        %2693 = vrot.lane.b32.xlu0 %v1993, 17
        %v2694 = vpop.permute.xlu0 %2693
        %v2695 = vsel %vm534, %v2680, %v2688
        %v2696 = vsel %vm534, %v2682, %v2690
        %v2697 = vsel %vm534, %v2684, %v2692
        %v2698 = vsel %vm534, %v2686, %v2694
        %v2699 = vsel %vm534, %v2688, %v2680
        %v2700 = vsel %vm534, %v2690, %v2682
        %v2701 = vsel %vm534, %v2692, %v2684
        %v2702 = vsel %vm534, %v2694, %v2686
        %v2703 = vmul.f32 %v2699, %v2028
        %v2704 = vmul.f32 %v2695, %v2032
        %v2705 = vmul.f32 %v2700, %v2028
        %v2706 = vmul.f32 %v2696, %v2032
        %v2707 = vmul.f32 %v2701, %v2028
        %v2708 = vmul.f32 %v2697, %v2032
        %v2709 = vmul.f32 %v2702, %v2028
        %v2710 = vmul.f32 %v2698, %v2032
        %2712 = vset.pattern.permute.xlu0 0
        %2713 = vperm.xlu0 %2712, %v2675
        %v2714 = vpop.permute.xlu0 %2713
        %2717 = vset.pattern.permute.xlu0 0
        %2718 = vperm.xlu0 %2717, %v2676
        %v2719 = vpop.permute.xlu0 %2718
        %2722 = vset.pattern.permute.xlu0 0
        %2723 = vperm.xlu0 %2722, %v2677
        %v2724 = vpop.permute.xlu0 %2723
        %2727 = vset.pattern.permute.xlu0 0
        %2728 = vperm.xlu0 %2727, %v2678
        %v2729 = vpop.permute.xlu0 %2728
        %v2731 = vmul.f32 %v2703, %v2714
        %v2732 = vmul.f32 %v2704, %v2714
        %v2733 = vmul.f32 %v2705, %v2719
        %v2734 = vmul.f32 %v2706, %v2719
        %v2735 = vmul.f32 %v2707, %v2724
        %v2736 = vmul.f32 %v2708, %v2724
        %v2737 = vmul.f32 %v2709, %v2729
        %v2738 = vmul.f32 %v2710, %v2729
        %v2739 = vadd.f32 %v2731, 0.0
        %v2740 = vadd.f32 %v2732, 0.0
        %v2741 = vadd.f32 %v2733, 0.0
        %v2742 = vadd.f32 %v2734, 0.0
        %v2743 = vadd.f32 %v2735, 0.0
        %v2744 = vadd.f32 %v2736, 0.0
        %v2745 = vadd.f32 %v2737, 0.0
        %v2746 = vadd.f32 %v2738, 0.0
        %2747 = vrot.lane.b32.xlu0 %v1977, 16
        %v2748 = vpop.permute.xlu0 %2747
        %2749 = vrot.lane.b32.xlu0 %v1981, 16
        %v2750 = vpop.permute.xlu0 %2749
        %2751 = vrot.lane.b32.xlu0 %v1987, 16
        %v2752 = vpop.permute.xlu0 %2751
        %2753 = vrot.lane.b32.xlu0 %v1991, 16
        %v2754 = vpop.permute.xlu0 %2753
        %2755 = vrot.lane.b32.xlu0 %v1979, 16
        %v2756 = vpop.permute.xlu0 %2755
        %2757 = vrot.lane.b32.xlu0 %v1983, 16
        %v2758 = vpop.permute.xlu0 %2757
        %2759 = vrot.lane.b32.xlu0 %v1989, 16
        %v2760 = vpop.permute.xlu0 %2759
        %2761 = vrot.lane.b32.xlu0 %v1993, 16
        %v2762 = vpop.permute.xlu0 %2761
        %v2763 = vsel %vm615, %v2748, %v2756
        %v2764 = vsel %vm615, %v2750, %v2758
        %v2765 = vsel %vm615, %v2752, %v2760
        %v2766 = vsel %vm615, %v2754, %v2762
        %v2767 = vsel %vm615, %v2756, %v2748
        %v2768 = vsel %vm615, %v2758, %v2750
        %v2769 = vsel %vm615, %v2760, %v2752
        %v2770 = vsel %vm615, %v2762, %v2754
        %v2771 = vmul.f32 %v2767, %v2108
        %v2772 = vmul.f32 %v2763, %v2112
        %v2773 = vmul.f32 %v2768, %v2108
        %v2774 = vmul.f32 %v2764, %v2112
        %v2775 = vmul.f32 %v2769, %v2108
        %v2776 = vmul.f32 %v2765, %v2112
        %v2777 = vmul.f32 %v2770, %v2108
        %v2778 = vmul.f32 %v2766, %v2112
        %2779 = vset.pattern.permute.xlu0 1
        %2780 = vperm.xlu0 %2779, %v2675
        %v2781 = vpop.permute.xlu0 %2780
        %2783 = vset.pattern.permute.xlu0 1
        %2784 = vperm.xlu0 %2783, %v2676
        %v2785 = vpop.permute.xlu0 %2784
        %2787 = vset.pattern.permute.xlu0 1
        %2788 = vperm.xlu0 %2787, %v2677
        %v2789 = vpop.permute.xlu0 %2788
        %2791 = vset.pattern.permute.xlu0 1
        %2792 = vperm.xlu0 %2791, %v2678
        %v2793 = vpop.permute.xlu0 %2792
        %v2795 = vmul.f32 %v2771, %v2781
        %v2796 = vmul.f32 %v2772, %v2781
        %v2797 = vmul.f32 %v2773, %v2785
        %v2798 = vmul.f32 %v2774, %v2785
        %v2799 = vmul.f32 %v2775, %v2789
        %v2800 = vmul.f32 %v2776, %v2789
        %v2801 = vmul.f32 %v2777, %v2793
        %v2802 = vmul.f32 %v2778, %v2793
        %v2803 = vadd.f32 %v2739, %v2795
        %v2804 = vadd.f32 %v2740, %v2796
        %v2805 = vadd.f32 %v2741, %v2797
        %v2806 = vadd.f32 %v2742, %v2798
        %v2807 = vadd.f32 %v2743, %v2799
        %v2808 = vadd.f32 %v2744, %v2800
        %v2809 = vadd.f32 %v2745, %v2801
        %v2810 = vadd.f32 %v2746, %v2802
        %2811 = vrot.lane.b32.xlu0 %v1977, 15
        %v2812 = vpop.permute.xlu0 %2811
        %2813 = vrot.lane.b32.xlu0 %v1981, 15
        %v2814 = vpop.permute.xlu0 %2813
        %2815 = vrot.lane.b32.xlu0 %v1987, 15
        %v2816 = vpop.permute.xlu0 %2815
        %2817 = vrot.lane.b32.xlu0 %v1991, 15
        %v2818 = vpop.permute.xlu0 %2817
        %2819 = vrot.lane.b32.xlu0 %v1979, 15
        %v2820 = vpop.permute.xlu0 %2819
        %2821 = vrot.lane.b32.xlu0 %v1983, 15
        %v2822 = vpop.permute.xlu0 %2821
        %2823 = vrot.lane.b32.xlu0 %v1989, 15
        %v2824 = vpop.permute.xlu0 %2823
        %2825 = vrot.lane.b32.xlu0 %v1993, 15
        %v2826 = vpop.permute.xlu0 %2825
        %v2827 = vsel %vm693, %v2812, %v2820
        %v2828 = vsel %vm693, %v2814, %v2822
        %v2829 = vsel %vm693, %v2816, %v2824
        %v2830 = vsel %vm693, %v2818, %v2826
        %v2831 = vsel %vm693, %v2820, %v2812
        %v2832 = vsel %vm693, %v2822, %v2814
        %v2833 = vsel %vm693, %v2824, %v2816
        %v2834 = vsel %vm693, %v2826, %v2818
        %v2835 = vmul.f32 %v2831, %v2184
        %v2836 = vmul.f32 %v2827, %v2188
        %v2837 = vmul.f32 %v2832, %v2184
        %v2838 = vmul.f32 %v2828, %v2188
        %v2839 = vmul.f32 %v2833, %v2184
        %v2840 = vmul.f32 %v2829, %v2188
        %v2841 = vmul.f32 %v2834, %v2184
        %v2842 = vmul.f32 %v2830, %v2188
        %2843 = vset.pattern.permute.xlu0 2
        %2844 = vperm.xlu0 %2843, %v2675
        %v2845 = vpop.permute.xlu0 %2844
        %2847 = vset.pattern.permute.xlu0 2
        %2848 = vperm.xlu0 %2847, %v2676
        %v2849 = vpop.permute.xlu0 %2848
        %2851 = vset.pattern.permute.xlu0 2
        %2852 = vperm.xlu0 %2851, %v2677
        %v2853 = vpop.permute.xlu0 %2852
        %2855 = vset.pattern.permute.xlu0 2
        %2856 = vperm.xlu0 %2855, %v2678
        %v2857 = vpop.permute.xlu0 %2856
        %v2859 = vmul.f32 %v2835, %v2845
        %v2860 = vmul.f32 %v2836, %v2845
        %v2861 = vmul.f32 %v2837, %v2849
        %v2862 = vmul.f32 %v2838, %v2849
        %v2863 = vmul.f32 %v2839, %v2853
        %v2864 = vmul.f32 %v2840, %v2853
        %v2865 = vmul.f32 %v2841, %v2857
        %v2866 = vmul.f32 %v2842, %v2857
        %v2867 = vadd.f32 %v2803, %v2859
        %v2868 = vadd.f32 %v2804, %v2860
        %v2869 = vadd.f32 %v2805, %v2861
        %v2870 = vadd.f32 %v2806, %v2862
        %v2871 = vadd.f32 %v2807, %v2863
        %v2872 = vadd.f32 %v2808, %v2864
        %v2873 = vadd.f32 %v2809, %v2865
        %v2874 = vadd.f32 %v2810, %v2866
        %2875 = vrot.lane.b32.xlu0 %v1977, 1
        %v2876 = vpop.permute.xlu0 %2875
        %2877 = vrot.lane.b32.xlu0 %v1981, 1
        %v2878 = vpop.permute.xlu0 %2877
        %2879 = vrot.lane.b32.xlu0 %v1987, 1
        %v2880 = vpop.permute.xlu0 %2879
        %2881 = vrot.lane.b32.xlu0 %v1991, 1
        %v2882 = vpop.permute.xlu0 %2881
        %2883 = vrot.lane.b32.xlu0 %v1979, 1
        %v2884 = vpop.permute.xlu0 %2883
        %2885 = vrot.lane.b32.xlu0 %v1983, 1
        %v2886 = vpop.permute.xlu0 %2885
        %2887 = vrot.lane.b32.xlu0 %v1989, 1
        %v2888 = vpop.permute.xlu0 %2887
        %2889 = vrot.lane.b32.xlu0 %v1993, 1
        %v2890 = vpop.permute.xlu0 %2889
        %v2891 = vsel %vm771, %v2876, %v2884
        %v2892 = vsel %vm771, %v2878, %v2886
        %v2893 = vsel %vm771, %v2880, %v2888
        %v2894 = vsel %vm771, %v2882, %v2890
        %v2895 = vsel %vm771, %v2884, %v2876
        %v2896 = vsel %vm771, %v2886, %v2878
        %v2897 = vsel %vm771, %v2888, %v2880
        %v2898 = vsel %vm771, %v2890, %v2882
        %v2899 = vmul.f32 %v2895, %v2260
        %v2900 = vmul.f32 %v2891, %v2264
        %v2901 = vmul.f32 %v2896, %v2260
        %v2902 = vmul.f32 %v2892, %v2264
        %v2903 = vmul.f32 %v2897, %v2260
        %v2904 = vmul.f32 %v2893, %v2264
        %v2905 = vmul.f32 %v2898, %v2260
        %v2906 = vmul.f32 %v2894, %v2264
        %2907 = vset.pattern.permute.xlu0 3
        %2908 = vperm.xlu0 %2907, %v2675
        %v2909 = vpop.permute.xlu0 %2908
        %2911 = vset.pattern.permute.xlu0 3
        %2912 = vperm.xlu0 %2911, %v2676
        %v2913 = vpop.permute.xlu0 %2912
        %2915 = vset.pattern.permute.xlu0 3
        %2916 = vperm.xlu0 %2915, %v2677
        %v2917 = vpop.permute.xlu0 %2916
        %2919 = vset.pattern.permute.xlu0 3
        %2920 = vperm.xlu0 %2919, %v2678
        %v2921 = vpop.permute.xlu0 %2920
        %v2923 = vmul.f32 %v2899, %v2909
        %v2924 = vmul.f32 %v2900, %v2909
        %v2925 = vmul.f32 %v2901, %v2913
        %v2926 = vmul.f32 %v2902, %v2913
        %v2927 = vmul.f32 %v2903, %v2917
        %v2928 = vmul.f32 %v2904, %v2917
        %v2929 = vmul.f32 %v2905, %v2921
        %v2930 = vmul.f32 %v2906, %v2921
        %v2931 = vadd.f32 %v2867, %v2923
        %v2932 = vadd.f32 %v2868, %v2924
        %v2933 = vadd.f32 %v2869, %v2925
        %v2934 = vadd.f32 %v2870, %v2926
        %v2935 = vadd.f32 %v2871, %v2927
        %v2936 = vadd.f32 %v2872, %v2928
        %v2937 = vadd.f32 %v2873, %v2929
        %v2938 = vadd.f32 %v2874, %v2930
        %2939 = vset.pattern.permute.xlu0 4
        %2940 = vperm.xlu0 %2939, %v2675
        %v2941 = vpop.permute.xlu0 %2940
        %2943 = vset.pattern.permute.xlu0 4
        %2944 = vperm.xlu0 %2943, %v2676
        %v2945 = vpop.permute.xlu0 %2944
        %2947 = vset.pattern.permute.xlu0 4
        %2948 = vperm.xlu0 %2947, %v2677
        %v2949 = vpop.permute.xlu0 %2948
        %2951 = vset.pattern.permute.xlu0 4
        %2952 = vperm.xlu0 %2951, %v2678
        %v2953 = vpop.permute.xlu0 %2952
        %v2955 = vmul.f32 %v1977, %v2941
        %v2956 = vmul.f32 %v1979, %v2941
        %v2957 = vmul.f32 %v1981, %v2945
        %v2958 = vmul.f32 %v1983, %v2945
        %v2959 = vmul.f32 %v1987, %v2949
        %v2960 = vmul.f32 %v1989, %v2949
        %v2961 = vmul.f32 %v1991, %v2953
        %v2962 = vmul.f32 %v1993, %v2953
        %v2963 = vadd.f32 %v2931, %v2955
        %v2964 = vadd.f32 %v2932, %v2956
        %v2965 = vadd.f32 %v2933, %v2957
        %v2966 = vadd.f32 %v2934, %v2958
        %v2967 = vadd.f32 %v2935, %v2959
        %v2968 = vadd.f32 %v2936, %v2960
        %v2969 = vadd.f32 %v2937, %v2961
        %v2970 = vadd.f32 %v2938, %v2962
        %2971 = vrot.lane.b32.xlu0 %v1977, 127
        %v2972 = vpop.permute.xlu0 %2971
        %2973 = vrot.lane.b32.xlu0 %v1981, 127
        %v2974 = vpop.permute.xlu0 %2973
        %2975 = vrot.lane.b32.xlu0 %v1987, 127
        %v2976 = vpop.permute.xlu0 %2975
        %2977 = vrot.lane.b32.xlu0 %v1991, 127
        %v2978 = vpop.permute.xlu0 %2977
        %2979 = vrot.lane.b32.xlu0 %v1979, 127
        %v2980 = vpop.permute.xlu0 %2979
        %2981 = vrot.lane.b32.xlu0 %v1983, 127
        %v2982 = vpop.permute.xlu0 %2981
        %2983 = vrot.lane.b32.xlu0 %v1989, 127
        %v2984 = vpop.permute.xlu0 %2983
        %2985 = vrot.lane.b32.xlu0 %v1993, 127
        %v2986 = vpop.permute.xlu0 %2985
        %v2987 = vsel %vm881, %v2972, %v2980
        %v2988 = vsel %vm881, %v2974, %v2982
        %v2989 = vsel %vm881, %v2976, %v2984
        %v2990 = vsel %vm881, %v2978, %v2986
        %v2991 = vsel %vm881, %v2980, %v2972
        %v2992 = vsel %vm881, %v2982, %v2974
        %v2993 = vsel %vm881, %v2984, %v2976
        %v2994 = vsel %vm881, %v2986, %v2978
        %v2995 = vmul.f32 %v2987, %v2368
        %v2996 = vmul.f32 %v2991, %v2372
        %v2997 = vmul.f32 %v2988, %v2368
        %v2998 = vmul.f32 %v2992, %v2372
        %v2999 = vmul.f32 %v2989, %v2368
        %v3000 = vmul.f32 %v2993, %v2372
        %v3001 = vmul.f32 %v2990, %v2368
        %v3002 = vmul.f32 %v2994, %v2372
        %3003 = vset.pattern.permute.xlu0 5
        %3004 = vperm.xlu0 %3003, %v2675
        %v3005 = vpop.permute.xlu0 %3004
        %3007 = vset.pattern.permute.xlu0 5
        %3008 = vperm.xlu0 %3007, %v2676
        %v3009 = vpop.permute.xlu0 %3008
        %3011 = vset.pattern.permute.xlu0 5
        %3012 = vperm.xlu0 %3011, %v2677
        %v3013 = vpop.permute.xlu0 %3012
        %3015 = vset.pattern.permute.xlu0 5
        %3016 = vperm.xlu0 %3015, %v2678
        %v3017 = vpop.permute.xlu0 %3016
        %v3019 = vmul.f32 %v2995, %v3005
        %v3020 = vmul.f32 %v2996, %v3005
        %v3021 = vmul.f32 %v2997, %v3009
        %v3022 = vmul.f32 %v2998, %v3009
        %v3023 = vmul.f32 %v2999, %v3013
        %v3024 = vmul.f32 %v3000, %v3013
        %v3025 = vmul.f32 %v3001, %v3017
        %v3026 = vmul.f32 %v3002, %v3017
        %v3027 = vadd.f32 %v2963, %v3019
        %v3028 = vadd.f32 %v2964, %v3020
        %v3029 = vadd.f32 %v2965, %v3021
        %v3030 = vadd.f32 %v2966, %v3022
        %v3031 = vadd.f32 %v2967, %v3023
        %v3032 = vadd.f32 %v2968, %v3024
        %v3033 = vadd.f32 %v2969, %v3025
        %v3034 = vadd.f32 %v2970, %v3026
        %3035 = vrot.lane.b32.xlu0 %v1977, 113
        %v3036 = vpop.permute.xlu0 %3035
        %3037 = vrot.lane.b32.xlu0 %v1981, 113
        %v3038 = vpop.permute.xlu0 %3037
        %3039 = vrot.lane.b32.xlu0 %v1987, 113
        %v3040 = vpop.permute.xlu0 %3039
        %3041 = vrot.lane.b32.xlu0 %v1991, 113
        %v3042 = vpop.permute.xlu0 %3041
        %3043 = vrot.lane.b32.xlu0 %v1979, 113
        %v3044 = vpop.permute.xlu0 %3043
        %3045 = vrot.lane.b32.xlu0 %v1983, 113
        %v3046 = vpop.permute.xlu0 %3045
        %3047 = vrot.lane.b32.xlu0 %v1989, 113
        %v3048 = vpop.permute.xlu0 %3047
        %3049 = vrot.lane.b32.xlu0 %v1993, 113
        %v3050 = vpop.permute.xlu0 %3049
        %v3051 = vsel %vm959, %v3036, %v3044
        %v3052 = vsel %vm959, %v3038, %v3046
        %v3053 = vsel %vm959, %v3040, %v3048
        %v3054 = vsel %vm959, %v3042, %v3050
        %v3055 = vsel %vm959, %v3044, %v3036
        %v3056 = vsel %vm959, %v3046, %v3038
        %v3057 = vsel %vm959, %v3048, %v3040
        %v3058 = vsel %vm959, %v3050, %v3042
        %v3059 = vmul.f32 %v3051, %v2444
        %v3060 = vmul.f32 %v3055, %v2448
        %v3061 = vmul.f32 %v3052, %v2444
        %v3062 = vmul.f32 %v3056, %v2448
        %v3063 = vmul.f32 %v3053, %v2444
        %v3064 = vmul.f32 %v3057, %v2448
        %v3065 = vmul.f32 %v3054, %v2444
        %v3066 = vmul.f32 %v3058, %v2448
        %3067 = vset.pattern.permute.xlu0 6
        %3068 = vperm.xlu0 %3067, %v2675
        %v3069 = vpop.permute.xlu0 %3068
        %3071 = vset.pattern.permute.xlu0 6
        %3072 = vperm.xlu0 %3071, %v2676
        %v3073 = vpop.permute.xlu0 %3072
        %3075 = vset.pattern.permute.xlu0 6
        %3076 = vperm.xlu0 %3075, %v2677
        %v3077 = vpop.permute.xlu0 %3076
        %3079 = vset.pattern.permute.xlu0 6
        %3080 = vperm.xlu0 %3079, %v2678
        %v3081 = vpop.permute.xlu0 %3080
        %v3083 = vmul.f32 %v3059, %v3069
        %v3084 = vmul.f32 %v3060, %v3069
        %v3085 = vmul.f32 %v3061, %v3073
        %v3086 = vmul.f32 %v3062, %v3073
        %v3087 = vmul.f32 %v3063, %v3077
        %v3088 = vmul.f32 %v3064, %v3077
        %v3089 = vmul.f32 %v3065, %v3081
        %v3090 = vmul.f32 %v3066, %v3081
        %v3091 = vadd.f32 %v3027, %v3083
        %v3092 = vadd.f32 %v3028, %v3084
        %v3093 = vadd.f32 %v3029, %v3085
        %v3094 = vadd.f32 %v3030, %v3086
        %v3095 = vadd.f32 %v3031, %v3087
        %v3096 = vadd.f32 %v3032, %v3088
        %v3097 = vadd.f32 %v3033, %v3089
        %v3098 = vadd.f32 %v3034, %v3090
        %3099 = vrot.lane.b32.xlu0 %v1977, 112
        %v3100 = vpop.permute.xlu0 %3099
        %3101 = vrot.lane.b32.xlu0 %v1981, 112
        %v3102 = vpop.permute.xlu0 %3101
        %3103 = vrot.lane.b32.xlu0 %v1987, 112
        %v3104 = vpop.permute.xlu0 %3103
        %3105 = vrot.lane.b32.xlu0 %v1991, 112
        %v3106 = vpop.permute.xlu0 %3105
        %3107 = vrot.lane.b32.xlu0 %v1979, 112
        %v3108 = vpop.permute.xlu0 %3107
        %3109 = vrot.lane.b32.xlu0 %v1983, 112
        %v3110 = vpop.permute.xlu0 %3109
        %3111 = vrot.lane.b32.xlu0 %v1989, 112
        %v3112 = vpop.permute.xlu0 %3111
        %3113 = vrot.lane.b32.xlu0 %v1993, 112
        %v3114 = vpop.permute.xlu0 %3113
        %v3115 = vsel %vm1037, %v3100, %v3108
        %v3116 = vsel %vm1037, %v3102, %v3110
        %v3117 = vsel %vm1037, %v3104, %v3112
        %v3118 = vsel %vm1037, %v3106, %v3114
        %v3119 = vsel %vm1037, %v3108, %v3100
        %v3120 = vsel %vm1037, %v3110, %v3102
        %v3121 = vsel %vm1037, %v3112, %v3104
        %v3122 = vsel %vm1037, %v3114, %v3106
        %v3123 = vmul.f32 %v3115, %v2520
        %v3124 = vmul.f32 %v3119, %v2524
        %v3125 = vmul.f32 %v3116, %v2520
        %v3126 = vmul.f32 %v3120, %v2524
        %v3127 = vmul.f32 %v3117, %v2520
        %v3128 = vmul.f32 %v3121, %v2524
        %v3129 = vmul.f32 %v3118, %v2520
        %v3130 = vmul.f32 %v3122, %v2524
        %3131 = vset.pattern.permute.xlu0 7
        %3132 = vperm.xlu0 %3131, %v2675
        %v3133 = vpop.permute.xlu0 %3132
        %3135 = vset.pattern.permute.xlu0 7
        %3136 = vperm.xlu0 %3135, %v2676
        %v3137 = vpop.permute.xlu0 %3136
        %3139 = vset.pattern.permute.xlu0 7
        %3140 = vperm.xlu0 %3139, %v2677
        %v3141 = vpop.permute.xlu0 %3140
        %3143 = vset.pattern.permute.xlu0 7
        %3144 = vperm.xlu0 %3143, %v2678
        %v3145 = vpop.permute.xlu0 %3144
        %v3147 = vmul.f32 %v3123, %v3133
        %v3148 = vmul.f32 %v3124, %v3133
        %v3149 = vmul.f32 %v3125, %v3137
        %v3150 = vmul.f32 %v3126, %v3137
        %v3151 = vmul.f32 %v3127, %v3141
        %v3152 = vmul.f32 %v3128, %v3141
        %v3153 = vmul.f32 %v3129, %v3145
        %v3154 = vmul.f32 %v3130, %v3145
        %v3155 = vadd.f32 %v3091, %v3147
        %v3156 = vadd.f32 %v3092, %v3148
        %v3157 = vadd.f32 %v3093, %v3149
        %v3158 = vadd.f32 %v3094, %v3150
        %v3159 = vadd.f32 %v3095, %v3151
        %v3160 = vadd.f32 %v3096, %v3152
        %v3161 = vadd.f32 %v3097, %v3153
        %v3162 = vadd.f32 %v3098, %v3154
        %3163 = vrot.lane.b32.xlu0 %v1977, 111
        %v3164 = vpop.permute.xlu0 %3163
        %3165 = vrot.lane.b32.xlu0 %v1981, 111
        %v3166 = vpop.permute.xlu0 %3165
        %3167 = vrot.lane.b32.xlu0 %v1987, 111
        %v3168 = vpop.permute.xlu0 %3167
        %3169 = vrot.lane.b32.xlu0 %v1991, 111
        %v3170 = vpop.permute.xlu0 %3169
        %3171 = vrot.lane.b32.xlu0 %v1979, 111
        %v3172 = vpop.permute.xlu0 %3171
        %3173 = vrot.lane.b32.xlu0 %v1983, 111
        %v3174 = vpop.permute.xlu0 %3173
        %3175 = vrot.lane.b32.xlu0 %v1989, 111
        %v3176 = vpop.permute.xlu0 %3175
        %3177 = vrot.lane.b32.xlu0 %v1993, 111
        %v3178 = vpop.permute.xlu0 %3177
        %v3179 = vsel %vm1115, %v3164, %v3172
        %v3180 = vsel %vm1115, %v3166, %v3174
        %v3181 = vsel %vm1115, %v3168, %v3176
        %v3182 = vsel %vm1115, %v3170, %v3178
        %v3183 = vsel %vm1115, %v3172, %v3164
        %v3184 = vsel %vm1115, %v3174, %v3166
        %v3185 = vsel %vm1115, %v3176, %v3168
        %v3186 = vsel %vm1115, %v3178, %v3170
        %v3187 = vmul.f32 %v3179, %v2596
        %v3188 = vmul.f32 %v3183, %v2600
        %v3189 = vmul.f32 %v3180, %v2596
        %v3190 = vmul.f32 %v3184, %v2600
        %v3191 = vmul.f32 %v3181, %v2596
        %v3192 = vmul.f32 %v3185, %v2600
        %v3193 = vmul.f32 %v3182, %v2596
        %v3194 = vmul.f32 %v3186, %v2600
        %3195 = vset.pattern.permute.xlu0 8
        %3196 = vperm.xlu0 %3195, %v2675
        %v3197 = vpop.permute.xlu0 %3196
        %3199 = vset.pattern.permute.xlu0 8
        %3200 = vperm.xlu0 %3199, %v2676
        %v3201 = vpop.permute.xlu0 %3200
        %3203 = vset.pattern.permute.xlu0 8
        %3204 = vperm.xlu0 %3203, %v2677
        %v3205 = vpop.permute.xlu0 %3204
        %3207 = vset.pattern.permute.xlu0 8
        %3208 = vperm.xlu0 %3207, %v2678
        %v3209 = vpop.permute.xlu0 %3208
        %v3211 = vmul.f32 %v3187, %v3197
        %v3212 = vmul.f32 %v3188, %v3197
        %v3213 = vmul.f32 %v3189, %v3201
        %v3214 = vmul.f32 %v3190, %v3201
        %v3215 = vmul.f32 %v3191, %v3205
        %v3216 = vmul.f32 %v3192, %v3205
        %v3217 = vmul.f32 %v3193, %v3209
        %v3218 = vmul.f32 %v3194, %v3209
        %v3219 = vadd.f32 %v3155, %v3211
        %v3220 = vadd.f32 %v3156, %v3212
        %v3221 = vadd.f32 %v3157, %v3213
        %v3222 = vadd.f32 %v3158, %v3214
        %v3223 = vadd.f32 %v3159, %v3215
        %v3224 = vadd.f32 %v3160, %v3216
        %v3225 = vadd.f32 %v3161, %v3217
        %v3226 = vadd.f32 %v3162, %v3218
        %v3227 = vld [vmem:[%s6 + $0x20] sm:$0xff]
        %v3228 = vld [vmem:[%s6 + $0x28] sm:$0xff]
        %v3229 = vld [vmem:[%s6 + $0x30] sm:$0xff]
        %v3230 = vld [vmem:[%s6 + $0x38] sm:$0xff]
        %3232 = vset.pattern.permute.xlu0 0
        %3233 = vperm.xlu0 %3232, %v3227
        %v3234 = vpop.permute.xlu0 %3233
        %3237 = vset.pattern.permute.xlu0 0
        %3238 = vperm.xlu0 %3237, %v3228
        %v3239 = vpop.permute.xlu0 %3238
        %3242 = vset.pattern.permute.xlu0 0
        %3243 = vperm.xlu0 %3242, %v3229
        %v3244 = vpop.permute.xlu0 %3243
        %3247 = vset.pattern.permute.xlu0 0
        %3248 = vperm.xlu0 %3247, %v3230
        %v3249 = vpop.permute.xlu0 %3248
        %v3251 = vadd.f32 %v3219, %v3234
        %v3252 = vadd.f32 %v3220, %v3234
        %v3253 = vadd.f32 %v3221, %v3239
        %v3254 = vadd.f32 %v3222, %v3239
        %v3255 = vadd.f32 %v3223, %v3244
        %v3256 = vadd.f32 %v3224, %v3244
        %v3257 = vadd.f32 %v3225, %v3249
        %v3258 = vadd.f32 %v3226, %v3249
        %v3259 = vmul.f32 %v2667, 0.5
        %v3260 = vmul.f32 %v2668, 0.5
        %v3261 = vmul.f32 %v2669, 0.5
        %v3262 = vmul.f32 %v2670, 0.5
        %v3263 = vmul.f32 %v2671, 0.5
        %v3264 = vmul.f32 %v2672, 0.5
        %v3265 = vmul.f32 %v2673, 0.5
        %v3266 = vmul.f32 %v2674, 0.5
        %v3267 = vmul.f32 %v2667, 0.70710677
        %v3268 = vmul.f32 %v2668, 0.70710677
        %v3269 = vmul.f32 %v2669, 0.70710677
        %v3270 = vmul.f32 %v2670, 0.70710677
        %v3271 = vmul.f32 %v2671, 0.70710677
        %v3272 = vmul.f32 %v2672, 0.70710677
        %v3273 = vmul.f32 %v2673, 0.70710677
        %v3274 = vmul.f32 %v2674, 0.70710677
        %v3275 = verf.f32.pop %v3267
        %v3276 = verf.f32.pop %v3268
        %v3277 = verf.f32.pop %v3269
        %v3278 = verf.f32.pop %v3270
        %v3279 = verf.f32.pop %v3271
        %v3280 = verf.f32.pop %v3272
        %v3281 = verf.f32.pop %v3273
        %v3282 = verf.f32.pop %v3274
        %v3283 = vadd.f32 %v3275, 1.0
        %v3284 = vadd.f32 %v3276, 1.0
        %v3285 = vadd.f32 %v3277, 1.0
        %v3286 = vadd.f32 %v3278, 1.0
        %v3287 = vadd.f32 %v3279, 1.0
        %v3288 = vadd.f32 %v3280, 1.0
        %v3289 = vadd.f32 %v3281, 1.0
        %v3290 = vadd.f32 %v3282, 1.0
        %v3291 = vmul.f32 %v3259, %v3283
        %v3292 = vmul.f32 %v3260, %v3284
        %v3293 = vmul.f32 %v3261, %v3285
        %v3294 = vmul.f32 %v3262, %v3286
        %v3295 = vmul.f32 %v3263, %v3287
        %v3296 = vmul.f32 %v3264, %v3288
        %v3297 = vmul.f32 %v3265, %v3289
        %v3298 = vmul.f32 %v3266, %v3290
        %v3299 = vmul.f32 %v3291, %v3251
        %v3300 = vmul.f32 %v3292, %v3252
        %v3301 = vmul.f32 %v3293, %v3253
        %v3302 = vmul.f32 %v3294, %v3254
        %v3303 = vmul.f32 %v3295, %v3255
        %v3304 = vmul.f32 %v3296, %v3256
        %v3305 = vmul.f32 %v3297, %v3257
        %v3306 = vmul.f32 %v3298, %v3258
        %v3307 = vpack.c.bf16 %v3301, %v3299
        %v3308 = vpack.c.bf16 %v3302, %v3300
        %v3309 = vpack.c.bf16 %v3305, %v3303
        %v3310 = vpack.c.bf16 %v3306, %v3304
        %3311 = vst [vmem:[#allocation2 + $0x20] sm:$0xff] %v3307
        %3312 = vst [vmem:[#allocation2 + $0x28] sm:$0xff] %v3308
        %3313 = vst [vmem:[#allocation2 + $0x30] sm:$0xff] %v3309
        %3314 = vst [vmem:[#allocation2 + $0x38] sm:$0xff] %v3310
        %v3315 = vld [vmem:[%s7] sm:$0xf]
        %v3316 = vld [vmem:[%s7 + $0x4] sm:$0xf]
        %v3317 = vld [vmem:[#allocation2] sm:$0xff]
        %v3318 = vld [vmem:[#allocation2 + $0x8] sm:$0xff]
        %v3319 = vld [vmem:[#allocation2 + $0x10] sm:$0xff]
        %v3320 = vld [vmem:[#allocation2 + $0x18] sm:$0xff]
        %v3321 = vld [vmem:[#allocation2 + $0x20] sm:$0xff]
        %v3322 = vld [vmem:[#allocation2 + $0x28] sm:$0xff]
        %v3323 = vld [vmem:[#allocation2 + $0x30] sm:$0xff]
        %v3324 = vld [vmem:[#allocation2 + $0x38] sm:$0xff]
        %v3325 = vld [vmem:[%s8] sm:$0xff]
        %v3326 = vld [vmem:[%s8 + $0x8] sm:$0xff]
        %3328 = vset.pattern.permute.xlu0 0
        %3329 = vperm.xlu0 %3328, %v3325
        %v3330 = vpop.permute.xlu0 %3329
        %3333 = vset.pattern.permute.xlu0 0
        %3334 = vperm.xlu0 %3333, %v3326
        %v3335 = vpop.permute.xlu0 %3334
        %v3339 = vunpack.c.l.b16 %v3315
        %v3340 = vunpack.c.l.b16 %v3316
        %v3341 = vpack.c.b16 %v3340, %v3339
        %vm3342 = vcmask 523264
        %v3344 = vsel %vm3342, %v3341, 0
        %3346 = vmatprep.subr.bf16.mxu0 %v3318
        %3347 = vmatpush1.bf16.msra.mxu0 %v3317
        %3348 = vmatprep.subr.bf16.mxu0 %v3320
        %3349 = vmatpush1.bf16.msra.mxu0 %v3319
        %3350 = vmatprep.subr.bf16.mxu0 %v3322
        %3351 = vmatpush1.bf16.msra.mxu0 %v3321
        %3352 = vmatprep.subr.bf16.mxu0 %v3324
        %3353 = vmatpush1.bf16.msra.mxu0 %v3323
        %3354 = vmatprep.subr.bf16.mxu0 0
        %3355 = vmatpush1.bf16.msra.mxu0 0
        %3356 = vmatprep.subr.bf16.mxu0 0
        %3357 = vmatpush1.bf16.msra.mxu0 0
        %3358 = vmatprep.subr.bf16.mxu0 0
        %3359 = vmatpush1.bf16.msra.mxu0 0
        %3360 = vmatprep.subr.bf16.mxu0 0
        %3361 = vmatpush1.bf16.msra.mxu0 0
        %3362 = vmatprep.subr.bf16.mxu0 0
        %3363 = vmatpush1.bf16.msra.mxu0 0
        %3364 = vmatprep.subr.bf16.mxu0 0
        %3365 = vmatpush1.bf16.msra.mxu0 0
        %3366 = vmatprep.subr.bf16.mxu0 0
        %3367 = vmatpush1.bf16.msra.mxu0 0
        %3368 = vmatprep.subr.bf16.mxu0 0
        %3369 = vmatpush1.bf16.msra.mxu0 0
        %3370 = vmatprep.subr.bf16.mxu0 0
        %3371 = vmatpush1.bf16.msra.mxu0 0
        %3372 = vmatprep.subr.bf16.mxu0 0
        %3373 = vmatpush1.bf16.msra.mxu0 0
        %3374 = vmatprep.subr.bf16.mxu0 0
        %3375 = vmatpush1.bf16.msra.mxu0 0
        %3376 = vmatprep.subr.bf16.mxu0 0
        %3377 = vmatpush1.bf16.msra.mxu0 0
        %3378 = vmatprep.mubr.bf16.mxu0 0
        %3379 = vmatmul.mubr.bf16.gmra.mrb[0].mxu0 %v3344
        %v3380 = vpop.f32.mrb[0].mxu0
        %v3381 = vadd.f32 %v3330, %v3380
        %v3382 = vpop.f32.mrb[0].mxu0
        %v3383 = vadd.f32 %v3330, %v3382
        %v3384 = vpop.f32.mrb[0].mxu0
        %v3385 = vadd.f32 %v3335, %v3384
        %v3386 = vpop.f32.mrb[0].mxu0
        %v3387 = vadd.f32 %v3335, %v3386
        %3388 = vdwg.mxu0
        %3389 = vst [vmem:[%s352] sm:$0xff] %v3381
        %3390 = vst [vmem:[%s352 + $0x8] sm:$0xff] %v3383
        %3391 = vst [vmem:[%s352 + $0x10] sm:$0xff] %v3385
        %3392 = vst [vmem:[%s352 + $0x18] sm:$0xff] %v3387
        %s3393 = sand.u32 %s247, 1
        %s3394 = scalar_lea.sflag [#allocation4], %s3393
        %s3395 = sand.u32 %s247, 1
        %s3396 = smul.addr %s3395, 32
        %s3397 = scalar_lea.vmem [#allocation3], %s3396
        // Predicated region
        $region61: #{tpu_custom_call.1} parent=59 // pred_check
          %p3398 = pneg %p257
        $region62: #{tpu_custom_call.1} parent=59 // pred_check_branch
          %3400 = sbr.rel (%p3398) target = $region64
        $region63: #{tpu_custom_call.1} parent=59 // pred_region
          %s3402 = ssub.s32 512, 512
          %3403 = vsyncadd %s3394, %s3402
          %s3404 = smul.addr %s24, 4
          %s3405 = smul.addr %s3404, 128
          %s3406 = scalar_lea.hbm %s10, %s3405
          %s3407 = sshll.u32 %s3397, 4
          %s3408 = int_to_ptr.vmem [resolvable:$true] %s3407
          %3413 = dma.vmem_to_hbm [thread:$0]  %s3408, 512, %s3406, %s3394, 256, 256, 16
        $region64: #{tpu_custom_call.1} parent=59 // pred_fallthru
          _
      $region60: #{tpu_custom_call.1} parent=5 // pred_fallthru
        _
      %p3414 = scmp.le.s32.totalorder 2, %s19
      // Predicated region
      $region65: #{tpu_custom_call.1} parent=5 // pred_check
        %p3415 = pneg %p3414
      $region66: #{tpu_custom_call.1} parent=5 // pred_check_branch
        %3417 = sbr.rel (%p3415) target = $region68
      $region67: #{tpu_custom_call.1} parent=5 // pred_region
        %s3418 = ssub.s32 %s19, 2
        // Predicated region
        $region69: #{tpu_custom_call.1} parent=67 // pred_check
          %p3419 = pneg %p263
        $region70: #{tpu_custom_call.1} parent=67 // pred_check_branch
          %3421 = sbr.rel (%p3419) target = $region72
        $region71: #{tpu_custom_call.1} parent=67 // pred_region
          %s3422 = sand.u32 %s248, 1
          %s3423 = scalar_lea.sflag [#allocation4], %s3422
          %s3424 = sand.u32 %s248, 1
          %s3425 = smul.addr %s3424, 32
          %s3426 = scalar_lea.vmem [#allocation3], %s3425
          %3427 = dma.done %s3423, 512
        $region72: #{tpu_custom_call.1} parent=67 // pred_fallthru
          _
      $region68: #{tpu_custom_call.1} parent=5 // pred_fallthru
        _
    $region6: #{tpu_custom_call.1} parent=1 // loop_footer
      %s23 = sadd.s32 1, %s19
    $region7: #{tpu_custom_call.1} parent=1 // loop_footer_branch
      %18 = sbr.rel target = $region3
    $region8: #{tpu_custom_call.1} parent=1 // loop_exit
      _
    %3428 = vsyncpa [#allocation4], 1
    %s3429 = scalar_lea.sflag [#allocation4], 1
    %3430 = vsyncpa %s3429, 1

</llo_original>
